<compile_context>
chip_gen: v6e
topology: v6e:2x2x1
jax: 0.10.0
libtpu: 0.0.40
codegen_flags: <defaults>
</compile_context>

<pallas_src>
import functools
import math

import jax
import jax.numpy as jnp
from jax.experimental import pallas as pl
from jax.experimental.pallas import tpu as pltpu

F32 = jnp.float32
BF16 = jnp.bfloat16


def match_lstm_kernel(
    # data
    p_emb_ref, q_emb_ref, plens_ref, qlens_ref, bvalid_ref, ans_oh_ref,
    # preprocessing LSTM (gate order i,f,g — o gate is dead, h := tanh(c))
    wih_pre_ref, whh_pre_ref, b_pre_ref,
    # match-stage attention
    wq_ref, wp_ref, bp_ref, walpha_ref, balpha_ref,
    # match LSTM (gate order i,f,o,g; whh fused with attend_hidden)
    whcomb_ref, wih_m_hp_ref, wih_m_wq_ref, b_m_ref,
    # answer pointer
    wam_f_ref, wam_b_ref, wa_ref, ba_ref, wbeta_ref, bbeta_ref,
    wih_ptr_f_ref, wih_ptr_b_ref, whh_ptr_ref, b_ptr_ref,
    # outputs
    dist_ref, loss_ref,
    # VMEM scratch
    hp_s, hq_s, ap_s, ghp_s, hf_s, hb_s, xgp_s, xgq_s,
    *, Tp, Tq, Bp, H, inv_B):
  zeros_bh = jnp.zeros((Bp, H), F32)
  plens = plens_ref[...]                      # [Bp, 1] int32 (0 for padded rows)
  qlens = qlens_ref[...]

  # ---- preprocess_input ------------------------------------------------------
  # Hoisted input-gate projections: one big bf16 MXU matmul per sequence.
  b_pre = b_pre_ref[...]
  xgp_s[...] = (jnp.dot(p_emb_ref[...].reshape(Tp * Bp, -1), wih_pre_ref[...],
                        preferred_element_type=F32) + b_pre
                ).reshape(Tp, Bp, 3 * H)
  xgq_s[...] = (jnp.dot(q_emb_ref[...].reshape(Tq * Bp, -1), wih_pre_ref[...],
                        preferred_element_type=F32) + b_pre
                ).reshape(Tq, Bp, 3 * H)

  whh_pre = whh_pre_ref[...]                  # [H, 3H] bf16, gate order (i, f, g)

  def make_pre_body(xg_ref, out_ref, lens):
    def body(t, carry):
      h, c = carry
      gates = xg_ref[t] + jnp.dot(h.astype(BF16), whh_pre,
                                  preferred_element_type=F32)          # [Bp, 3H]
      sig = jax.nn.sigmoid(gates[:, :2 * H])
      g_g = jnp.tanh(gates[:, 2 * H:])
      c_new = sig[:, H:] * c + sig[:, :H] * g_g
      m = (lens > t).astype(F32)                                       # [Bp, 1]
      h_new = jnp.tanh(c_new) * m             # module overrides h := tanh(c)
      c_new = c_new * m
      out_ref[t] = h_new
      return (h_new, c_new)
    return body

  jax.lax.fori_loop(0, Tp, make_pre_body(xgp_s, hp_s, plens),
                    (zeros_bh, zeros_bh))
  jax.lax.fori_loop(0, Tq, make_pre_body(xgq_s, hq_s, qlens),
                    (zeros_bh, zeros_bh))

  # ---- match_question_passage (bidirectional, fwd/bwd fused as [2Bp] rows) ---
  hq_all = hq_s[...]                                                   # [Tq,Bp,H]
  hp_flat = hp_s[...].reshape(Tp * Bp, H).astype(BF16)
  hq_flat = hq_all.reshape(Tq * Bp, H).astype(BF16)

  aq_all = jnp.dot(hq_flat, wq_ref[...], preferred_element_type=F32
                   ).reshape(Tq, 1, Bp, H)                             # question proj
  ap_s[...] = (jnp.dot(hp_flat, wp_ref[...], preferred_element_type=F32)
               + bp_ref[...]).reshape(Tp, Bp, H)                       # passage proj
  # Hoisted hp-half of the match-LSTM input gates (z = [hp | w_hq]); exact
  # because Hp is already zero past passage_len.
  ghp_s[...] = (jnp.dot(hp_flat, wih_m_hp_ref[...], preferred_element_type=F32)
                + b_m_ref[...]).reshape(Tp, Bp, 4 * H)

  whcomb = whcomb_ref[...]                    # [H, 4H+H] = [whh_match | attend_hidden]
  wih_m_wq = wih_m_wq_ref[...]                # [H, 4H]
  walpha = walpha_ref[...]                    # [1, H]
  balpha = balpha_ref[...]                    # [1, 1]

  def match_body(i, carry):
    h, c = carry                              # [2Bp, H] f32, rows: fwd | bwd
    bwd = Tp - 1 - i
    # single fused matmul for everything that depends on h
    h_mm = jnp.dot(h.astype(BF16), whcomb, preferred_element_type=F32)   # [2Bp,5H]
    gates_h = h_mm[:, :4 * H]
    ah = h_mm[:, 4 * H:]

    ap2 = jnp.concatenate([ap_s[i], ap_s[bwd]], axis=0)                  # [2Bp,H]
    add = (ap2 + ah).reshape(2, Bp, H)[None]                             # [1,2,Bp,H]
    # NOTE: no question-length mask on this softmax — matches the reference module.
    g_att = jnp.tanh(aq_all + add)                                       # [Tq,2,Bp,H]
    s = jnp.sum(g_att * walpha, axis=-1, keepdims=True) + balpha         # [Tq,2,Bp,1]
    s = s - jnp.max(s, axis=0, keepdims=True)
    e = jnp.exp(s)
    a = e * pl.reciprocal(jnp.sum(e, axis=0, keepdims=True), approx=True)
    w_hq = jnp.sum(a * hq_all[:, None], axis=0).reshape(2 * Bp, H)       # [2Bp,H]

    m2 = jnp.concatenate([plens > i, plens > bwd], axis=0).astype(F32)   # [2Bp,1]
    ghp2 = jnp.concatenate([ghp_s[i], ghp_s[bwd]], axis=0)               # [2Bp,4H]
    gates = ghp2 + gates_h + jnp.dot((w_hq * m2).astype(BF16), wih_m_wq,
                                     preferred_element_type=F32)
    sig = jax.nn.sigmoid(gates[:, :3 * H])
    g_g = jnp.tanh(gates[:, 3 * H:])
    c_new = (sig[:, H:2 * H] * c + sig[:, :H] * g_g) * m2
    h_new = sig[:, 2 * H:3 * H] * jnp.tanh(c_new) * m2

    hf_s[i] = h_new[:Bp]                      # forward states, in order
    hb_s[bwd] = h_new[Bp:]                    # backward states, already de-reversed
    return (h_new, c_new)

  zeros_2bh = jnp.zeros((2 * Bp, H), F32)
  jax.lax.fori_loop(0, Tp, match_body, (zeros_2bh, zeros_2bh))

  # ---- answer_pointer (2 unrolled pointer steps) -----------------------------
  hf_all = hf_s[...]
  hb_all = hb_s[...]
  # attend_match_lstm(Hr) without materializing Hr = [Hf | Hb]
  am_all = (jnp.dot(hf_all.reshape(Tp * Bp, H).astype(BF16), wam_f_ref[...],
                    preferred_element_type=F32)
            + jnp.dot(hb_all.reshape(Tp * Bp, H).astype(BF16), wam_b_ref[...],
                      preferred_element_type=F32)).reshape(Tp, Bp, H)

  wa = wa_ref[...]
  ba = ba_ref[...]
  wbeta = wbeta_ref[...]
  bbeta = bbeta_ref[...]
  wih_ptr_f = wih_ptr_f_ref[...]
  wih_ptr_b = wih_ptr_b_ref[...]
  whh_ptr = whh_ptr_ref[...]
  b_ptr = b_ptr_ref[...]
  bvalid = bvalid_ref[...]                                             # [Bp,1]
  ans_oh = ans_oh_ref[...]                                             # [2,Bp,Tp]

  t_iota = jax.lax.broadcasted_iota(jnp.int32, (Tp, Bp, 1), 0)
  valid3 = t_iota < plens[None]                                        # [Tp,Bp,1]
  valid3_f = valid3.astype(F32)

  ha = zeros_bh
  ca = zeros_bh
  loss_acc = jnp.zeros((1, 1), F32)
  neg_big = jnp.float32(-1e30)
  for k in range(2):                                                   # only 2 steps
    aa = jnp.dot(ha.astype(BF16), wa, preferred_element_type=F32) + ba   # [Bp,H]
    fk = jnp.tanh(am_all + aa[None])                                     # [Tp,Bp,H]
    s3 = jnp.sum(fk * wbeta, axis=-1, keepdims=True) + bbeta             # [Tp,Bp,1]
    s3 = jnp.where(valid3, s3, neg_big)       # softmax over the passage prefix only
    s3 = s3 - jnp.max(s3, axis=0, keepdims=True)
    e3 = jnp.exp(s3)
    beta3 = (e3 * pl.reciprocal(jnp.sum(e3, axis=0, keepdims=True), approx=True)
             * valid3_f)                                                 # [Tp,Bp,1]

    beta_bt = beta3.reshape(Tp, Bp).T                                    # [Bp,Tp] lane-dense
    dist_ref[k] = beta_bt

    sel = jnp.sum(beta_bt * ans_oh[k], axis=-1, keepdims=True)           # [Bp,1]
    sel = jnp.where(bvalid > 0.0, sel, 1.0)   # padded batch rows -> zero loss
    # Reference would give -log(0)=inf if the gold index lies past passage_len;
    # clamp only for finiteness, never changes in-range probabilities.
    sel = jnp.maximum(sel, jnp.float32(1e-30))
    loss_acc = loss_acc + jnp.sum(-jnp.log(sel), axis=0, keepdims=True)

    w_hr_f = jnp.sum(beta3 * hf_all, axis=0)                             # [Bp,H]
    w_hr_b = jnp.sum(beta3 * hb_all, axis=0)
    gates = (jnp.dot(w_hr_f.astype(BF16), wih_ptr_f, preferred_element_type=F32)
             + jnp.dot(w_hr_b.astype(BF16), wih_ptr_b, preferred_element_type=F32)
             + jnp.dot(ha.astype(BF16), whh_ptr, preferred_element_type=F32)
             + b_ptr)                                                    # [Bp,4H]
    sig = jax.nn.sigmoid(gates[:, :3 * H])
    g_g = jnp.tanh(gates[:, 3 * H:])
    ca = sig[:, H:2 * H] * ca + sig[:, :H] * g_g
    ha = sig[:, 2 * H:3 * H] * jnp.tanh(ca)

  loss_ref[...] = loss_acc * inv_B


def init_params(key, vocab_size, embed_size, hidden_size):
  """Deterministic parameter init with the same shapes as the PyTorch module."""
  H, E = hidden_size, embed_size
  ks = jax.random.split(key, 24)

  def nrm(k, shape, scale=0.1):
    return (scale * jax.random.normal(k, shape)).astype(F32)

  emb = nrm(ks[0], (vocab_size, E))
  emb = emb.at[0].set(0.0)  # padding_idx row

  return dict(
      embedding=emb,
      # preprocessing_lstm: LSTMCell(E -> H)
      pre_wih=nrm(ks[1], (4 * H, E)), pre_whh=nrm(ks[2], (4 * H, H)),
      pre_bih=nrm(ks[3], (4 * H,)), pre_bhh=nrm(ks[4], (4 * H,)),
      # attend_question / attend_passage / attend_hidden
      wq=nrm(ks[5], (H, H)),
      wp=nrm(ks[6], (H, H)), bp=nrm(ks[7], (H,)),
      wr=nrm(ks[8], (H, H)),
      # alpha_transform: Linear(H, 1)
      walpha=nrm(ks[9], (1, H)), balpha=nrm(ks[10], (1,)),
      # match_lstm: LSTMCell(2H -> H)
      m_wih=nrm(ks[11], (4 * H, 2 * H)), m_whh=nrm(ks[12], (4 * H, H)),
      m_bih=nrm(ks[13], (4 * H,)), m_bhh=nrm(ks[14], (4 * H,)),
      # attend_match_lstm / attend_answer / beta_transform
      wam=nrm(ks[15], (H, 2 * H)),
      wa=nrm(ks[16], (H, H)), ba=nrm(ks[17], (H,)),
      wbeta=nrm(ks[18], (1, H)), bbeta=nrm(ks[19], (1,)),
      # answer_pointer_lstm: LSTMCell(2H -> H)
      ptr_wih=nrm(ks[20], (4 * H, 2 * H)), ptr_whh=nrm(ks[21], (4 * H, H)),
      ptr_bih=nrm(ks[22], (4 * H,)), ptr_bhh=nrm(ks[23], (4 * H,)),
  )


def match_lstm_forward(passage_ids, question_ids, answer,
                       passage_lens, question_lens, params):
  """Returns (answer_distributions [2, B, Tp], loss [1, 1])."""
  Tp, B = passage_ids.shape
  Tq = question_ids.shape[0]
  H = params['wq'].shape[0]
  E = params['embedding'].shape[1]
  Bp = ((B + 7) // 8) * 8          # pad batch to a sublane multiple

  def pad_b(x, axis):
    pad = [(0, 0)] * x.ndim
    pad[axis] = (0, Bp - B)
    return jnp.pad(x, pad)

  # embedding lookup + (p=0) dropout — JAX glue
  p_emb = pad_b(params['embedding'][passage_ids], 1).astype(BF16)     # [Tp,Bp,E]
  q_emb = pad_b(params['embedding'][question_ids], 1).astype(BF16)    # [Tq,Bp,E]

  plens = pad_b(passage_lens.astype(jnp.int32)[:, None], 0)           # [Bp,1], padded rows: 0
  qlens = pad_b(question_lens.astype(jnp.int32)[:, None], 0)
  bvalid = (jnp.arange(Bp) < B).astype(F32)[:, None]                  # [Bp,1]
  ans_oh = pad_b(jax.nn.one_hot(answer, Tp, dtype=F32), 1)            # [2,Bp,Tp] lane-dense

  def lstm_weights(wih, whh, bih, bhh, order):
    """PyTorch LSTMCell rows are (i,f,g,o); reorder, transpose, fold biases."""
    Hh = whh.shape[1]
    sl = {'i': slice(0, Hh), 'f': slice(Hh, 2 * Hh),
          'g': slice(2 * Hh, 3 * Hh), 'o': slice(3 * Hh, 4 * Hh)}
    wih_r = jnp.concatenate([wih[sl[g]] for g in order], axis=0).T
    whh_r = jnp.concatenate([whh[sl[g]] for g in order], axis=0).T
    b_r = jnp.concatenate([(bih + bhh)[sl[g]] for g in order], axis=0)[None, :]
    return wih_r, whh_r, b_r

  # preprocessing LSTM: h is overwritten with tanh(c) -> o gate dead, keep (i,f,g)
  wih_pre, whh_pre, b_pre = lstm_weights(params['pre_wih'], params['pre_whh'],
                                         params['pre_bih'], params['pre_bhh'],
                                         ('i', 'f', 'g'))
  # match / pointer LSTMs: reorder to (i,f,o,g) so sigmoid covers [:3H], tanh [3H:]
  wih_m, whh_m, b_m = lstm_weights(params['m_wih'], params['m_whh'],
                                   params['m_bih'], params['m_bhh'],
                                   ('i', 'f', 'o', 'g'))
  wih_ptr, whh_ptr, b_ptr = lstm_weights(params['ptr_wih'], params['ptr_whh'],
                                         params['ptr_bih'], params['ptr_bhh'],
                                         ('i', 'f', 'o', 'g'))

  whcomb = jnp.concatenate([whh_m, params['wr'].T], axis=1)           # [H, 4H+H]
  wam_t = params['wam'].T                                             # [2H, H]

  bf = lambda w: w.astype(BF16)
  f3 = lambda w: w.astype(F32)

  args = [
      p_emb, q_emb, plens, qlens, bvalid, ans_oh,
      bf(wih_pre), bf(whh_pre), f3(b_pre),
      bf(params['wq'].T), bf(params['wp'].T), f3(params['bp'][None, :]),
      f3(params['walpha']), f3(params['balpha'][None, :]),
      bf(whcomb), bf(wih_m[:H]), bf(wih_m[H:]), f3(b_m),
      bf(wam_t[:H]), bf(wam_t[H:]),
      bf(params['wa'].T), f3(params['ba'][None, :]),
      f3(params['wbeta']), f3(params['bbeta'][None, :]),
      bf(wih_ptr[:H]), bf(wih_ptr[H:]), bf(whh_ptr), f3(b_ptr),
  ]

  scratch_defs = [
      ((Tp, Bp, H), F32),        # Hp
      ((Tq, Bp, H), F32),        # Hq
      ((Tp, Bp, H), F32),        # attend_passage(Hp)
      ((Tp, Bp, 4 * H), F32),    # hoisted Hp @ wih_m[:H] + b_m
      ((Tp, Bp, H), F32),        # Hf (forward match states)
      ((Tp, Bp, H), F32),        # Hb (backward, de-reversed)
      ((Tp, Bp, 3 * H), F32),    # hoisted passage input gates
      ((Tq, Bp, 3 * H), F32),    # hoisted question input gates
  ]
  scratch = [pltpu.VMEM(s, d) for s, d in scratch_defs]
  scratch_bytes = sum(math.prod(s) * jnp.dtype(d).itemsize for s, d in scratch_defs)
  io_bytes = sum(math.prod(a.shape) * jnp.dtype(a.dtype).itemsize for a in args)
  io_bytes += 2 * Bp * Tp * 4 + 4
  vmem_limit = int(min(max(3 * (scratch_bytes + io_bytes), 32 * 2**20), 112 * 2**20))

  flops = 2 * Bp * (
      (Tp + Tq) * (E * 3 * H + H * 3 * H)                # preprocessing
      + Tq * H * H + Tp * (H * H + H * 4 * H)            # hoisted projections
      + Tp * 2 * (H * 5 * H + H * 4 * H)                 # match recurrence (both dirs)
      + Tp * 2 * Tq * 2 * H                              # attention score + weighted sum
      + Tp * 2 * H * H                                   # attend_match_lstm
      + 2 * (H * H + 3 * H * 4 * H + Tp * 2 * H))        # answer pointer
  transcendentals = Bp * (
      (Tp + Tq) * 4 * H
      + Tp * (2 * Tq * H + 2 * 6 * H)
      + 2 * (Tp * H + 6 * H))

  kernel = functools.partial(match_lstm_kernel,
                             Tp=Tp, Tq=Tq, Bp=Bp, H=H, inv_B=1.0 / B)
  vmem_spec = pl.BlockSpec(memory_space=pltpu.MemorySpace.VMEM)
  dist_pad, loss = pl.pallas_call(
      kernel,
      out_shape=(jax.ShapeDtypeStruct((2, Bp, Tp), F32),
                 jax.ShapeDtypeStruct((1, 1), F32)),
      in_specs=[vmem_spec] * len(args),
      out_specs=(vmem_spec, vmem_spec),
      scratch_shapes=scratch,
      compiler_params=pltpu.CompilerParams(vmem_limit_bytes=vmem_limit),
      cost_estimate=pl.CostEstimate(flops=int(flops),
                                    transcendentals=int(transcendentals),
                                    bytes_accessed=int(io_bytes + scratch_bytes)),
  )(*args)

  return dist_pad[:, :B, :], loss              # [2, B, Tp], [1, 1]


if __name__ == "__main__":
  # small config consistent with the module's forward()
  vocab_size = 50
  embed_size = 16
  hidden_size = 32
  B = 2
  Tp = 8   # max_passage_len
  Tq = 6   # max_question_len

  key = jax.random.PRNGKey(0)
  k_par, k_p, k_q = jax.random.split(key, 3)
  params = init_params(k_par, vocab_size, embed_size, hidden_size)

  passage_ids = jax.random.randint(k_p, (Tp, B), 1, vocab_size, dtype=jnp.int32)
  question_ids = jax.random.randint(k_q, (Tq, B), 1, vocab_size, dtype=jnp.int32)
  passage_lens = jnp.array([8, 5], dtype=jnp.int32)
  question_lens = jnp.array([6, 4], dtype=jnp.int32)
  answer = jnp.array([[2, 1], [5, 3]], dtype=jnp.int32)   # [2, B] start/end indices

  dist, loss = jax.jit(match_lstm_forward)(
      passage_ids, question_ids, answer, passage_lens, question_lens, params)
  jax.block_until_ready((dist, loss))
  print("KERNEL_OK")
</pallas_src>

<mosaic_0001>
module attributes {stable_mosaic.version = 11 : i64} {
  func.func @match_lstm_kernel(%arg0: memref<8x8x16xbf16, #tpu.memory_space<vmem>>, %arg1: memref<6x8x16xbf16, #tpu.memory_space<vmem>>, %arg2: memref<8x1xi32, #tpu.memory_space<vmem>>, %arg3: memref<8x1xi32, #tpu.memory_space<vmem>>, %arg4: memref<8x1xf32, #tpu.memory_space<vmem>>, %arg5: memref<2x8x8xf32, #tpu.memory_space<vmem>>, %arg6: memref<16x96xbf16, #tpu.memory_space<vmem>>, %arg7: memref<32x96xbf16, #tpu.memory_space<vmem>>, %arg8: memref<1x96xf32, #tpu.memory_space<vmem>>, %arg9: memref<32x32xbf16, #tpu.memory_space<vmem>>, %arg10: memref<32x32xbf16, #tpu.memory_space<vmem>>, %arg11: memref<1x32xf32, #tpu.memory_space<vmem>>, %arg12: memref<1x32xf32, #tpu.memory_space<vmem>>, %arg13: memref<1x1xf32, #tpu.memory_space<vmem>>, %arg14: memref<32x160xbf16, #tpu.memory_space<vmem>>, %arg15: memref<32x128xbf16, #tpu.memory_space<vmem>>, %arg16: memref<32x128xbf16, #tpu.memory_space<vmem>>, %arg17: memref<1x128xf32, #tpu.memory_space<vmem>>, %arg18: memref<32x32xbf16, #tpu.memory_space<vmem>>, %arg19: memref<32x32xbf16, #tpu.memory_space<vmem>>, %arg20: memref<32x32xbf16, #tpu.memory_space<vmem>>, %arg21: memref<1x32xf32, #tpu.memory_space<vmem>>, %arg22: memref<1x32xf32, #tpu.memory_space<vmem>>, %arg23: memref<1x1xf32, #tpu.memory_space<vmem>>, %arg24: memref<32x128xbf16, #tpu.memory_space<vmem>>, %arg25: memref<32x128xbf16, #tpu.memory_space<vmem>>, %arg26: memref<32x128xbf16, #tpu.memory_space<vmem>>, %arg27: memref<1x128xf32, #tpu.memory_space<vmem>>, %arg28: memref<2x8x8xf32, #tpu.memory_space<vmem>>, %arg29: memref<1x1xf32, #tpu.memory_space<vmem>>, %arg30: memref<8x8x32xf32, #tpu.memory_space<vmem>>, %arg31: memref<6x8x32xf32, #tpu.memory_space<vmem>>, %arg32: memref<8x8x32xf32, #tpu.memory_space<vmem>>, %arg33: memref<8x8x128xf32, #tpu.memory_space<vmem>>, %arg34: memref<8x8x32xf32, #tpu.memory_space<vmem>>, %arg35: memref<8x8x32xf32, #tpu.memory_space<vmem>>, %arg36: memref<8x8x96xf32, #tpu.memory_space<vmem>>, %arg37: memref<6x8x96xf32, #tpu.memory_space<vmem>>) attributes {dimension_semantics = [], scalar_prefetch = 0 : i64, scratch_operands = 8 : i64, tpu.core_type = #tpu.core_type<tc>} {
    %cst = arith.constant 0.000000e+00 : f32
    %0 = vector.broadcast %cst : f32 to vector<8x32xf32>
    %c0 = arith.constant 0 : index
    %c0_0 = arith.constant 0 : index
    %1 = vector.load %arg2[%c0, %c0_0] : memref<8x1xi32, #tpu.memory_space<vmem>>, vector<8x1xi32>
    %c0_1 = arith.constant 0 : index
    %c0_2 = arith.constant 0 : index
    %2 = vector.load %arg3[%c0_1, %c0_2] : memref<8x1xi32, #tpu.memory_space<vmem>>, vector<8x1xi32>
    %c0_3 = arith.constant 0 : index
    %c0_4 = arith.constant 0 : index
    %3 = vector.load %arg8[%c0_3, %c0_4] : memref<1x96xf32, #tpu.memory_space<vmem>>, vector<1x96xf32>
    %c0_5 = arith.constant 0 : index
    %c0_6 = arith.constant 0 : index
    %c0_7 = arith.constant 0 : index
    %4 = vector.load %arg0[%c0_5, %c0_6, %c0_7] : memref<8x8x16xbf16, #tpu.memory_space<vmem>>, vector<8x8x16xbf16>
    %5 = vector.shape_cast %4 : vector<8x8x16xbf16> to vector<64x16xbf16>
    %c0_8 = arith.constant 0 : index
    %c0_9 = arith.constant 0 : index
    %6 = vector.load %arg6[%c0_8, %c0_9] : memref<16x96xbf16, #tpu.memory_space<vmem>>, vector<16x96xbf16>
    %cst_10 = arith.constant dense<0.000000e+00> : vector<64x96xf32>
    %7 = tpu.matmul %5, %6, %cst_10 {dimension_numbers = #tpu.dot_dimension_numbers<[1], [0], [0], [1], [0, 0, 1, 1], [], []>} : vector<64x16xbf16>, vector<16x96xbf16>, vector<64x96xf32> -> vector<64x96xf32>
    %8 = vector.broadcast %3 : vector<1x96xf32> to vector<64x96xf32>
    %9 = arith.addf %7, %8 : vector<64x96xf32>
    %10 = vector.shape_cast %9 : vector<64x96xf32> to vector<8x8x96xf32>
    %c0_11 = arith.constant 0 : index
    %c0_12 = arith.constant 0 : index
    %c0_13 = arith.constant 0 : index
    %11 = vector.load %arg36[%c0_11, %c0_12, %c0_13] : memref<8x8x96xf32, #tpu.memory_space<vmem>>, vector<8x8x96xf32>
    tpu.vector_store %arg36[%c0_11, %c0_12, %c0_13], %10 {strides = array<i32>} : memref<8x8x96xf32, #tpu.memory_space<vmem>>, vector<8x8x96xf32>,
    %c0_14 = arith.constant 0 : index
    %c0_15 = arith.constant 0 : index
    %c0_16 = arith.constant 0 : index
    %12 = vector.load %arg1[%c0_14, %c0_15, %c0_16] : memref<6x8x16xbf16, #tpu.memory_space<vmem>>, vector<6x8x16xbf16>
    %13 = vector.shape_cast %12 : vector<6x8x16xbf16> to vector<48x16xbf16>
    %c0_17 = arith.constant 0 : index
    %c0_18 = arith.constant 0 : index
    %14 = vector.load %arg6[%c0_17, %c0_18] : memref<16x96xbf16, #tpu.memory_space<vmem>>, vector<16x96xbf16>
    %cst_19 = arith.constant dense<0.000000e+00> : vector<48x96xf32>
    %15 = tpu.matmul %13, %14, %cst_19 {dimension_numbers = #tpu.dot_dimension_numbers<[1], [0], [0], [1], [0, 0, 1, 1], [], []>} : vector<48x16xbf16>, vector<16x96xbf16>, vector<48x96xf32> -> vector<48x96xf32>
    %16 = vector.broadcast %3 : vector<1x96xf32> to vector<48x96xf32>
    %17 = arith.addf %15, %16 : vector<48x96xf32>
    %18 = vector.shape_cast %17 : vector<48x96xf32> to vector<6x8x96xf32>
    %c0_20 = arith.constant 0 : index
    %c0_21 = arith.constant 0 : index
    %c0_22 = arith.constant 0 : index
    %19 = vector.load %arg37[%c0_20, %c0_21, %c0_22] : memref<6x8x96xf32, #tpu.memory_space<vmem>>, vector<6x8x96xf32>
    tpu.vector_store %arg37[%c0_20, %c0_21, %c0_22], %18 {strides = array<i32>} : memref<6x8x96xf32, #tpu.memory_space<vmem>>, vector<6x8x96xf32>,
    %c0_23 = arith.constant 0 : index
    %c0_24 = arith.constant 0 : index
    %20 = vector.load %arg7[%c0_23, %c0_24] : memref<32x96xbf16, #tpu.memory_space<vmem>>, vector<32x96xbf16>
    %c0_i32 = arith.constant 0 : i32
    %c8_i32 = arith.constant 8 : i32
    %21 = arith.addi %c0_i32, %c8_i32 : i32
    %c1_i32 = arith.constant 1 : i32
    %22:2 = scf.for %arg38 = %c0_i32 to %21 step %c1_i32 iter_args(%arg39 = %0, %arg40 = %0) -> (vector<8x32xf32>, vector<8x32xf32>)  : i32 {
      %221 = arith.index_cast %arg38 : i32 to index
      %c0_137 = arith.constant 0 : index
      %c0_138 = arith.constant 0 : index
      %222 = vector.load %arg36[%221, %c0_137, %c0_138] : memref<8x8x96xf32, #tpu.memory_space<vmem>>, vector<1x8x96xf32>
      %223 = vector.shape_cast %222 : vector<1x8x96xf32> to vector<8x96xf32>
      %224 = arith.truncf %arg39 : vector<8x32xf32> to vector<8x32xbf16>
      %cst_139 = arith.constant dense<0.000000e+00> : vector<8x96xf32>
      %225 = tpu.matmul %224, %20, %cst_139 {dimension_numbers = #tpu.dot_dimension_numbers<[1], [0], [0], [1], [0, 0, 1, 1], [], []>} : vector<8x32xbf16>, vector<32x96xbf16>, vector<8x96xf32> -> vector<8x96xf32>
      %226 = arith.addf %223, %225 : vector<8x96xf32>
      %227 = vector.extract_strided_slice %226 {offsets = [0, 0], sizes = [8, 64], strides = [1, 1]} : vector<8x96xf32> to vector<8x64xf32>
      %228 = arith.negf %227 : vector<8x64xf32>
      %229 = math.exp %228 : vector<8x64xf32>
      %cst_140 = arith.constant 1.000000e+00 : f32
      %230 = vector.broadcast %cst_140 : f32 to vector<8x64xf32>
      %231 = arith.addf %230, %229 : vector<8x64xf32>
      %232 = arith.divf %230, %231 : vector<8x64xf32>
      %233 = vector.extract_strided_slice %226 {offsets = [0, 64], sizes = [8, 32], strides = [1, 1]} : vector<8x96xf32> to vector<8x32xf32>
      %234 = math.tanh %233 : vector<8x32xf32>
      %235 = vector.extract_strided_slice %232 {offsets = [0, 32], sizes = [8, 32], strides = [1, 1]} : vector<8x64xf32> to vector<8x32xf32>
      %236 = arith.mulf %235, %arg40 : vector<8x32xf32>
      %237 = vector.extract_strided_slice %232 {offsets = [0, 0], sizes = [8, 32], strides = [1, 1]} : vector<8x64xf32> to vector<8x32xf32>
      %238 = arith.mulf %237, %234 : vector<8x32xf32>
      %239 = arith.addf %236, %238 : vector<8x32xf32>
      %240 = vector.broadcast %arg38 : i32 to vector<8x1xi32>
      %241 = arith.cmpi sgt, %1, %240 : vector<8x1xi32>
      %242 = arith.extui %241 : vector<8x1xi1> to vector<8x1xi32>
      %243 = arith.sitofp %242 : vector<8x1xi32> to vector<8x1xf32>
      %244 = math.tanh %239 : vector<8x32xf32>
      %245 = vector.broadcast %243 : vector<8x1xf32> to vector<8x32xf32>
      %246 = arith.mulf %244, %245 : vector<8x32xf32>
      %247 = vector.broadcast %243 : vector<8x1xf32> to vector<8x32xf32>
      %248 = arith.mulf %239, %247 : vector<8x32xf32>
      %249 = arith.index_cast %arg38 : i32 to index
      %c0_141 = arith.constant 0 : index
      %c0_142 = arith.constant 0 : index
      %250 = vector.load %arg30[%249, %c0_141, %c0_142] : memref<8x8x32xf32, #tpu.memory_space<vmem>>, vector<1x8x32xf32>
      %251 = vector.shape_cast %250 : vector<1x8x32xf32> to vector<8x32xf32>
      %252 = vector.shape_cast %246 : vector<8x32xf32> to vector<1x8x32xf32>
      tpu.vector_store %arg30[%249, %c0_141, %c0_142], %252 {strides = array<i32>} : memref<8x8x32xf32, #tpu.memory_space<vmem>>, vector<1x8x32xf32>,
      scf.yield %246, %248 : vector<8x32xf32>, vector<8x32xf32>
    }
    %c8_i32_25 = arith.constant 8 : i32
    %c0_i32_26 = arith.constant 0 : i32
    %c6_i32 = arith.constant 6 : i32
    %23 = arith.addi %c0_i32_26, %c6_i32 : i32
    %c1_i32_27 = arith.constant 1 : i32
    %24:2 = scf.for %arg38 = %c0_i32_26 to %23 step %c1_i32_27 iter_args(%arg39 = %0, %arg40 = %0) -> (vector<8x32xf32>, vector<8x32xf32>)  : i32 {
      %221 = arith.index_cast %arg38 : i32 to index
      %c0_137 = arith.constant 0 : index
      %c0_138 = arith.constant 0 : index
      %222 = vector.load %arg37[%221, %c0_137, %c0_138] : memref<6x8x96xf32, #tpu.memory_space<vmem>>, vector<1x8x96xf32>
      %223 = vector.shape_cast %222 : vector<1x8x96xf32> to vector<8x96xf32>
      %224 = arith.truncf %arg39 : vector<8x32xf32> to vector<8x32xbf16>
      %cst_139 = arith.constant dense<0.000000e+00> : vector<8x96xf32>
      %225 = tpu.matmul %224, %20, %cst_139 {dimension_numbers = #tpu.dot_dimension_numbers<[1], [0], [0], [1], [0, 0, 1, 1], [], []>} : vector<8x32xbf16>, vector<32x96xbf16>, vector<8x96xf32> -> vector<8x96xf32>
      %226 = arith.addf %223, %225 : vector<8x96xf32>
      %227 = vector.extract_strided_slice %226 {offsets = [0, 0], sizes = [8, 64], strides = [1, 1]} : vector<8x96xf32> to vector<8x64xf32>
      %228 = arith.negf %227 : vector<8x64xf32>
      %229 = math.exp %228 : vector<8x64xf32>
      %cst_140 = arith.constant 1.000000e+00 : f32
      %230 = vector.broadcast %cst_140 : f32 to vector<8x64xf32>
      %231 = arith.addf %230, %229 : vector<8x64xf32>
      %232 = arith.divf %230, %231 : vector<8x64xf32>
      %233 = vector.extract_strided_slice %226 {offsets = [0, 64], sizes = [8, 32], strides = [1, 1]} : vector<8x96xf32> to vector<8x32xf32>
      %234 = math.tanh %233 : vector<8x32xf32>
      %235 = vector.extract_strided_slice %232 {offsets = [0, 32], sizes = [8, 32], strides = [1, 1]} : vector<8x64xf32> to vector<8x32xf32>
      %236 = arith.mulf %235, %arg40 : vector<8x32xf32>
      %237 = vector.extract_strided_slice %232 {offsets = [0, 0], sizes = [8, 32], strides = [1, 1]} : vector<8x64xf32> to vector<8x32xf32>
      %238 = arith.mulf %237, %234 : vector<8x32xf32>
      %239 = arith.addf %236, %238 : vector<8x32xf32>
      %240 = vector.broadcast %arg38 : i32 to vector<8x1xi32>
      %241 = arith.cmpi sgt, %2, %240 : vector<8x1xi32>
      %242 = arith.extui %241 : vector<8x1xi1> to vector<8x1xi32>
      %243 = arith.sitofp %242 : vector<8x1xi32> to vector<8x1xf32>
      %244 = math.tanh %239 : vector<8x32xf32>
      %245 = vector.broadcast %243 : vector<8x1xf32> to vector<8x32xf32>
      %246 = arith.mulf %244, %245 : vector<8x32xf32>
      %247 = vector.broadcast %243 : vector<8x1xf32> to vector<8x32xf32>
      %248 = arith.mulf %239, %247 : vector<8x32xf32>
      %249 = arith.index_cast %arg38 : i32 to index
      %c0_141 = arith.constant 0 : index
      %c0_142 = arith.constant 0 : index
      %250 = vector.load %arg31[%249, %c0_141, %c0_142] : memref<6x8x32xf32, #tpu.memory_space<vmem>>, vector<1x8x32xf32>
      %251 = vector.shape_cast %250 : vector<1x8x32xf32> to vector<8x32xf32>
      %252 = vector.shape_cast %246 : vector<8x32xf32> to vector<1x8x32xf32>
      tpu.vector_store %arg31[%249, %c0_141, %c0_142], %252 {strides = array<i32>} : memref<6x8x32xf32, #tpu.memory_space<vmem>>, vector<1x8x32xf32>,
      scf.yield %246, %248 : vector<8x32xf32>, vector<8x32xf32>
    }
    %c6_i32_28 = arith.constant 6 : i32
    %c0_29 = arith.constant 0 : index
    %c0_30 = arith.constant 0 : index
    %c0_31 = arith.constant 0 : index
    %25 = vector.load %arg31[%c0_29, %c0_30, %c0_31] : memref<6x8x32xf32, #tpu.memory_space<vmem>>, vector<6x8x32xf32>
    %c0_32 = arith.constant 0 : index
    %c0_33 = arith.constant 0 : index
    %c0_34 = arith.constant 0 : index
    %26 = vector.load %arg30[%c0_32, %c0_33, %c0_34] : memref<8x8x32xf32, #tpu.memory_space<vmem>>, vector<8x8x32xf32>
    %27 = vector.shape_cast %26 : vector<8x8x32xf32> to vector<64x32xf32>
    %28 = arith.truncf %27 : vector<64x32xf32> to vector<64x32xbf16>
    %29 = vector.shape_cast %25 : vector<6x8x32xf32> to vector<48x32xf32>
    %30 = arith.truncf %29 : vector<48x32xf32> to vector<48x32xbf16>
    %c0_35 = arith.constant 0 : index
    %c0_36 = arith.constant 0 : index
    %31 = vector.load %arg9[%c0_35, %c0_36] : memref<32x32xbf16, #tpu.memory_space<vmem>>, vector<32x32xbf16>
    %cst_37 = arith.constant dense<0.000000e+00> : vector<48x32xf32>
    %32 = tpu.matmul %30, %31, %cst_37 {dimension_numbers = #tpu.dot_dimension_numbers<[1], [0], [0], [1], [0, 0, 1, 1], [], []>} : vector<48x32xbf16>, vector<32x32xbf16>, vector<48x32xf32> -> vector<48x32xf32>
    %33 = vector.shape_cast %32 : vector<48x32xf32> to vector<6x1x8x32xf32>
    %c0_38 = arith.constant 0 : index
    %c0_39 = arith.constant 0 : index
    %34 = vector.load %arg10[%c0_38, %c0_39] : memref<32x32xbf16, #tpu.memory_space<vmem>>, vector<32x32xbf16>
    %cst_40 = arith.constant dense<0.000000e+00> : vector<64x32xf32>
    %35 = tpu.matmul %28, %34, %cst_40 {dimension_numbers = #tpu.dot_dimension_numbers<[1], [0], [0], [1], [0, 0, 1, 1], [], []>} : vector<64x32xbf16>, vector<32x32xbf16>, vector<64x32xf32> -> vector<64x32xf32>
    %c0_41 = arith.constant 0 : index
    %c0_42 = arith.constant 0 : index
    %36 = vector.load %arg11[%c0_41, %c0_42] : memref<1x32xf32, #tpu.memory_space<vmem>>, vector<1x32xf32>
    %37 = vector.broadcast %36 : vector<1x32xf32> to vector<64x32xf32>
    %38 = arith.addf %35, %37 : vector<64x32xf32>
    %39 = vector.shape_cast %38 : vector<64x32xf32> to vector<8x8x32xf32>
    %c0_43 = arith.constant 0 : index
    %c0_44 = arith.constant 0 : index
    %c0_45 = arith.constant 0 : index
    %40 = vector.load %arg32[%c0_43, %c0_44, %c0_45] : memref<8x8x32xf32, #tpu.memory_space<vmem>>, vector<8x8x32xf32>
    tpu.vector_store %arg32[%c0_43, %c0_44, %c0_45], %39 {strides = array<i32>} : memref<8x8x32xf32, #tpu.memory_space<vmem>>, vector<8x8x32xf32>,
    %c0_46 = arith.constant 0 : index
    %c0_47 = arith.constant 0 : index
    %41 = vector.load %arg15[%c0_46, %c0_47] : memref<32x128xbf16, #tpu.memory_space<vmem>>, vector<32x128xbf16>
    %cst_48 = arith.constant dense<0.000000e+00> : vector<64x128xf32>
    %42 = tpu.matmul %28, %41, %cst_48 {dimension_numbers = #tpu.dot_dimension_numbers<[1], [0], [0], [1], [0, 0, 1, 1], [], []>} : vector<64x32xbf16>, vector<32x128xbf16>, vector<64x128xf32> -> vector<64x128xf32>
    %c0_49 = arith.constant 0 : index
    %c0_50 = arith.constant 0 : index
    %43 = vector.load %arg17[%c0_49, %c0_50] : memref<1x128xf32, #tpu.memory_space<vmem>>, vector<1x128xf32>
    %44 = vector.broadcast %43 : vector<1x128xf32> to vector<64x128xf32>
    %45 = arith.addf %42, %44 : vector<64x128xf32>
    %46 = vector.shape_cast %45 : vector<64x128xf32> to vector<8x8x128xf32>
    %c0_51 = arith.constant 0 : index
    %c0_52 = arith.constant 0 : index
    %c0_53 = arith.constant 0 : index
    %47 = vector.load %arg33[%c0_51, %c0_52, %c0_53] : memref<8x8x128xf32, #tpu.memory_space<vmem>>, vector<8x8x128xf32>
    tpu.vector_store %arg33[%c0_51, %c0_52, %c0_53], %46 {strides = array<i32>} : memref<8x8x128xf32, #tpu.memory_space<vmem>>, vector<8x8x128xf32>,
    %c0_54 = arith.constant 0 : index
    %c0_55 = arith.constant 0 : index
    %48 = vector.load %arg14[%c0_54, %c0_55] : memref<32x160xbf16, #tpu.memory_space<vmem>>, vector<32x160xbf16>
    %c0_56 = arith.constant 0 : index
    %c0_57 = arith.constant 0 : index
    %49 = vector.load %arg16[%c0_56, %c0_57] : memref<32x128xbf16, #tpu.memory_space<vmem>>, vector<32x128xbf16>
    %c0_58 = arith.constant 0 : index
    %c0_59 = arith.constant 0 : index
    %50 = vector.load %arg12[%c0_58, %c0_59] : memref<1x32xf32, #tpu.memory_space<vmem>>, vector<1x32xf32>
    %c0_60 = arith.constant 0 : index
    %c0_61 = arith.constant 0 : index
    %51 = vector.load %arg13[%c0_60, %c0_61] : memref<1x1xf32, #tpu.memory_space<vmem>>, vector<1x1xf32>
    %cst_62 = arith.constant 0.000000e+00 : f32
    %52 = vector.broadcast %cst_62 : f32 to vector<16x32xf32>
    %c0_i32_63 = arith.constant 0 : i32
    %c8_i32_64 = arith.constant 8 : i32
    %53 = arith.addi %c0_i32_63, %c8_i32_64 : i32
    %c1_i32_65 = arith.constant 1 : i32
    %54:2 = scf.for %arg38 = %c0_i32_63 to %53 step %c1_i32_65 iter_args(%arg39 = %52, %arg40 = %52) -> (vector<16x32xf32>, vector<16x32xf32>)  : i32 {
      %c7_i32 = arith.constant 7 : i32
      %221 = arith.subi %c7_i32, %arg38 : i32
      %222 = arith.truncf %arg39 : vector<16x32xf32> to vector<16x32xbf16>
      %cst_137 = arith.constant dense<0.000000e+00> : vector<16x160xf32>
      %223 = tpu.matmul %222, %48, %cst_137 {dimension_numbers = #tpu.dot_dimension_numbers<[1], [0], [0], [1], [0, 0, 1, 1], [], []>} : vector<16x32xbf16>, vector<32x160xbf16>, vector<16x160xf32> -> vector<16x160xf32>
      %224 = vector.extract_strided_slice %223 {offsets = [0, 0], sizes = [16, 128], strides = [1, 1]} : vector<16x160xf32> to vector<16x128xf32>
      %225 = vector.extract_strided_slice %223 {offsets = [0, 128], sizes = [16, 32], strides = [1, 1]} : vector<16x160xf32> to vector<16x32xf32>
      %226 = arith.index_cast %arg38 : i32 to index
      %c0_138 = arith.constant 0 : index
      %c0_139 = arith.constant 0 : index
      %227 = vector.load %arg32[%226, %c0_138, %c0_139] : memref<8x8x32xf32, #tpu.memory_space<vmem>>, vector<1x8x32xf32>
      %228 = vector.shape_cast %227 : vector<1x8x32xf32> to vector<8x32xf32>
      %229 = arith.index_cast %221 : i32 to index
      %c0_140 = arith.constant 0 : index
      %c0_141 = arith.constant 0 : index
      %230 = vector.load %arg32[%229, %c0_140, %c0_141] : memref<8x8x32xf32, #tpu.memory_space<vmem>>, vector<1x8x32xf32>
      %231 = vector.shape_cast %230 : vector<1x8x32xf32> to vector<8x32xf32>
      %232 = tpu.concatenate %228, %231 in 0 : vector<8x32xf32>, vector<8x32xf32> -> vector<16x32xf32>
      %233 = arith.addf %232, %225 : vector<16x32xf32>
      %234 = vector.shape_cast %233 : vector<16x32xf32> to vector<2x8x32xf32>
      %235 = vector.shape_cast %234 : vector<2x8x32xf32> to vector<1x2x8x32xf32>
      %236 = vector.broadcast %33 : vector<6x1x8x32xf32> to vector<6x2x8x32xf32>
      %237 = vector.broadcast %235 : vector<1x2x8x32xf32> to vector<6x2x8x32xf32>
      %238 = arith.addf %236, %237 : vector<6x2x8x32xf32>
      %239 = math.tanh %238 : vector<6x2x8x32xf32>
      %240 = vector.shape_cast %50 : vector<1x32xf32> to vector<1x1x1x32xf32>
      %241 = vector.broadcast %240 : vector<1x1x1x32xf32> to vector<6x2x8x32xf32>
      %242 = arith.mulf %239, %241 : vector<6x2x8x32xf32>
      %cst_142 = arith.constant dense<0.000000e+00> : vector<6x2x8xf32>
      %243 = vector.multi_reduction <add>, %242, %cst_142 [3] : vector<6x2x8x32xf32> to vector<6x2x8xf32>
      %244 = vector.shape_cast %243 : vector<6x2x8xf32> to vector<6x2x8x1xf32>
      %245 = vector.shape_cast %51 : vector<1x1xf32> to vector<1x1x1x1xf32>
      %246 = vector.broadcast %245 : vector<1x1x1x1xf32> to vector<6x2x8x1xf32>
      %247 = arith.addf %244, %246 : vector<6x2x8x1xf32>
      %cst_143 = arith.constant dense<0xFF800000> : vector<2x8x1xf32>
      %248 = vector.multi_reduction <maximumf>, %247, %cst_143 [0] : vector<6x2x8x1xf32> to vector<2x8x1xf32>
      %249 = vector.shape_cast %248 : vector<2x8x1xf32> to vector<1x2x8x1xf32>
      %250 = vector.broadcast %249 : vector<1x2x8x1xf32> to vector<6x2x8x1xf32>
      %251 = arith.subf %247, %250 : vector<6x2x8x1xf32>
      %252 = math.exp %251 : vector<6x2x8x1xf32>
      %cst_144 = arith.constant dense<0.000000e+00> : vector<2x8x1xf32>
      %253 = vector.multi_reduction <add>, %252, %cst_144 [0] : vector<6x2x8x1xf32> to vector<2x8x1xf32>
      %254 = vector.shape_cast %253 : vector<2x8x1xf32> to vector<1x2x8x1xf32>
      %255 = tpu.reciprocal %254 {approx = true} : vector<1x2x8x1xf32> -> vector<1x2x8x1xf32>
      %256 = vector.broadcast %255 : vector<1x2x8x1xf32> to vector<6x2x8x1xf32>
      %257 = arith.mulf %252, %256 : vector<6x2x8x1xf32>
      %258 = vector.shape_cast %25 : vector<6x8x32xf32> to vector<6x1x8x32xf32>
      %259 = vector.broadcast %257 : vector<6x2x8x1xf32> to vector<6x2x8x32xf32>
      %260 = vector.broadcast %258 : vector<6x1x8x32xf32> to vector<6x2x8x32xf32>
      %261 = arith.mulf %259, %260 : vector<6x2x8x32xf32>
      %cst_145 = arith.constant dense<0.000000e+00> : vector<2x8x32xf32>
      %262 = vector.multi_reduction <add>, %261, %cst_145 [0] : vector<6x2x8x32xf32> to vector<2x8x32xf32>
      %263 = vector.shape_cast %262 : vector<2x8x32xf32> to vector<16x32xf32>
      %264 = vector.broadcast %arg38 : i32 to vector<8x1xi32>
      %265 = arith.cmpi sgt, %1, %264 : vector<8x1xi32>
      %266 = vector.broadcast %221 : i32 to vector<8x1xi32>
      %267 = arith.cmpi sgt, %1, %266 : vector<8x1xi32>
      %268 = tpu.concatenate %265, %267 in 0 : vector<8x1xi1>, vector<8x1xi1> -> vector<16x1xi1>
      %269 = arith.extui %268 : vector<16x1xi1> to vector<16x1xi32>
      %270 = arith.sitofp %269 : vector<16x1xi32> to vector<16x1xf32>
      %271 = arith.index_cast %arg38 : i32 to index
      %c0_146 = arith.constant 0 : index
      %c0_147 = arith.constant 0 : index
      %272 = vector.load %arg33[%271, %c0_146, %c0_147] : memref<8x8x128xf32, #tpu.memory_space<vmem>>, vector<1x8x128xf32>
      %273 = vector.shape_cast %272 : vector<1x8x128xf32> to vector<8x128xf32>
      %274 = arith.index_cast %221 : i32 to index
      %c0_148 = arith.constant 0 : index
      %c0_149 = arith.constant 0 : index
      %275 = vector.load %arg33[%274, %c0_148, %c0_149] : memref<8x8x128xf32, #tpu.memory_space<vmem>>, vector<1x8x128xf32>
      %276 = vector.shape_cast %275 : vector<1x8x128xf32> to vector<8x128xf32>
      %277 = tpu.concatenate %273, %276 in 0 : vector<8x128xf32>, vector<8x128xf32> -> vector<16x128xf32>
      %278 = arith.addf %277, %224 : vector<16x128xf32>
      %279 = vector.broadcast %270 : vector<16x1xf32> to vector<16x32xf32>
      %280 = arith.mulf %263, %279 : vector<16x32xf32>
      %281 = arith.truncf %280 : vector<16x32xf32> to vector<16x32xbf16>
      %cst_150 = arith.constant dense<0.000000e+00> : vector<16x128xf32>
      %282 = tpu.matmul %281, %49, %cst_150 {dimension_numbers = #tpu.dot_dimension_numbers<[1], [0], [0], [1], [0, 0, 1, 1], [], []>} : vector<16x32xbf16>, vector<32x128xbf16>, vector<16x128xf32> -> vector<16x128xf32>
      %283 = arith.addf %278, %282 : vector<16x128xf32>
      %284 = vector.extract_strided_slice %283 {offsets = [0, 0], sizes = [16, 96], strides = [1, 1]} : vector<16x128xf32> to vector<16x96xf32>
      %285 = arith.negf %284 : vector<16x96xf32>
      %286 = math.exp %285 : vector<16x96xf32>
      %cst_151 = arith.constant 1.000000e+00 : f32
      %287 = vector.broadcast %cst_151 : f32 to vector<16x96xf32>
      %288 = arith.addf %287, %286 : vector<16x96xf32>
      %289 = arith.divf %287, %288 : vector<16x96xf32>
      %290 = vector.extract_strided_slice %283 {offsets = [0, 96], sizes = [16, 32], strides = [1, 1]} : vector<16x128xf32> to vector<16x32xf32>
      %291 = math.tanh %290 : vector<16x32xf32>
      %292 = vector.extract_strided_slice %289 {offsets = [0, 32], sizes = [16, 32], strides = [1, 1]} : vector<16x96xf32> to vector<16x32xf32>
      %293 = arith.mulf %292, %arg40 : vector<16x32xf32>
      %294 = vector.extract_strided_slice %289 {offsets = [0, 0], sizes = [16, 32], strides = [1, 1]} : vector<16x96xf32> to vector<16x32xf32>
      %295 = arith.mulf %294, %291 : vector<16x32xf32>
      %296 = arith.addf %293, %295 : vector<16x32xf32>
      %297 = vector.broadcast %270 : vector<16x1xf32> to vector<16x32xf32>
      %298 = arith.mulf %296, %297 : vector<16x32xf32>
      %299 = vector.extract_strided_slice %289 {offsets = [0, 64], sizes = [16, 32], strides = [1, 1]} : vector<16x96xf32> to vector<16x32xf32>
      %300 = math.tanh %298 : vector<16x32xf32>
      %301 = arith.mulf %299, %300 : vector<16x32xf32>
      %302 = vector.broadcast %270 : vector<16x1xf32> to vector<16x32xf32>
      %303 = arith.mulf %301, %302 : vector<16x32xf32>
      %304 = vector.extract_strided_slice %303 {offsets = [0, 0], sizes = [8, 32], strides = [1, 1]} : vector<16x32xf32> to vector<8x32xf32>
      %305 = arith.index_cast %arg38 : i32 to index
      %c0_152 = arith.constant 0 : index
      %c0_153 = arith.constant 0 : index
      %306 = vector.load %arg34[%305, %c0_152, %c0_153] : memref<8x8x32xf32, #tpu.memory_space<vmem>>, vector<1x8x32xf32>
      %307 = vector.shape_cast %306 : vector<1x8x32xf32> to vector<8x32xf32>
      %308 = vector.shape_cast %304 : vector<8x32xf32> to vector<1x8x32xf32>
      tpu.vector_store %arg34[%305, %c0_152, %c0_153], %308 {strides = array<i32>} : memref<8x8x32xf32, #tpu.memory_space<vmem>>, vector<1x8x32xf32>,
      %309 = vector.extract_strided_slice %303 {offsets = [8, 0], sizes = [8, 32], strides = [1, 1]} : vector<16x32xf32> to vector<8x32xf32>
      %310 = arith.index_cast %221 : i32 to index
      %c0_154 = arith.constant 0 : index
      %c0_155 = arith.constant 0 : index
      %311 = vector.load %arg35[%310, %c0_154, %c0_155] : memref<8x8x32xf32, #tpu.memory_space<vmem>>, vector<1x8x32xf32>
      %312 = vector.shape_cast %311 : vector<1x8x32xf32> to vector<8x32xf32>
      %313 = vector.shape_cast %309 : vector<8x32xf32> to vector<1x8x32xf32>
      tpu.vector_store %arg35[%310, %c0_154, %c0_155], %313 {strides = array<i32>} : memref<8x8x32xf32, #tpu.memory_space<vmem>>, vector<1x8x32xf32>,
      scf.yield %303, %298 : vector<16x32xf32>, vector<16x32xf32>
    }
    %c8_i32_66 = arith.constant 8 : i32
    %c0_67 = arith.constant 0 : index
    %c0_68 = arith.constant 0 : index
    %c0_69 = arith.constant 0 : index
    %55 = vector.load %arg34[%c0_67, %c0_68, %c0_69] : memref<8x8x32xf32, #tpu.memory_space<vmem>>, vector<8x8x32xf32>
    %c0_70 = arith.constant 0 : index
    %c0_71 = arith.constant 0 : index
    %c0_72 = arith.constant 0 : index
    %56 = vector.load %arg35[%c0_70, %c0_71, %c0_72] : memref<8x8x32xf32, #tpu.memory_space<vmem>>, vector<8x8x32xf32>
    %57 = vector.shape_cast %55 : vector<8x8x32xf32> to vector<64x32xf32>
    %58 = arith.truncf %57 : vector<64x32xf32> to vector<64x32xbf16>
    %c0_73 = arith.constant 0 : index
    %c0_74 = arith.constant 0 : index
    %59 = vector.load %arg18[%c0_73, %c0_74] : memref<32x32xbf16, #tpu.memory_space<vmem>>, vector<32x32xbf16>
    %cst_75 = arith.constant dense<0.000000e+00> : vector<64x32xf32>
    %60 = tpu.matmul %58, %59, %cst_75 {dimension_numbers = #tpu.dot_dimension_numbers<[1], [0], [0], [1], [0, 0, 1, 1], [], []>} : vector<64x32xbf16>, vector<32x32xbf16>, vector<64x32xf32> -> vector<64x32xf32>
    %61 = vector.shape_cast %56 : vector<8x8x32xf32> to vector<64x32xf32>
    %62 = arith.truncf %61 : vector<64x32xf32> to vector<64x32xbf16>
    %c0_76 = arith.constant 0 : index
    %c0_77 = arith.constant 0 : index
    %63 = vector.load %arg19[%c0_76, %c0_77] : memref<32x32xbf16, #tpu.memory_space<vmem>>, vector<32x32xbf16>
    %cst_78 = arith.constant dense<0.000000e+00> : vector<64x32xf32>
    %64 = tpu.matmul %62, %63, %cst_78 {dimension_numbers = #tpu.dot_dimension_numbers<[1], [0], [0], [1], [0, 0, 1, 1], [], []>} : vector<64x32xbf16>, vector<32x32xbf16>, vector<64x32xf32> -> vector<64x32xf32>
    %65 = arith.addf %60, %64 : vector<64x32xf32>
    %66 = vector.shape_cast %65 : vector<64x32xf32> to vector<8x8x32xf32>
    %c0_79 = arith.constant 0 : index
    %c0_80 = arith.constant 0 : index
    %67 = vector.load %arg20[%c0_79, %c0_80] : memref<32x32xbf16, #tpu.memory_space<vmem>>, vector<32x32xbf16>
    %c0_81 = arith.constant 0 : index
    %c0_82 = arith.constant 0 : index
    %68 = vector.load %arg21[%c0_81, %c0_82] : memref<1x32xf32, #tpu.memory_space<vmem>>, vector<1x32xf32>
    %c0_83 = arith.constant 0 : index
    %c0_84 = arith.constant 0 : index
    %69 = vector.load %arg22[%c0_83, %c0_84] : memref<1x32xf32, #tpu.memory_space<vmem>>, vector<1x32xf32>
    %c0_85 = arith.constant 0 : index
    %c0_86 = arith.constant 0 : index
    %70 = vector.load %arg23[%c0_85, %c0_86] : memref<1x1xf32, #tpu.memory_space<vmem>>, vector<1x1xf32>
    %c0_87 = arith.constant 0 : index
    %c0_88 = arith.constant 0 : index
    %71 = vector.load %arg24[%c0_87, %c0_88] : memref<32x128xbf16, #tpu.memory_space<vmem>>, vector<32x128xbf16>
    %c0_89 = arith.constant 0 : index
    %c0_90 = arith.constant 0 : index
    %72 = vector.load %arg25[%c0_89, %c0_90] : memref<32x128xbf16, #tpu.memory_space<vmem>>, vector<32x128xbf16>
    %c0_91 = arith.constant 0 : index
    %c0_92 = arith.constant 0 : index
    %73 = vector.load %arg26[%c0_91, %c0_92] : memref<32x128xbf16, #tpu.memory_space<vmem>>, vector<32x128xbf16>
    %c0_93 = arith.constant 0 : index
    %c0_94 = arith.constant 0 : index
    %74 = vector.load %arg27[%c0_93, %c0_94] : memref<1x128xf32, #tpu.memory_space<vmem>>, vector<1x128xf32>
    %c0_95 = arith.constant 0 : index
    %c0_96 = arith.constant 0 : index
    %75 = vector.load %arg4[%c0_95, %c0_96] : memref<8x1xf32, #tpu.memory_space<vmem>>, vector<8x1xf32>
    %c0_97 = arith.constant 0 : index
    %c0_98 = arith.constant 0 : index
    %c0_99 = arith.constant 0 : index
    %76 = vector.load %arg5[%c0_97, %c0_98, %c0_99] : memref<2x8x8xf32, #tpu.memory_space<vmem>>, vector<2x8x8xf32>
    %77 = tpu.iota {dimensions = array<i32: 0>} : vector<8x8x1xi32>
    %78 = vector.shape_cast %1 : vector<8x1xi32> to vector<1x8x1xi32>
    %79 = vector.broadcast %78 : vector<1x8x1xi32> to vector<8x8x1xi32>
    %80 = arith.cmpi slt, %77, %79 : vector<8x8x1xi32>
    %81 = arith.extui %80 : vector<8x8x1xi1> to vector<8x8x1xi32>
    %82 = arith.sitofp %81 : vector<8x8x1xi32> to vector<8x8x1xf32>
    %cst_100 = arith.constant 0.000000e+00 : f32
    %83 = vector.broadcast %cst_100 : f32 to vector<1x1xf32>
    %84 = arith.truncf %0 : vector<8x32xf32> to vector<8x32xbf16>
    %cst_101 = arith.constant dense<0.000000e+00> : vector<8x32xf32>
    %85 = tpu.matmul %84, %67, %cst_101 {dimension_numbers = #tpu.dot_dimension_numbers<[1], [0], [0], [1], [0, 0, 1, 1], [], []>} : vector<8x32xbf16>, vector<32x32xbf16>, vector<8x32xf32> -> vector<8x32xf32>
    %86 = vector.broadcast %68 : vector<1x32xf32> to vector<8x32xf32>
    %87 = arith.addf %85, %86 : vector<8x32xf32>
    %88 = vector.shape_cast %87 : vector<8x32xf32> to vector<1x8x32xf32>
    %89 = vector.broadcast %88 : vector<1x8x32xf32> to vector<8x8x32xf32>
    %90 = arith.addf %66, %89 : vector<8x8x32xf32>
    %91 = math.tanh %90 : vector<8x8x32xf32>
    %92 = vector.shape_cast %69 : vector<1x32xf32> to vector<1x1x32xf32>
    %93 = vector.broadcast %92 : vector<1x1x32xf32> to vector<8x8x32xf32>
    %94 = arith.mulf %91, %93 : vector<8x8x32xf32>
    %cst_102 = arith.constant dense<0.000000e+00> : vector<8x8xf32>
    %95 = vector.multi_reduction <add>, %94, %cst_102 [2] : vector<8x8x32xf32> to vector<8x8xf32>
    %96 = vector.shape_cast %95 : vector<8x8xf32> to vector<8x8x1xf32>
    %97 = vector.shape_cast %70 : vector<1x1xf32> to vector<1x1x1xf32>
    %98 = vector.broadcast %97 : vector<1x1x1xf32> to vector<8x8x1xf32>
    %99 = arith.addf %96, %98 : vector<8x8x1xf32>
    %cst_103 = arith.constant -1.000000e+30 : f32
    %100 = vector.broadcast %cst_103 : f32 to vector<8x8x1xf32>
    %101 = arith.select %80, %99, %100 : vector<8x8x1xi1>, vector<8x8x1xf32>
    %cst_104 = arith.constant dense<0xFF800000> : vector<8x1xf32>
    %102 = vector.multi_reduction <maximumf>, %101, %cst_104 [0] : vector<8x8x1xf32> to vector<8x1xf32>
    %103 = vector.shape_cast %102 : vector<8x1xf32> to vector<1x8x1xf32>
    %104 = vector.broadcast %103 : vector<1x8x1xf32> to vector<8x8x1xf32>
    %105 = arith.subf %101, %104 : vector<8x8x1xf32>
    %106 = math.exp %105 : vector<8x8x1xf32>
    %cst_105 = arith.constant dense<0.000000e+00> : vector<8x1xf32>
    %107 = vector.multi_reduction <add>, %106, %cst_105 [0] : vector<8x8x1xf32> to vector<8x1xf32>
    %108 = vector.shape_cast %107 : vector<8x1xf32> to vector<1x8x1xf32>
    %109 = tpu.reciprocal %108 {approx = true} : vector<1x8x1xf32> -> vector<1x8x1xf32>
    %110 = vector.broadcast %109 : vector<1x8x1xf32> to vector<8x8x1xf32>
    %111 = arith.mulf %106, %110 : vector<8x8x1xf32>
    %112 = arith.mulf %111, %82 : vector<8x8x1xf32>
    %113 = vector.shape_cast %112 : vector<8x8x1xf32> to vector<8x8xf32>
    %114 = tpu.transpose %113, [1, 0] : vector<8x8xf32> -> vector<8x8xf32>
    %c0_106 = arith.constant 0 : index
    %c0_107 = arith.constant 0 : index
    %c0_108 = arith.constant 0 : index
    %115 = vector.load %arg28[%c0_106, %c0_107, %c0_108] : memref<2x8x8xf32, #tpu.memory_space<vmem>>, vector<1x8x8xf32>
    %116 = vector.shape_cast %115 : vector<1x8x8xf32> to vector<8x8xf32>
    %117 = vector.shape_cast %114 : vector<8x8xf32> to vector<1x8x8xf32>
    tpu.vector_store %arg28[%c0_106, %c0_107, %c0_108], %117 {strides = array<i32>} : memref<2x8x8xf32, #tpu.memory_space<vmem>>, vector<1x8x8xf32>,
    %118 = vector.extract_strided_slice %76 {offsets = [0, 0, 0], sizes = [1, 8, 8], strides = [1, 1, 1]} : vector<2x8x8xf32> to vector<1x8x8xf32>
    %119 = vector.shape_cast %118 : vector<1x8x8xf32> to vector<8x8xf32>
    %120 = arith.mulf %114, %119 : vector<8x8xf32>
    %cst_109 = arith.constant dense<0.000000e+00> : vector<8xf32>
    %121 = vector.multi_reduction <add>, %120, %cst_109 [1] : vector<8x8xf32> to vector<8xf32>
    %122 = vector.shape_cast %121 : vector<8xf32> to vector<8x1xf32>
    %cst_110 = arith.constant 0.000000e+00 : f32
    %123 = vector.broadcast %cst_110 : f32 to vector<8x1xf32>
    %124 = arith.cmpf ogt, %75, %123 : vector<8x1xf32>
    %cst_111 = arith.constant 1.000000e+00 : f32
    %125 = vector.broadcast %cst_111 : f32 to vector<8x1xf32>
    %126 = arith.select %124, %122, %125 : vector<8x1xi1>, vector<8x1xf32>
    %cst_112 = arith.constant 1.000000e-30 : f32
    %127 = vector.broadcast %cst_112 : f32 to vector<8x1xf32>
    %128 = arith.maximumf %126, %127 : vector<8x1xf32>
    %129 = math.log %128 : vector<8x1xf32>
    %cst_113 = arith.constant 0.000000e+00 : f32
    %130 = vector.broadcast %cst_113 : f32 to vector<8x1xf32>
    %131 = arith.subf %130, %129 : vector<8x1xf32>
    %cst_114 = arith.constant dense<0.000000e+00> : vector<1xf32>
    %132 = vector.multi_reduction <add>, %131, %cst_114 [0] : vector<8x1xf32> to vector<1xf32>
    %133 = vector.shape_cast %132 : vector<1xf32> to vector<1x1xf32>
    %134 = arith.addf %83, %133 : vector<1x1xf32>
    %135 = vector.broadcast %112 : vector<8x8x1xf32> to vector<8x8x32xf32>
    %136 = arith.mulf %135, %55 : vector<8x8x32xf32>
    %cst_115 = arith.constant dense<0.000000e+00> : vector<8x32xf32>
    %137 = vector.multi_reduction <add>, %136, %cst_115 [0] : vector<8x8x32xf32> to vector<8x32xf32>
    %138 = vector.broadcast %112 : vector<8x8x1xf32> to vector<8x8x32xf32>
    %139 = arith.mulf %138, %56 : vector<8x8x32xf32>
    %cst_116 = arith.constant dense<0.000000e+00> : vector<8x32xf32>
    %140 = vector.multi_reduction <add>, %139, %cst_116 [0] : vector<8x8x32xf32> to vector<8x32xf32>
    %141 = arith.truncf %137 : vector<8x32xf32> to vector<8x32xbf16>
    %cst_117 = arith.constant dense<0.000000e+00> : vector<8x128xf32>
    %142 = tpu.matmul %141, %71, %cst_117 {dimension_numbers = #tpu.dot_dimension_numbers<[1], [0], [0], [1], [0, 0, 1, 1], [], []>} : vector<8x32xbf16>, vector<32x128xbf16>, vector<8x128xf32> -> vector<8x128xf32>
    %143 = arith.truncf %140 : vector<8x32xf32> to vector<8x32xbf16>
    %cst_118 = arith.constant dense<0.000000e+00> : vector<8x128xf32>
    %144 = tpu.matmul %143, %72, %cst_118 {dimension_numbers = #tpu.dot_dimension_numbers<[1], [0], [0], [1], [0, 0, 1, 1], [], []>} : vector<8x32xbf16>, vector<32x128xbf16>, vector<8x128xf32> -> vector<8x128xf32>
    %145 = arith.addf %142, %144 : vector<8x128xf32>
    %146 = arith.truncf %0 : vector<8x32xf32> to vector<8x32xbf16>
    %cst_119 = arith.constant dense<0.000000e+00> : vector<8x128xf32>
    %147 = tpu.matmul %146, %73, %cst_119 {dimension_numbers = #tpu.dot_dimension_numbers<[1], [0], [0], [1], [0, 0, 1, 1], [], []>} : vector<8x32xbf16>, vector<32x128xbf16>, vector<8x128xf32> -> vector<8x128xf32>
    %148 = arith.addf %145, %147 : vector<8x128xf32>
    %149 = vector.broadcast %74 : vector<1x128xf32> to vector<8x128xf32>
    %150 = arith.addf %148, %149 : vector<8x128xf32>
    %151 = vector.extract_strided_slice %150 {offsets = [0, 0], sizes = [8, 96], strides = [1, 1]} : vector<8x128xf32> to vector<8x96xf32>
    %152 = arith.negf %151 : vector<8x96xf32>
    %153 = math.exp %152 : vector<8x96xf32>
    %cst_120 = arith.constant 1.000000e+00 : f32
    %154 = vector.broadcast %cst_120 : f32 to vector<8x96xf32>
    %155 = arith.addf %154, %153 : vector<8x96xf32>
    %156 = arith.divf %154, %155 : vector<8x96xf32>
    %157 = vector.extract_strided_slice %150 {offsets = [0, 96], sizes = [8, 32], strides = [1, 1]} : vector<8x128xf32> to vector<8x32xf32>
    %158 = math.tanh %157 : vector<8x32xf32>
    %159 = vector.extract_strided_slice %156 {offsets = [0, 32], sizes = [8, 32], strides = [1, 1]} : vector<8x96xf32> to vector<8x32xf32>
    %160 = arith.mulf %159, %0 : vector<8x32xf32>
    %161 = vector.extract_strided_slice %156 {offsets = [0, 0], sizes = [8, 32], strides = [1, 1]} : vector<8x96xf32> to vector<8x32xf32>
    %162 = arith.mulf %161, %158 : vector<8x32xf32>
    %163 = arith.addf %160, %162 : vector<8x32xf32>
    %164 = vector.extract_strided_slice %156 {offsets = [0, 64], sizes = [8, 32], strides = [1, 1]} : vector<8x96xf32> to vector<8x32xf32>
    %165 = math.tanh %163 : vector<8x32xf32>
    %166 = arith.mulf %164, %165 : vector<8x32xf32>
    %167 = arith.truncf %166 : vector<8x32xf32> to vector<8x32xbf16>
    %cst_121 = arith.constant dense<0.000000e+00> : vector<8x32xf32>
    %168 = tpu.matmul %167, %67, %cst_121 {dimension_numbers = #tpu.dot_dimension_numbers<[1], [0], [0], [1], [0, 0, 1, 1], [], []>} : vector<8x32xbf16>, vector<32x32xbf16>, vector<8x32xf32> -> vector<8x32xf32>
    %169 = vector.broadcast %68 : vector<1x32xf32> to vector<8x32xf32>
    %170 = arith.addf %168, %169 : vector<8x32xf32>
    %171 = vector.shape_cast %170 : vector<8x32xf32> to vector<1x8x32xf32>
    %172 = vector.broadcast %171 : vector<1x8x32xf32> to vector<8x8x32xf32>
    %173 = arith.addf %66, %172 : vector<8x8x32xf32>
    %174 = math.tanh %173 : vector<8x8x32xf32>
    %175 = vector.shape_cast %69 : vector<1x32xf32> to vector<1x1x32xf32>
    %176 = vector.broadcast %175 : vector<1x1x32xf32> to vector<8x8x32xf32>
    %177 = arith.mulf %174, %176 : vector<8x8x32xf32>
    %cst_122 = arith.constant dense<0.000000e+00> : vector<8x8xf32>
    %178 = vector.multi_reduction <add>, %177, %cst_122 [2] : vector<8x8x32xf32> to vector<8x8xf32>
    %179 = vector.shape_cast %178 : vector<8x8xf32> to vector<8x8x1xf32>
    %180 = vector.shape_cast %70 : vector<1x1xf32> to vector<1x1x1xf32>
    %181 = vector.broadcast %180 : vector<1x1x1xf32> to vector<8x8x1xf32>
    %182 = arith.addf %179, %181 : vector<8x8x1xf32>
    %cst_123 = arith.constant -1.000000e+30 : f32
    %183 = vector.broadcast %cst_123 : f32 to vector<8x8x1xf32>
    %184 = arith.select %80, %182, %183 : vector<8x8x1xi1>, vector<8x8x1xf32>
    %cst_124 = arith.constant dense<0xFF800000> : vector<8x1xf32>
    %185 = vector.multi_reduction <maximumf>, %184, %cst_124 [0] : vector<8x8x1xf32> to vector<8x1xf32>
    %186 = vector.shape_cast %185 : vector<8x1xf32> to vector<1x8x1xf32>
    %187 = vector.broadcast %186 : vector<1x8x1xf32> to vector<8x8x1xf32>
    %188 = arith.subf %184, %187 : vector<8x8x1xf32>
    %189 = math.exp %188 : vector<8x8x1xf32>
    %cst_125 = arith.constant dense<0.000000e+00> : vector<8x1xf32>
    %190 = vector.multi_reduction <add>, %189, %cst_125 [0] : vector<8x8x1xf32> to vector<8x1xf32>
    %191 = vector.shape_cast %190 : vector<8x1xf32> to vector<1x8x1xf32>
    %192 = tpu.reciprocal %191 {approx = true} : vector<1x8x1xf32> -> vector<1x8x1xf32>
    %193 = vector.broadcast %192 : vector<1x8x1xf32> to vector<8x8x1xf32>
    %194 = arith.mulf %189, %193 : vector<8x8x1xf32>
    %195 = arith.mulf %194, %82 : vector<8x8x1xf32>
    %196 = vector.shape_cast %195 : vector<8x8x1xf32> to vector<8x8xf32>
    %197 = tpu.transpose %196, [1, 0] : vector<8x8xf32> -> vector<8x8xf32>
    %c1 = arith.constant 1 : index
    %c0_126 = arith.constant 0 : index
    %c0_127 = arith.constant 0 : index
    %198 = vector.load %arg28[%c1, %c0_126, %c0_127] : memref<2x8x8xf32, #tpu.memory_space<vmem>>, vector<1x8x8xf32>
    %199 = vector.shape_cast %198 : vector<1x8x8xf32> to vector<8x8xf32>
    %200 = vector.shape_cast %197 : vector<8x8xf32> to vector<1x8x8xf32>
    tpu.vector_store %arg28[%c1, %c0_126, %c0_127], %200 {strides = array<i32>} : memref<2x8x8xf32, #tpu.memory_space<vmem>>, vector<1x8x8xf32>,
    %201 = vector.extract_strided_slice %76 {offsets = [1, 0, 0], sizes = [1, 8, 8], strides = [1, 1, 1]} : vector<2x8x8xf32> to vector<1x8x8xf32>
    %202 = vector.shape_cast %201 : vector<1x8x8xf32> to vector<8x8xf32>
    %203 = arith.mulf %197, %202 : vector<8x8xf32>
    %cst_128 = arith.constant dense<0.000000e+00> : vector<8xf32>
    %204 = vector.multi_reduction <add>, %203, %cst_128 [1] : vector<8x8xf32> to vector<8xf32>
    %205 = vector.shape_cast %204 : vector<8xf32> to vector<8x1xf32>
    %cst_129 = arith.constant 0.000000e+00 : f32
    %206 = vector.broadcast %cst_129 : f32 to vector<8x1xf32>
    %207 = arith.cmpf ogt, %75, %206 : vector<8x1xf32>
    %cst_130 = arith.constant 1.000000e+00 : f32
    %208 = vector.broadcast %cst_130 : f32 to vector<8x1xf32>
    %209 = arith.select %207, %205, %208 : vector<8x1xi1>, vector<8x1xf32>
    %cst_131 = arith.constant 1.000000e-30 : f32
    %210 = vector.broadcast %cst_131 : f32 to vector<8x1xf32>
    %211 = arith.maximumf %209, %210 : vector<8x1xf32>
    %212 = math.log %211 : vector<8x1xf32>
    %cst_132 = arith.constant 0.000000e+00 : f32
    %213 = vector.broadcast %cst_132 : f32 to vector<8x1xf32>
    %214 = arith.subf %213, %212 : vector<8x1xf32>
    %cst_133 = arith.constant dense<0.000000e+00> : vector<1xf32>
    %215 = vector.multi_reduction <add>, %214, %cst_133 [0] : vector<8x1xf32> to vector<1xf32>
    %216 = vector.shape_cast %215 : vector<1xf32> to vector<1x1xf32>
    %217 = arith.addf %134, %216 : vector<1x1xf32>
    %cst_134 = arith.constant 5.000000e-01 : f32
    %218 = vector.broadcast %cst_134 : f32 to vector<1x1xf32>
    %219 = arith.mulf %217, %218 : vector<1x1xf32>
    %c0_135 = arith.constant 0 : index
    %c0_136 = arith.constant 0 : index
    %220 = vector.load %arg29[%c0_135, %c0_136] : memref<1x1xf32, #tpu.memory_space<vmem>>, vector<1x1xf32>
    tpu.vector_store %arg29[%c0_135, %c0_136], %219 {strides = array<i32>} : memref<1x1xf32, #tpu.memory_space<vmem>>, vector<1x1xf32>,
    return
  }
}

</mosaic_0001>

<llo_original>
// kernel: match_lstm_forward.1
$region0: #{match_lstm_forward.1}
  #allocation0 [shape = 'u32[]', space=smem, size = 0x4, offset = 0x4, fixed_abs, tag = 'smem constant byte address 0x4 - core index']
  #allocation1 [shape = 'u32[144,128]{1,0:T(1,128)}', space=vmem, size = 0x12000, scoped, tag = 'internal scratch']
  #allocation2 [shape = 'f32[8,8,32]{2,1,0:T(8,128)}', space=vmem, size = 0x8000, scoped, tag = 'scratch operand']
  #allocation3 [shape = 'f32[6,8,32]{2,1,0:T(8,128)}', space=vmem, size = 0x6000, scoped, tag = 'scratch operand']
  #allocation4 [shape = 'f32[8,8,32]{2,1,0:T(8,128)}', space=vmem, size = 0x8000, scoped, tag = 'scratch operand']
  #allocation5 [shape = 'f32[8,8,128]{2,1,0:T(8,128)}', space=vmem, size = 0x8000, scoped, tag = 'scratch operand']
  #allocation6 [shape = 'f32[8,8,32]{2,1,0:T(8,128)}', space=vmem, size = 0x8000, scoped, tag = 'scratch operand']
  #allocation7 [shape = 'f32[8,8,32]{2,1,0:T(8,128)}', space=vmem, size = 0x8000, scoped, tag = 'scratch operand']
  #allocation8 [shape = 'f32[8,8,96]{2,1,0:T(8,128)}', space=vmem, size = 0x8000, scoped, tag = 'scratch operand']
  #allocation9 [shape = 'f32[6,8,96]{2,1,0:T(8,128)}', space=vmem, size = 0x6000, scoped, tag = 'scratch operand']
  #allocation10 [shape = 'f32[1,1]{1,0:T(1,128)S(1)}', space=vmem, size = 0x200, scoped, tag = 'scoped memory for match_lstm_forward.1']
  #allocation11 [shape = 'f32[1,1]{1,0:T(1,128)S(1)}', space=vmem, size = 0x200, scoped, tag = 'scoped memory for match_lstm_forward.1']
  %s0 = inlined_call_operand.smem [shape: u32[30], index: -1, kind: input, shape index: {}]
  %s1 = sld [smem:[%s0]]
  %s2 = scalar_lea.smem %s0, 1
  %s3 = sld [smem:[%s2]]
  %s4 = scalar_lea.smem %s0, 2
  %s5 = sld [smem:[%s4]]
  %s6 = scalar_lea.smem %s0, 3
  %s7 = sld [smem:[%s6]]
  %s8 = scalar_lea.smem %s0, 4
  %s9 = sld [smem:[%s8]]
  %s10 = scalar_lea.smem %s0, 5
  %s11 = sld [smem:[%s10]]
  %s12 = scalar_lea.smem %s0, 6
  %s13 = sld [smem:[%s12]]
  %s14 = scalar_lea.smem %s0, 7
  %s15 = sld [smem:[%s14]]
  %s16 = scalar_lea.smem %s0, 8
  %s17 = sld [smem:[%s16]]
  %s18 = scalar_lea.smem %s0, 9
  %s19 = sld [smem:[%s18]]
  %s20 = scalar_lea.smem %s0, 10
  %s21 = sld [smem:[%s20]]
  %s22 = scalar_lea.smem %s0, 11
  %s23 = sld [smem:[%s22]]
  %s24 = scalar_lea.smem %s0, 12
  %s25 = sld [smem:[%s24]]
  %s26 = scalar_lea.smem %s0, 13
  %s27 = sld [smem:[%s26]]
  %s28 = scalar_lea.smem %s0, 14
  %s29 = sld [smem:[%s28]]
  %s30 = scalar_lea.smem %s0, 15
  %s31 = sld [smem:[%s30]]
  %s32 = scalar_lea.smem %s0, 16
  %s33 = sld [smem:[%s32]]
  %s34 = scalar_lea.smem %s0, 17
  %s35 = sld [smem:[%s34]]
  %s36 = scalar_lea.smem %s0, 18
  %s37 = sld [smem:[%s36]]
  %s38 = scalar_lea.smem %s0, 19
  %s39 = sld [smem:[%s38]]
  %s40 = scalar_lea.smem %s0, 20
  %s41 = sld [smem:[%s40]]
  %s42 = scalar_lea.smem %s0, 21
  %s43 = sld [smem:[%s42]]
  %s44 = scalar_lea.smem %s0, 22
  %s45 = sld [smem:[%s44]]
  %s46 = scalar_lea.smem %s0, 23
  %s47 = sld [smem:[%s46]]
  %s48 = scalar_lea.smem %s0, 24
  %s49 = sld [smem:[%s48]]
  %s50 = scalar_lea.smem %s0, 25
  %s51 = sld [smem:[%s50]]
  %s52 = scalar_lea.smem %s0, 26
  %s53 = sld [smem:[%s52]]
  %s54 = scalar_lea.smem %s0, 27
  %s55 = sld [smem:[%s54]]
  %s56 = scalar_lea.smem %s0, 28
  %s57 = sld [smem:[%s56]]
  %s58 = scalar_lea.smem %s0, 29
  %s59 = sld [smem:[%s58]]
  %60 = xla_tuple %s57, %s59
  %s61 = sld [smem:[#allocation0]]
  $region151: #{match_lstm_forward.1} parent=0
    _
  %s63 = ssub.s32 1, %s61
  %s64 = scalar_select 0, %s63, %s61
  %v65 = vstv %s27
  %66 = vst [vmem:[#allocation10] sm:$0x1] %v65
  %v67 = vstv %s47
  %68 = vst [vmem:[#allocation11] sm:$0x1] %v67
  $region1: #{match_lstm_forward.1} parent=0
    #allocation12 [shape = 'u8[512]{0}', space=vmem, size = 0x400, scoped, tag = 'output window, operand 1, single buffered']
    #allocation13 [shape = 's32[1]{0}', space=sflag, size = 0x4, scoped, tag = 'scoped memory for match_lstm_forward.1']
    %69 = vsyncpa [#allocation13], 0
    // Predicated region
    $region2: #{match_lstm_forward.1} parent=1 // pred_check
      _
    $region3: #{match_lstm_forward.1} parent=1 // pred_check_branch
      %71 = sbr.rel (0) target = $region5
    $region4: #{match_lstm_forward.1} parent=1 // pred_region
      _
    $region5: #{match_lstm_forward.1} parent=1 // pred_fallthru
      _
    // Predicated region
    $region6: #{match_lstm_forward.1} parent=1 // pred_check
      _
    $region7: #{match_lstm_forward.1} parent=1 // pred_check_branch
      %73 = sbr.rel (0) target = $region9
    $region8: #{match_lstm_forward.1} parent=1 // pred_region
      _
    $region9: #{match_lstm_forward.1} parent=1 // pred_fallthru
      _
    // Predicated region
    $region10: #{match_lstm_forward.1} parent=1 // pred_check
      _
    $region11: #{match_lstm_forward.1} parent=1 // pred_check_branch
      %75 = sbr.rel (0) target = $region13
    $region12: #{match_lstm_forward.1} parent=1 // pred_region
      _
    $region13: #{match_lstm_forward.1} parent=1 // pred_fallthru
      _
    // Predicated region
    $region14: #{match_lstm_forward.1} parent=1 // pred_check
      _
    $region15: #{match_lstm_forward.1} parent=1 // pred_check_branch
      %77 = sbr.rel (0) target = $region17
    $region16: #{match_lstm_forward.1} parent=1 // pred_region
      _
    $region17: #{match_lstm_forward.1} parent=1 // pred_fallthru
      _
    // Predicated region
    $region18: #{match_lstm_forward.1} parent=1 // pred_check
      _
    $region19: #{match_lstm_forward.1} parent=1 // pred_check_branch
      %79 = sbr.rel (0) target = $region21
    $region20: #{match_lstm_forward.1} parent=1 // pred_region
      _
    $region21: #{match_lstm_forward.1} parent=1 // pred_fallthru
      _
    // Predicated region
    $region22: #{match_lstm_forward.1} parent=1 // pred_check
      _
    $region23: #{match_lstm_forward.1} parent=1 // pred_check_branch
      %81 = sbr.rel (0) target = $region25
    $region24: #{match_lstm_forward.1} parent=1 // pred_region
      _
    $region25: #{match_lstm_forward.1} parent=1 // pred_fallthru
      _
    // Predicated region
    $region26: #{match_lstm_forward.1} parent=1 // pred_check
      _
    $region27: #{match_lstm_forward.1} parent=1 // pred_check_branch
      %83 = sbr.rel (0) target = $region29
    $region28: #{match_lstm_forward.1} parent=1 // pred_region
      _
    $region29: #{match_lstm_forward.1} parent=1 // pred_fallthru
      _
    // Predicated region
    $region30: #{match_lstm_forward.1} parent=1 // pred_check
      _
    $region31: #{match_lstm_forward.1} parent=1 // pred_check_branch
      %85 = sbr.rel (0) target = $region33
    $region32: #{match_lstm_forward.1} parent=1 // pred_region
      _
    $region33: #{match_lstm_forward.1} parent=1 // pred_fallthru
      _
    // Predicated region
    $region34: #{match_lstm_forward.1} parent=1 // pred_check
      _
    $region35: #{match_lstm_forward.1} parent=1 // pred_check_branch
      %87 = sbr.rel (0) target = $region37
    $region36: #{match_lstm_forward.1} parent=1 // pred_region
      _
    $region37: #{match_lstm_forward.1} parent=1 // pred_fallthru
      _
    // Predicated region
    $region38: #{match_lstm_forward.1} parent=1 // pred_check
      _
    $region39: #{match_lstm_forward.1} parent=1 // pred_check_branch
      %89 = sbr.rel (0) target = $region41
    $region40: #{match_lstm_forward.1} parent=1 // pred_region
      _
    $region41: #{match_lstm_forward.1} parent=1 // pred_fallthru
      _
    // Predicated region
    $region42: #{match_lstm_forward.1} parent=1 // pred_check
      _
    $region43: #{match_lstm_forward.1} parent=1 // pred_check_branch
      %91 = sbr.rel (0) target = $region45
    $region44: #{match_lstm_forward.1} parent=1 // pred_region
      _
    $region45: #{match_lstm_forward.1} parent=1 // pred_fallthru
      _
    // Predicated region
    $region46: #{match_lstm_forward.1} parent=1 // pred_check
      _
    $region47: #{match_lstm_forward.1} parent=1 // pred_check_branch
      %93 = sbr.rel (0) target = $region49
    $region48: #{match_lstm_forward.1} parent=1 // pred_region
      _
    $region49: #{match_lstm_forward.1} parent=1 // pred_fallthru
      _
    // Predicated region
    $region50: #{match_lstm_forward.1} parent=1 // pred_check
      _
    $region51: #{match_lstm_forward.1} parent=1 // pred_check_branch
      %95 = sbr.rel (0) target = $region53
    $region52: #{match_lstm_forward.1} parent=1 // pred_region
      _
    $region53: #{match_lstm_forward.1} parent=1 // pred_fallthru
      _
    // Predicated region
    $region54: #{match_lstm_forward.1} parent=1 // pred_check
      _
    $region55: #{match_lstm_forward.1} parent=1 // pred_check_branch
      %97 = sbr.rel (0) target = $region57
    $region56: #{match_lstm_forward.1} parent=1 // pred_region
      _
    $region57: #{match_lstm_forward.1} parent=1 // pred_fallthru
      _
    // Predicated region
    $region58: #{match_lstm_forward.1} parent=1 // pred_check
      _
    $region59: #{match_lstm_forward.1} parent=1 // pred_check_branch
      %99 = sbr.rel (0) target = $region61
    $region60: #{match_lstm_forward.1} parent=1 // pred_region
      _
    $region61: #{match_lstm_forward.1} parent=1 // pred_fallthru
      _
    // Predicated region
    $region62: #{match_lstm_forward.1} parent=1 // pred_check
      _
    $region63: #{match_lstm_forward.1} parent=1 // pred_check_branch
      %101 = sbr.rel (0) target = $region65
    $region64: #{match_lstm_forward.1} parent=1 // pred_region
      _
    $region65: #{match_lstm_forward.1} parent=1 // pred_fallthru
      _
    // Predicated region
    $region66: #{match_lstm_forward.1} parent=1 // pred_check
      _
    $region67: #{match_lstm_forward.1} parent=1 // pred_check_branch
      %103 = sbr.rel (0) target = $region69
    $region68: #{match_lstm_forward.1} parent=1 // pred_region
      _
    $region69: #{match_lstm_forward.1} parent=1 // pred_fallthru
      _
    // Predicated region
    $region70: #{match_lstm_forward.1} parent=1 // pred_check
      _
    $region71: #{match_lstm_forward.1} parent=1 // pred_check_branch
      %105 = sbr.rel (0) target = $region73
    $region72: #{match_lstm_forward.1} parent=1 // pred_region
      _
    $region73: #{match_lstm_forward.1} parent=1 // pred_fallthru
      _
    // Predicated region
    $region74: #{match_lstm_forward.1} parent=1 // pred_check
      _
    $region75: #{match_lstm_forward.1} parent=1 // pred_check_branch
      %107 = sbr.rel (0) target = $region77
    $region76: #{match_lstm_forward.1} parent=1 // pred_region
      _
    $region77: #{match_lstm_forward.1} parent=1 // pred_fallthru
      _
    // Predicated region
    $region78: #{match_lstm_forward.1} parent=1 // pred_check
      _
    $region79: #{match_lstm_forward.1} parent=1 // pred_check_branch
      %109 = sbr.rel (0) target = $region81
    $region80: #{match_lstm_forward.1} parent=1 // pred_region
      _
    $region81: #{match_lstm_forward.1} parent=1 // pred_fallthru
      _
    // Predicated region
    $region82: #{match_lstm_forward.1} parent=1 // pred_check
      _
    $region83: #{match_lstm_forward.1} parent=1 // pred_check_branch
      %111 = sbr.rel (0) target = $region85
    $region84: #{match_lstm_forward.1} parent=1 // pred_region
      _
    $region85: #{match_lstm_forward.1} parent=1 // pred_fallthru
      _
    // Predicated region
    $region86: #{match_lstm_forward.1} parent=1 // pred_check
      _
    $region87: #{match_lstm_forward.1} parent=1 // pred_check_branch
      %113 = sbr.rel (0) target = $region89
    $region88: #{match_lstm_forward.1} parent=1 // pred_region
      _
    $region89: #{match_lstm_forward.1} parent=1 // pred_fallthru
      _
    // Predicated region
    $region90: #{match_lstm_forward.1} parent=1 // pred_check
      _
    $region91: #{match_lstm_forward.1} parent=1 // pred_check_branch
      %115 = sbr.rel (0) target = $region93
    $region92: #{match_lstm_forward.1} parent=1 // pred_region
      _
    $region93: #{match_lstm_forward.1} parent=1 // pred_fallthru
      _
    // Predicated region
    $region94: #{match_lstm_forward.1} parent=1 // pred_check
      _
    $region95: #{match_lstm_forward.1} parent=1 // pred_check_branch
      %117 = sbr.rel (0) target = $region97
    $region96: #{match_lstm_forward.1} parent=1 // pred_region
      _
    $region97: #{match_lstm_forward.1} parent=1 // pred_fallthru
      _
    // Predicated region
    $region98: #{match_lstm_forward.1} parent=1 // pred_check
      _
    $region99: #{match_lstm_forward.1} parent=1 // pred_check_branch
      %119 = sbr.rel (0) target = $region101
    $region100: #{match_lstm_forward.1} parent=1 // pred_region
      _
    $region101: #{match_lstm_forward.1} parent=1 // pred_fallthru
      _
    // Predicated region
    $region102: #{match_lstm_forward.1} parent=1 // pred_check
      _
    $region103: #{match_lstm_forward.1} parent=1 // pred_check_branch
      %121 = sbr.rel (0) target = $region105
    $region104: #{match_lstm_forward.1} parent=1 // pred_region
      _
    $region105: #{match_lstm_forward.1} parent=1 // pred_fallthru
      _
    // Predicated region
    $region106: #{match_lstm_forward.1} parent=1 // pred_check
      _
    $region107: #{match_lstm_forward.1} parent=1 // pred_check_branch
      %123 = sbr.rel (0) target = $region109
    $region108: #{match_lstm_forward.1} parent=1 // pred_region
      _
    $region109: #{match_lstm_forward.1} parent=1 // pred_fallthru
      _
    // Predicated region
    $region110: #{match_lstm_forward.1} parent=1 // pred_check
      _
    $region111: #{match_lstm_forward.1} parent=1 // pred_check_branch
      %125 = sbr.rel (0) target = $region113
    $region112: #{match_lstm_forward.1} parent=1 // pred_region
      _
    $region113: #{match_lstm_forward.1} parent=1 // pred_fallthru
      _
    %v127 = vld [vmem:[%s5] sm:$0xff]
    %v128 = vld [vmem:[%s7] sm:$0xff]
    %v129 = vld [vmem:[%s17] sm:$0x1]
    %v130 = vld [vmem:[%s1] sm:$0xf]
    %v131 = vld [vmem:[%s1 + $0x4] sm:$0xf]
    %v132 = vld [vmem:[%s1 + $0x8] sm:$0xf]
    %v133 = vld [vmem:[%s1 + $0xc] sm:$0xf]
    %v134 = vld [vmem:[%s1 + $0x10] sm:$0xf]
    %v135 = vld [vmem:[%s1 + $0x14] sm:$0xf]
    %v136 = vld [vmem:[%s1 + $0x18] sm:$0xf]
    %v137 = vld [vmem:[%s1 + $0x1c] sm:$0xf]
    %v138 = vld [vmem:[%s13] sm:$0xf]
    %v139 = vld [vmem:[%s13 + $0x4] sm:$0xf]
    %v141 = vlaneseq
    %v142 = vshrl.u32 %v141, 7
    %v143 = vsub.s32 0, %v142
    %v144 = vrot.slane %v129, %v143
    %v154 = vunpack.c.l.b16 %v130
    %v155 = vunpack.c.l.b16 %v131
    %v156 = vunpack.c.l.b16 %v132
    %v157 = vunpack.c.l.b16 %v133
    %v158 = vunpack.c.l.b16 %v134
    %v159 = vunpack.c.l.b16 %v135
    %v160 = vunpack.c.l.b16 %v136
    %v161 = vunpack.c.l.b16 %v137
    %v162 = vpack.c.b16 %v155, %v154
    %v163 = vpack.c.b16 %v157, %v156
    %v164 = vpack.c.b16 %v159, %v158
    %v165 = vpack.c.b16 %v161, %v160
    %v168 = vunpack.c.l.b16 %v138
    %v169 = vunpack.c.l.b16 %v139
    %v170 = vpack.c.b16 %v169, %v168
    %vm172 = vcmask 130048
    %v174 = vsel %vm172, %v162, 0
    %v177 = vsel %vm172, %v163, 0
    %v180 = vsel %vm172, %v164, 0
    %v183 = vsel %vm172, %v165, 0
    %185 = vmatprep.subr.bf16.mxu0 0
    %186 = vmatpush1.bf16.msra.mxu0 0
    %187 = vmatprep.subr.bf16.mxu0 0
    %188 = vmatpush1.bf16.msra.mxu0 0
    %189 = vmatprep.subr.bf16.mxu0 0
    %190 = vmatpush1.bf16.msra.mxu0 0
    %191 = vmatprep.subr.bf16.mxu0 0
    %192 = vmatpush1.bf16.msra.mxu0 0
    %193 = vmatprep.subr.bf16.mxu0 0
    %194 = vmatpush1.bf16.msra.mxu0 0
    %195 = vmatprep.subr.bf16.mxu0 0
    %196 = vmatpush1.bf16.msra.mxu0 0
    %197 = vmatprep.subr.bf16.mxu0 0
    %198 = vmatpush1.bf16.msra.mxu0 0
    %199 = vmatprep.subr.bf16.mxu0 0
    %200 = vmatpush1.bf16.msra.mxu0 %v170
    %201 = vmatprep.subr.bf16.mxu0 0
    %202 = vmatpush2.bf16.msra.mxu0 0
    %203 = vmatprep.subr.bf16.mxu0 0
    %204 = vmatpush2.bf16.msra.mxu0 0
    %205 = vmatprep.subr.bf16.mxu0 0
    %206 = vmatpush2.bf16.msra.mxu0 0
    %207 = vmatprep.subr.bf16.mxu0 0
    %208 = vmatpush2.bf16.msra.mxu0 0
    %209 = vmatprep.subr.bf16.mxu0 0
    %210 = vmatpush2.bf16.msra.mxu0 0
    %211 = vmatprep.subr.bf16.mxu0 0
    %212 = vmatpush2.bf16.msra.mxu0 0
    %213 = vmatprep.subr.bf16.mxu0 0
    %214 = vmatpush2.bf16.msra.mxu0 0
    %215 = vmatprep.subr.bf16.mxu0 0
    %216 = vmatpush2.bf16.msra.mxu0 0
    %217 = vmatprep.mubr.bf16.mxu0 0
    %218 = vmatmul.mubr.bf16.gmra.mxu0 %v174
    %v219 = vpop.f32.mrf.mxu0
    %v220 = vadd.f32 %v144, %v219
    %v221 = vpop.f32.mrf.mxu0
    %v222 = vpop.f32.mrf.mxu0
    %v223 = vadd.f32 %v144, %v222
    %v224 = vpop.f32.mrf.mxu0
    %225 = vmatprep.mubr.bf16.mxu0 0
    %226 = vmatmul.mubr.bf16.gmra.mxu0 %v177
    %v227 = vpop.f32.mrf.mxu0
    %v228 = vadd.f32 %v144, %v227
    %v229 = vpop.f32.mrf.mxu0
    %v230 = vpop.f32.mrf.mxu0
    %v231 = vadd.f32 %v144, %v230
    %v232 = vpop.f32.mrf.mxu0
    %233 = vmatprep.mubr.bf16.mxu0 0
    %234 = vmatmul.mubr.bf16.gmra.mxu0 %v180
    %v235 = vpop.f32.mrf.mxu0
    %v236 = vadd.f32 %v144, %v235
    %v237 = vpop.f32.mrf.mxu0
    %v238 = vpop.f32.mrf.mxu0
    %v239 = vadd.f32 %v144, %v238
    %v240 = vpop.f32.mrf.mxu0
    %241 = vmatprep.mubr.bf16.mxu0 0
    %242 = vmatmul.mubr.bf16.gmra.mxu0 %v183
    %v243 = vpop.f32.mrf.mxu0
    %v244 = vadd.f32 %v144, %v243
    %v245 = vpop.f32.mrf.mxu0
    %v246 = vpop.f32.mrf.mxu0
    %v247 = vadd.f32 %v144, %v246
    %v248 = vpop.f32.mrf.mxu0
    %249 = vdwg.mxu0
    %vm250 = vcmask 785408
    %251 = vst.msk [vmem:[#allocation8] sm:$0xff] %vm250, %v220
    %252 = vst.msk [vmem:[#allocation8 + $0x8] sm:$0xff] %vm250, %v223
    %253 = vst.msk [vmem:[#allocation8 + $0x10] sm:$0xff] %vm250, %v228
    %254 = vst.msk [vmem:[#allocation8 + $0x18] sm:$0xff] %vm250, %v231
    %255 = vst.msk [vmem:[#allocation8 + $0x20] sm:$0xff] %vm250, %v236
    %256 = vst.msk [vmem:[#allocation8 + $0x28] sm:$0xff] %vm250, %v239
    %257 = vst.msk [vmem:[#allocation8 + $0x30] sm:$0xff] %vm250, %v244
    %258 = vst.msk [vmem:[#allocation8 + $0x38] sm:$0xff] %vm250, %v247
    %v259 = vld [vmem:[%s3] sm:$0xf]
    %v260 = vld [vmem:[%s3 + $0x4] sm:$0xf]
    %v261 = vld [vmem:[%s3 + $0x8] sm:$0xf]
    %v262 = vld [vmem:[%s3 + $0xc] sm:$0xf]
    %v263 = vld [vmem:[%s3 + $0x10] sm:$0xf]
    %v264 = vld [vmem:[%s3 + $0x14] sm:$0xf]
    %v265 = vld [vmem:[%s13] sm:$0xf]
    %v266 = vld [vmem:[%s13 + $0x4] sm:$0xf]
    %v273 = vunpack.c.l.b16 %v259
    %v274 = vunpack.c.l.b16 %v260
    %v275 = vunpack.c.l.b16 %v261
    %v276 = vunpack.c.l.b16 %v262
    %v277 = vunpack.c.l.b16 %v263
    %v278 = vunpack.c.l.b16 %v264
    %v279 = vpack.c.b16 %v274, %v273
    %v280 = vpack.c.b16 %v276, %v275
    %v281 = vpack.c.b16 %v278, %v277
    %v284 = vunpack.c.l.b16 %v265
    %v285 = vunpack.c.l.b16 %v266
    %v286 = vpack.c.b16 %v285, %v284
    %v289 = vsel %vm172, %v279, 0
    %v292 = vsel %vm172, %v280, 0
    %v295 = vsel %vm172, %v281, 0
    %297 = vmatprep.subr.bf16.mxu0 0
    %298 = vmatpush1.bf16.msra.mxu0 0
    %299 = vmatprep.subr.bf16.mxu0 0
    %300 = vmatpush1.bf16.msra.mxu0 0
    %301 = vmatprep.subr.bf16.mxu0 0
    %302 = vmatpush1.bf16.msra.mxu0 0
    %303 = vmatprep.subr.bf16.mxu0 0
    %304 = vmatpush1.bf16.msra.mxu0 0
    %305 = vmatprep.subr.bf16.mxu0 0
    %306 = vmatpush1.bf16.msra.mxu0 0
    %307 = vmatprep.subr.bf16.mxu0 0
    %308 = vmatpush1.bf16.msra.mxu0 0
    %309 = vmatprep.subr.bf16.mxu0 0
    %310 = vmatpush1.bf16.msra.mxu0 0
    %311 = vmatprep.subr.bf16.mxu0 0
    %312 = vmatpush1.bf16.msra.mxu0 %v286
    %313 = vmatprep.subr.bf16.mxu0 0
    %314 = vmatpush2.bf16.msra.mxu0 0
    %315 = vmatprep.subr.bf16.mxu0 0
    %316 = vmatpush2.bf16.msra.mxu0 0
    %317 = vmatprep.subr.bf16.mxu0 0
    %318 = vmatpush2.bf16.msra.mxu0 0
    %319 = vmatprep.subr.bf16.mxu0 0
    %320 = vmatpush2.bf16.msra.mxu0 0
    %321 = vmatprep.subr.bf16.mxu0 0
    %322 = vmatpush2.bf16.msra.mxu0 0
    %323 = vmatprep.subr.bf16.mxu0 0
    %324 = vmatpush2.bf16.msra.mxu0 0
    %325 = vmatprep.subr.bf16.mxu0 0
    %326 = vmatpush2.bf16.msra.mxu0 0
    %327 = vmatprep.subr.bf16.mxu0 0
    %328 = vmatpush2.bf16.msra.mxu0 0
    %329 = vmatprep.mubr.bf16.mxu0 0
    %330 = vmatmul.mubr.bf16.gmra.mxu0 %v289
    %v331 = vpop.f32.mrf.mxu0
    %v332 = vadd.f32 %v144, %v331
    %v333 = vpop.f32.mrf.mxu0
    %v334 = vpop.f32.mrf.mxu0
    %v335 = vadd.f32 %v144, %v334
    %v336 = vpop.f32.mrf.mxu0
    %337 = vmatprep.mubr.bf16.mxu0 0
    %338 = vmatmul.mubr.bf16.gmra.mxu0 %v292
    %v339 = vpop.f32.mrf.mxu0
    %v340 = vadd.f32 %v144, %v339
    %v341 = vpop.f32.mrf.mxu0
    %v342 = vpop.f32.mrf.mxu0
    %v343 = vadd.f32 %v144, %v342
    %v344 = vpop.f32.mrf.mxu0
    %345 = vmatprep.mubr.bf16.mxu0 0
    %346 = vmatmul.mubr.bf16.gmra.mxu0 %v295
    %v347 = vpop.f32.mrf.mxu0
    %v348 = vadd.f32 %v144, %v347
    %v349 = vpop.f32.mrf.mxu0
    %v350 = vpop.f32.mrf.mxu0
    %v351 = vadd.f32 %v144, %v350
    %v352 = vpop.f32.mrf.mxu0
    %353 = vdwg.mxu0
    %354 = vst.msk [vmem:[#allocation9] sm:$0xff] %vm250, %v332
    %355 = vst.msk [vmem:[#allocation9 + $0x8] sm:$0xff] %vm250, %v335
    %356 = vst.msk [vmem:[#allocation9 + $0x10] sm:$0xff] %vm250, %v340
    %357 = vst.msk [vmem:[#allocation9 + $0x18] sm:$0xff] %vm250, %v343
    %358 = vst.msk [vmem:[#allocation9 + $0x20] sm:$0xff] %vm250, %v348
    %359 = vst.msk [vmem:[#allocation9 + $0x28] sm:$0xff] %vm250, %v351
    %v360 = vld [vmem:[%s15] sm:$0xf]
    %v361 = vld [vmem:[%s15 + $0x4] sm:$0xf]
    %v362 = vld [vmem:[%s15 + $0x8] sm:$0xf]
    %v363 = vld [vmem:[%s15 + $0xc] sm:$0xf]
    loop: start=0, step=1, limit=8
    $region114: #{match_lstm_forward.1} parent=1 // loop_pre_header
      _
    $region115: #{match_lstm_forward.1} parent=1 // loop_header
      %s365 = sphi 0, %s369
      %p366 = scmp.ge.s32.totalorder %s365, 8
      %v370 = vphi 0.0, %v464
      %v371 = vphi 0.0, %v465
    $region116: #{match_lstm_forward.1} parent=1 // loop_header_branch
      %368 = sbr.rel (%p366) target = $region120
    $region117: #{match_lstm_forward.1} parent=1 // loop_body
      %s372 = smul.u32 %s365, 8
      %s373 = scalar_lea.vmem [#allocation8], %s372
      %v374 = vld [vmem:[%s373] sm:$0xff]
      %v375 = vpack.c.bf16 %v370, %v370
      %377 = vrot.lane.b32.xlu0 %v375, 96
      %v378 = vpop.permute.xlu0 %377
      %v383 = vunpack.c.l.b16 %v360
      %v384 = vunpack.c.l.b16 %v361
      %v385 = vunpack.c.l.b16 %v362
      %v386 = vunpack.c.l.b16 %v363
      %v387 = vpack.c.b16 %v384, %v383
      %v388 = vpack.c.b16 %v386, %v385
      %vm391 = vcmask 261120
      %v393 = vsel %vm391, %v378, 0
      %395 = vmatprep.subr.bf16.mxu0 0
      %396 = vmatpush1.bf16.msra.mxu0 0
      %397 = vmatprep.subr.bf16.mxu0 0
      %398 = vmatpush1.bf16.msra.mxu0 0
      %399 = vmatprep.subr.bf16.mxu0 0
      %400 = vmatpush1.bf16.msra.mxu0 0
      %401 = vmatprep.subr.bf16.mxu0 0
      %402 = vmatpush1.bf16.msra.mxu0 0
      %403 = vmatprep.subr.bf16.mxu0 0
      %404 = vmatpush1.bf16.msra.mxu0 0
      %405 = vmatprep.subr.bf16.mxu0 0
      %406 = vmatpush1.bf16.msra.mxu0 0
      %407 = vmatprep.subr.bf16.mxu0 0
      %408 = vmatpush1.bf16.msra.mxu0 %v388
      %409 = vmatprep.subr.bf16.mxu0 0
      %410 = vmatpush1.bf16.msra.mxu0 %v387
      %411 = vmatprep.subr.bf16.mxu0 0
      %412 = vmatpush2.bf16.msra.mxu0 0
      %413 = vmatprep.subr.bf16.mxu0 0
      %414 = vmatpush2.bf16.msra.mxu0 0
      %415 = vmatprep.subr.bf16.mxu0 0
      %416 = vmatpush2.bf16.msra.mxu0 0
      %417 = vmatprep.subr.bf16.mxu0 0
      %418 = vmatpush2.bf16.msra.mxu0 0
      %419 = vmatprep.subr.bf16.mxu0 0
      %420 = vmatpush2.bf16.msra.mxu0 0
      %421 = vmatprep.subr.bf16.mxu0 0
      %422 = vmatpush2.bf16.msra.mxu0 0
      %423 = vmatprep.subr.bf16.mxu0 0
      %424 = vmatpush2.bf16.msra.mxu0 0
      %425 = vmatprep.subr.bf16.mxu0 0
      %426 = vmatpush2.bf16.msra.mxu0 0
      %427 = vmatprep.mubr.bf16.mxu0 0
      %428 = vmatmul.mubr.bf16.gmra.mxu0 %v393
      %v429 = vpop.f32.mrf.mxu0
      %v430 = vadd.f32 0.0, %v429
      %v431 = vpop.f32.mrf.mxu0
      %v432 = vpop.f32.mrf.mxu0
      %v433 = vpop.f32.mrf.mxu0
      %434 = vdwg.mxu0
      %v435 = vadd.f32 %v374, %v430
      %v436 = vxor.u32 %v435, 2147483648
      %v437 = vmul.f32 %v436, 1.442695
      %v438 = vpow.pop %v437
      %v439 = vadd.f32 %v438, 1.0
      %v440 = vrcp.pop %v439
      %v441 = vmul.f32 1.0, %v440
      %v442 = vtanh.pop %v435
      %v443 = vmul.f32 %v441, %v371
      %445 = vrot.lane.b32.xlu0 %v442, 64
      %v446 = vpop.permute.xlu0 %445
      %v448 = vmul.f32 %v441, %v446
      %450 = vrot.lane.b32.xlu0 %v448, 32
      %v451 = vpop.permute.xlu0 %450
      %v453 = vadd.f32 %v443, %v451
      %v454 = vstv %s365
      %vm455 = vcmp.gt.s32.totalorder %v127, %v454
      %v456 = vsel %vm455, 1, 0
      %v457 = vcvt.s32.f32 %v456
      %v458 = vtanh.pop %v453
      %460 = vset.pattern.permute.xlu0 0
      %461 = vperm.xlu0 %460, %v457
      %v462 = vpop.permute.xlu0 %461
      %v464 = vmul.f32 %v458, %v462
      %v465 = vmul.f32 %v453, %v462
      %467 = vrot.lane.b32.xlu0 %v464, 96
      %v468 = vpop.permute.xlu0 %467
      %s470 = scalar_lea.vmem [#allocation2], %s372
      %471 = vst.msk [vmem:[%s470] sm:$0xff] %vm391, %v468
    $region118: #{match_lstm_forward.1} parent=1 // loop_footer
      %s369 = sadd.s32 1, %s365
    $region119: #{match_lstm_forward.1} parent=1 // loop_footer_branch
      %364 = sbr.rel target = $region115
    $region120: #{match_lstm_forward.1} parent=1 // loop_exit
      _
    loop: start=0, step=1, limit=6
    $region121: #{match_lstm_forward.1} parent=1 // loop_pre_header
      _
    $region122: #{match_lstm_forward.1} parent=1 // loop_header
      %s473 = sphi 0, %s477
      %p474 = scmp.ge.s32.totalorder %s473, 6
      %v478 = vphi 0.0, %v572
      %v479 = vphi 0.0, %v573
    $region123: #{match_lstm_forward.1} parent=1 // loop_header_branch
      %476 = sbr.rel (%p474) target = $region127
    $region124: #{match_lstm_forward.1} parent=1 // loop_body
      %s480 = smul.u32 %s473, 8
      %s481 = scalar_lea.vmem [#allocation9], %s480
      %v482 = vld [vmem:[%s481] sm:$0xff]
      %v483 = vpack.c.bf16 %v478, %v478
      %485 = vrot.lane.b32.xlu0 %v483, 96
      %v486 = vpop.permute.xlu0 %485
      %v491 = vunpack.c.l.b16 %v360
      %v492 = vunpack.c.l.b16 %v361
      %v493 = vunpack.c.l.b16 %v362
      %v494 = vunpack.c.l.b16 %v363
      %v495 = vpack.c.b16 %v492, %v491
      %v496 = vpack.c.b16 %v494, %v493
      %vm499 = vcmask 261120
      %v501 = vsel %vm499, %v486, 0
      %503 = vmatprep.subr.bf16.mxu0 0
      %504 = vmatpush1.bf16.msra.mxu0 0
      %505 = vmatprep.subr.bf16.mxu0 0
      %506 = vmatpush1.bf16.msra.mxu0 0
      %507 = vmatprep.subr.bf16.mxu0 0
      %508 = vmatpush1.bf16.msra.mxu0 0
      %509 = vmatprep.subr.bf16.mxu0 0
      %510 = vmatpush1.bf16.msra.mxu0 0
      %511 = vmatprep.subr.bf16.mxu0 0
      %512 = vmatpush1.bf16.msra.mxu0 0
      %513 = vmatprep.subr.bf16.mxu0 0
      %514 = vmatpush1.bf16.msra.mxu0 0
      %515 = vmatprep.subr.bf16.mxu0 0
      %516 = vmatpush1.bf16.msra.mxu0 %v496
      %517 = vmatprep.subr.bf16.mxu0 0
      %518 = vmatpush1.bf16.msra.mxu0 %v495
      %519 = vmatprep.subr.bf16.mxu0 0
      %520 = vmatpush2.bf16.msra.mxu0 0
      %521 = vmatprep.subr.bf16.mxu0 0
      %522 = vmatpush2.bf16.msra.mxu0 0
      %523 = vmatprep.subr.bf16.mxu0 0
      %524 = vmatpush2.bf16.msra.mxu0 0
      %525 = vmatprep.subr.bf16.mxu0 0
      %526 = vmatpush2.bf16.msra.mxu0 0
      %527 = vmatprep.subr.bf16.mxu0 0
      %528 = vmatpush2.bf16.msra.mxu0 0
      %529 = vmatprep.subr.bf16.mxu0 0
      %530 = vmatpush2.bf16.msra.mxu0 0
      %531 = vmatprep.subr.bf16.mxu0 0
      %532 = vmatpush2.bf16.msra.mxu0 0
      %533 = vmatprep.subr.bf16.mxu0 0
      %534 = vmatpush2.bf16.msra.mxu0 0
      %535 = vmatprep.mubr.bf16.mxu0 0
      %536 = vmatmul.mubr.bf16.gmra.mxu0 %v501
      %v537 = vpop.f32.mrf.mxu0
      %v538 = vadd.f32 0.0, %v537
      %v539 = vpop.f32.mrf.mxu0
      %v540 = vpop.f32.mrf.mxu0
      %v541 = vpop.f32.mrf.mxu0
      %542 = vdwg.mxu0
      %v543 = vadd.f32 %v482, %v538
      %v544 = vxor.u32 %v543, 2147483648
      %v545 = vmul.f32 %v544, 1.442695
      %v546 = vpow.pop %v545
      %v547 = vadd.f32 %v546, 1.0
      %v548 = vrcp.pop %v547
      %v549 = vmul.f32 1.0, %v548
      %v550 = vtanh.pop %v543
      %v551 = vmul.f32 %v549, %v479
      %553 = vrot.lane.b32.xlu0 %v550, 64
      %v554 = vpop.permute.xlu0 %553
      %v556 = vmul.f32 %v549, %v554
      %558 = vrot.lane.b32.xlu0 %v556, 32
      %v559 = vpop.permute.xlu0 %558
      %v561 = vadd.f32 %v551, %v559
      %v562 = vstv %s473
      %vm563 = vcmp.gt.s32.totalorder %v128, %v562
      %v564 = vsel %vm563, 1, 0
      %v565 = vcvt.s32.f32 %v564
      %v566 = vtanh.pop %v561
      %568 = vset.pattern.permute.xlu0 0
      %569 = vperm.xlu0 %568, %v565
      %v570 = vpop.permute.xlu0 %569
      %v572 = vmul.f32 %v566, %v570
      %v573 = vmul.f32 %v561, %v570
      %575 = vrot.lane.b32.xlu0 %v572, 96
      %v576 = vpop.permute.xlu0 %575
      %s578 = scalar_lea.vmem [#allocation3], %s480
      %579 = vst.msk [vmem:[%s578] sm:$0xff] %vm499, %v576
    $region125: #{match_lstm_forward.1} parent=1 // loop_footer
      %s477 = sadd.s32 1, %s473
    $region126: #{match_lstm_forward.1} parent=1 // loop_footer_branch
      %472 = sbr.rel target = $region122
    $region127: #{match_lstm_forward.1} parent=1 // loop_exit
      _
    %v580 = vld [vmem:[#allocation3] sm:$0xff]
    %v581 = vld [vmem:[#allocation3 + $0x8] sm:$0xff]
    %v582 = vld [vmem:[#allocation3 + $0x10] sm:$0xff]
    %v583 = vld [vmem:[#allocation3 + $0x18] sm:$0xff]
    %v584 = vld [vmem:[#allocation3 + $0x20] sm:$0xff]
    %v585 = vld [vmem:[#allocation3 + $0x28] sm:$0xff]
    %v586 = vld [vmem:[#allocation2] sm:$0xff]
    %v587 = vld [vmem:[#allocation2 + $0x8] sm:$0xff]
    %v588 = vld [vmem:[#allocation2 + $0x10] sm:$0xff]
    %v589 = vld [vmem:[#allocation2 + $0x18] sm:$0xff]
    %v590 = vld [vmem:[#allocation2 + $0x20] sm:$0xff]
    %v591 = vld [vmem:[#allocation2 + $0x28] sm:$0xff]
    %v592 = vld [vmem:[#allocation2 + $0x30] sm:$0xff]
    %v593 = vld [vmem:[#allocation2 + $0x38] sm:$0xff]
    %v594 = vpack.c.bf16 %v587, %v586
    %v595 = vpack.c.bf16 %v589, %v588
    %v596 = vpack.c.bf16 %v591, %v590
    %v597 = vpack.c.bf16 %v593, %v592
    %v598 = vpack.c.bf16 %v581, %v580
    %v599 = vpack.c.bf16 %v583, %v582
    %v600 = vpack.c.bf16 %v585, %v584
    %v601 = vld [vmem:[%s19] sm:$0xf]
    %v602 = vld [vmem:[%s19 + $0x4] sm:$0xf]
    %v603 = vld [vmem:[%s19 + $0x8] sm:$0xf]
    %v604 = vld [vmem:[%s19 + $0xc] sm:$0xf]
    %v609 = vunpack.c.l.b16 %v601
    %v610 = vunpack.c.l.b16 %v602
    %v611 = vunpack.c.l.b16 %v603
    %v612 = vunpack.c.l.b16 %v604
    %v613 = vpack.c.b16 %v610, %v609
    %v614 = vpack.c.b16 %v612, %v611
    %vm617 = vcmask 261120
    %v619 = vsel %vm617, %v598, 0
    %v622 = vsel %vm617, %v599, 0
    %v625 = vsel %vm617, %v600, 0
    %627 = vmatprep.subr.bf16.mxu0 0
    %628 = vmatpush1.bf16.msra.mxu0 0
    %629 = vmatprep.subr.bf16.mxu0 0
    %630 = vmatpush1.bf16.msra.mxu0 0
    %631 = vmatprep.subr.bf16.mxu0 0
    %632 = vmatpush1.bf16.msra.mxu0 0
    %633 = vmatprep.subr.bf16.mxu0 0
    %634 = vmatpush1.bf16.msra.mxu0 0
    %635 = vmatprep.subr.bf16.mxu0 0
    %636 = vmatpush1.bf16.msra.mxu0 0
    %637 = vmatprep.subr.bf16.mxu0 0
    %638 = vmatpush1.bf16.msra.mxu0 0
    %639 = vmatprep.subr.bf16.mxu0 0
    %640 = vmatpush1.bf16.msra.mxu0 %v614
    %641 = vmatprep.subr.bf16.mxu0 0
    %642 = vmatpush1.bf16.msra.mxu0 %v613
    %643 = vmatprep.subr.bf16.mxu0 0
    %644 = vmatpush2.bf16.msra.mxu0 0
    %645 = vmatprep.subr.bf16.mxu0 0
    %646 = vmatpush2.bf16.msra.mxu0 0
    %647 = vmatprep.subr.bf16.mxu0 0
    %648 = vmatpush2.bf16.msra.mxu0 0
    %649 = vmatprep.subr.bf16.mxu0 0
    %650 = vmatpush2.bf16.msra.mxu0 0
    %651 = vmatprep.subr.bf16.mxu0 0
    %652 = vmatpush2.bf16.msra.mxu0 0
    %653 = vmatprep.subr.bf16.mxu0 0
    %654 = vmatpush2.bf16.msra.mxu0 0
    %655 = vmatprep.subr.bf16.mxu0 0
    %656 = vmatpush2.bf16.msra.mxu0 0
    %657 = vmatprep.subr.bf16.mxu0 0
    %658 = vmatpush2.bf16.msra.mxu0 0
    %659 = vmatprep.mubr.bf16.mxu0 0
    %660 = vmatmul.mubr.bf16.gmra.mxu0 %v619
    %v661 = vpop.f32.mrf.mxu0
    %v662 = vadd.f32 0.0, %v661
    %v663 = vpop.f32.mrf.mxu0
    %v664 = vpop.f32.mrf.mxu0
    %v665 = vadd.f32 0.0, %v664
    %v666 = vpop.f32.mrf.mxu0
    %667 = vmatprep.mubr.bf16.mxu0 0
    %668 = vmatmul.mubr.bf16.gmra.mxu0 %v622
    %v669 = vpop.f32.mrf.mxu0
    %v670 = vadd.f32 0.0, %v669
    %v671 = vpop.f32.mrf.mxu0
    %v672 = vpop.f32.mrf.mxu0
    %v673 = vadd.f32 0.0, %v672
    %v674 = vpop.f32.mrf.mxu0
    %675 = vmatprep.mubr.bf16.mxu0 0
    %676 = vmatmul.mubr.bf16.gmra.mxu0 %v625
    %v677 = vpop.f32.mrf.mxu0
    %v678 = vadd.f32 0.0, %v677
    %v679 = vpop.f32.mrf.mxu0
    %v680 = vpop.f32.mrf.mxu0
    %v681 = vadd.f32 0.0, %v680
    %v682 = vpop.f32.mrf.mxu0
    %683 = vdwg.mxu0
    %v684 = vld [vmem:[%s21] sm:$0xf]
    %v685 = vld [vmem:[%s21 + $0x4] sm:$0xf]
    %v686 = vld [vmem:[%s21 + $0x8] sm:$0xf]
    %v687 = vld [vmem:[%s21 + $0xc] sm:$0xf]
    %v688 = vld [vmem:[%s23] sm:$0x1]
    %v690 = vlaneseq
    %v691 = vshrl.u32 %v690, 7
    %v692 = vsub.s32 0, %v691
    %v693 = vrot.slane %v688, %v692
    %v699 = vunpack.c.l.b16 %v684
    %v700 = vunpack.c.l.b16 %v685
    %v701 = vunpack.c.l.b16 %v686
    %v702 = vunpack.c.l.b16 %v687
    %v703 = vpack.c.b16 %v700, %v699
    %v704 = vpack.c.b16 %v702, %v701
    %v708 = vsel %vm617, %v594, 0
    %v711 = vsel %vm617, %v595, 0
    %v714 = vsel %vm617, %v596, 0
    %v717 = vsel %vm617, %v597, 0
    %719 = vmatprep.subr.bf16.mxu0 0
    %720 = vmatpush1.bf16.msra.mxu0 0
    %721 = vmatprep.subr.bf16.mxu0 0
    %722 = vmatpush1.bf16.msra.mxu0 0
    %723 = vmatprep.subr.bf16.mxu0 0
    %724 = vmatpush1.bf16.msra.mxu0 0
    %725 = vmatprep.subr.bf16.mxu0 0
    %726 = vmatpush1.bf16.msra.mxu0 0
    %727 = vmatprep.subr.bf16.mxu0 0
    %728 = vmatpush1.bf16.msra.mxu0 0
    %729 = vmatprep.subr.bf16.mxu0 0
    %730 = vmatpush1.bf16.msra.mxu0 0
    %731 = vmatprep.subr.bf16.mxu0 0
    %732 = vmatpush1.bf16.msra.mxu0 %v704
    %733 = vmatprep.subr.bf16.mxu0 0
    %734 = vmatpush1.bf16.msra.mxu0 %v703
    %735 = vmatprep.subr.bf16.mxu0 0
    %736 = vmatpush2.bf16.msra.mxu0 0
    %737 = vmatprep.subr.bf16.mxu0 0
    %738 = vmatpush2.bf16.msra.mxu0 0
    %739 = vmatprep.subr.bf16.mxu0 0
    %740 = vmatpush2.bf16.msra.mxu0 0
    %741 = vmatprep.subr.bf16.mxu0 0
    %742 = vmatpush2.bf16.msra.mxu0 0
    %743 = vmatprep.subr.bf16.mxu0 0
    %744 = vmatpush2.bf16.msra.mxu0 0
    %745 = vmatprep.subr.bf16.mxu0 0
    %746 = vmatpush2.bf16.msra.mxu0 0
    %747 = vmatprep.subr.bf16.mxu0 0
    %748 = vmatpush2.bf16.msra.mxu0 0
    %749 = vmatprep.subr.bf16.mxu0 0
    %750 = vmatpush2.bf16.msra.mxu0 0
    %751 = vmatprep.mubr.bf16.mxu0 0
    %752 = vmatmul.mubr.bf16.gmra.mxu0 %v708
    %v753 = vpop.f32.mrf.mxu0
    %v754 = vadd.f32 %v693, %v753
    %v755 = vpop.f32.mrf.mxu0
    %v756 = vpop.f32.mrf.mxu0
    %v757 = vadd.f32 %v693, %v756
    %v758 = vpop.f32.mrf.mxu0
    %759 = vmatprep.mubr.bf16.mxu0 0
    %760 = vmatmul.mubr.bf16.gmra.mxu0 %v711
    %v761 = vpop.f32.mrf.mxu0
    %v762 = vadd.f32 %v693, %v761
    %v763 = vpop.f32.mrf.mxu0
    %v764 = vpop.f32.mrf.mxu0
    %v765 = vadd.f32 %v693, %v764
    %v766 = vpop.f32.mrf.mxu0
    %767 = vmatprep.mubr.bf16.mxu0 0
    %768 = vmatmul.mubr.bf16.gmra.mxu0 %v714
    %v769 = vpop.f32.mrf.mxu0
    %v770 = vadd.f32 %v693, %v769
    %v771 = vpop.f32.mrf.mxu0
    %v772 = vpop.f32.mrf.mxu0
    %v773 = vadd.f32 %v693, %v772
    %v774 = vpop.f32.mrf.mxu0
    %775 = vmatprep.mubr.bf16.mxu0 0
    %776 = vmatmul.mubr.bf16.gmra.mxu0 %v717
    %v777 = vpop.f32.mrf.mxu0
    %v778 = vadd.f32 %v693, %v777
    %v779 = vpop.f32.mrf.mxu0
    %v780 = vpop.f32.mrf.mxu0
    %v781 = vadd.f32 %v693, %v780
    %v782 = vpop.f32.mrf.mxu0
    %783 = vdwg.mxu0
    %784 = vst.msk [vmem:[#allocation4] sm:$0xff] %vm617, %v754
    %785 = vst.msk [vmem:[#allocation4 + $0x8] sm:$0xff] %vm617, %v757
    %786 = vst.msk [vmem:[#allocation4 + $0x10] sm:$0xff] %vm617, %v762
    %787 = vst.msk [vmem:[#allocation4 + $0x18] sm:$0xff] %vm617, %v765
    %788 = vst.msk [vmem:[#allocation4 + $0x20] sm:$0xff] %vm617, %v770
    %789 = vst.msk [vmem:[#allocation4 + $0x28] sm:$0xff] %vm617, %v773
    %790 = vst.msk [vmem:[#allocation4 + $0x30] sm:$0xff] %vm617, %v778
    %791 = vst.msk [vmem:[#allocation4 + $0x38] sm:$0xff] %vm617, %v781
    %v792 = vld [vmem:[%s31] sm:$0xf]
    %v793 = vld [vmem:[%s31 + $0x4] sm:$0xf]
    %v794 = vld [vmem:[%s31 + $0x8] sm:$0xf]
    %v795 = vld [vmem:[%s31 + $0xc] sm:$0xf]
    %v796 = vld [vmem:[%s35] sm:$0x1]
    %v798 = vlaneseq
    %v799 = vshrl.u32 %v798, 7
    %v800 = vsub.s32 0, %v799
    %v801 = vrot.slane %v796, %v800
    %v807 = vunpack.c.l.b16 %v792
    %v808 = vunpack.c.l.b16 %v793
    %v809 = vunpack.c.l.b16 %v794
    %v810 = vunpack.c.l.b16 %v795
    %v811 = vpack.c.b16 %v808, %v807
    %v812 = vpack.c.b16 %v810, %v809
    %815 = vmatprep.subr.bf16.mxu0 0
    %816 = vmatpush1.bf16.msra.mxu0 0
    %817 = vmatprep.subr.bf16.mxu0 0
    %818 = vmatpush1.bf16.msra.mxu0 0
    %819 = vmatprep.subr.bf16.mxu0 0
    %820 = vmatpush1.bf16.msra.mxu0 0
    %821 = vmatprep.subr.bf16.mxu0 0
    %822 = vmatpush1.bf16.msra.mxu0 0
    %823 = vmatprep.subr.bf16.mxu0 0
    %824 = vmatpush1.bf16.msra.mxu0 0
    %825 = vmatprep.subr.bf16.mxu0 0
    %826 = vmatpush1.bf16.msra.mxu0 0
    %827 = vmatprep.subr.bf16.mxu0 0
    %828 = vmatpush1.bf16.msra.mxu0 %v812
    %829 = vmatprep.subr.bf16.mxu0 0
    %830 = vmatpush1.bf16.msra.mxu0 %v811
    %831 = vmatprep.subr.bf16.mxu0 0
    %832 = vmatpush2.bf16.msra.mxu0 0
    %833 = vmatprep.subr.bf16.mxu0 0
    %834 = vmatpush2.bf16.msra.mxu0 0
    %835 = vmatprep.subr.bf16.mxu0 0
    %836 = vmatpush2.bf16.msra.mxu0 0
    %837 = vmatprep.subr.bf16.mxu0 0
    %838 = vmatpush2.bf16.msra.mxu0 0
    %839 = vmatprep.subr.bf16.mxu0 0
    %840 = vmatpush2.bf16.msra.mxu0 0
    %841 = vmatprep.subr.bf16.mxu0 0
    %842 = vmatpush2.bf16.msra.mxu0 0
    %843 = vmatprep.subr.bf16.mxu0 0
    %844 = vmatpush2.bf16.msra.mxu0 0
    %845 = vmatprep.subr.bf16.mxu0 0
    %846 = vmatpush2.bf16.msra.mxu0 0
    %847 = vmatprep.mubr.bf16.mxu0 0
    %848 = vmatmul.mubr.bf16.gmra.mxu0 %v708
    %v849 = vpop.f32.mrf.mxu0
    %v850 = vadd.f32 %v801, %v849
    %v851 = vpop.f32.mrf.mxu0
    %v852 = vpop.f32.mrf.mxu0
    %v853 = vadd.f32 %v801, %v852
    %v854 = vpop.f32.mrf.mxu0
    %855 = vmatprep.mubr.bf16.mxu0 0
    %856 = vmatmul.mubr.bf16.gmra.mxu0 %v711
    %v857 = vpop.f32.mrf.mxu0
    %v858 = vadd.f32 %v801, %v857
    %v859 = vpop.f32.mrf.mxu0
    %v860 = vpop.f32.mrf.mxu0
    %v861 = vadd.f32 %v801, %v860
    %v862 = vpop.f32.mrf.mxu0
    %863 = vmatprep.mubr.bf16.mxu0 0
    %864 = vmatmul.mubr.bf16.gmra.mxu0 %v714
    %v865 = vpop.f32.mrf.mxu0
    %v866 = vadd.f32 %v801, %v865
    %v867 = vpop.f32.mrf.mxu0
    %v868 = vpop.f32.mrf.mxu0
    %v869 = vadd.f32 %v801, %v868
    %v870 = vpop.f32.mrf.mxu0
    %871 = vmatprep.mubr.bf16.mxu0 0
    %872 = vmatmul.mubr.bf16.gmra.mxu0 %v717
    %v873 = vpop.f32.mrf.mxu0
    %v874 = vadd.f32 %v801, %v873
    %v875 = vpop.f32.mrf.mxu0
    %v876 = vpop.f32.mrf.mxu0
    %v877 = vadd.f32 %v801, %v876
    %v878 = vpop.f32.mrf.mxu0
    %879 = vdwg.mxu0
    %880 = vst [vmem:[#allocation5] sm:$0xff] %v850
    %881 = vst [vmem:[#allocation5 + $0x8] sm:$0xff] %v853
    %882 = vst [vmem:[#allocation5 + $0x10] sm:$0xff] %v858
    %883 = vst [vmem:[#allocation5 + $0x18] sm:$0xff] %v861
    %884 = vst [vmem:[#allocation5 + $0x20] sm:$0xff] %v866
    %885 = vst [vmem:[#allocation5 + $0x28] sm:$0xff] %v869
    %886 = vst [vmem:[#allocation5 + $0x30] sm:$0xff] %v874
    %887 = vst [vmem:[#allocation5 + $0x38] sm:$0xff] %v877
    %v888 = vld [vmem:[%s29] sm:$0xff]
    %v889 = vld [vmem:[%s29 + $0x8] sm:$0xff]
    %v890 = vld [vmem:[%s29 + $0x10] sm:$0xff]
    %v891 = vld [vmem:[%s29 + $0x18] sm:$0xff]
    %v892 = vld [vmem:[%s33] sm:$0xf]
    %v893 = vld [vmem:[%s33 + $0x4] sm:$0xf]
    %v894 = vld [vmem:[%s33 + $0x8] sm:$0xf]
    %v895 = vld [vmem:[%s33 + $0xc] sm:$0xf]
    %v896 = vld [vmem:[%s25] sm:$0x1]
    %v897 = vld [vmem:[#allocation10] sm:$0x1]
    loop: start=0, step=1, limit=8
    $region128: #{match_lstm_forward.1} parent=1 // loop_pre_header
      _
    $region129: #{match_lstm_forward.1} parent=1 // loop_header
      %s899 = sphi 0, %s903
      %p900 = scmp.ge.s32.totalorder %s899, 8
      %v904 = vphi 0.0, %v1407
      %v905 = vphi 0.0, %v1408
      %v906 = vphi 0.0, %v1393
      %v907 = vphi 0.0, %v1394
    $region130: #{match_lstm_forward.1} parent=1 // loop_header_branch
      %902 = sbr.rel (%p900) target = $region134
    $region131: #{match_lstm_forward.1} parent=1 // loop_body
      %s908 = ssub.s32 7, %s899
      %v909 = vpack.c.bf16 %v905, %v904
      %911 = vrot.lane.b32.xlu0 %v909, 64
      %v912 = vpop.permute.xlu0 %911
      %v917 = vunpack.c.l.b16 %v888
      %v918 = vunpack.c.h.b16 %v888
      %v919 = vunpack.c.l.b16 %v889
      %v920 = vunpack.c.h.b16 %v889
      %v921 = vunpack.c.l.b16 %v890
      %v922 = vunpack.c.h.b16 %v890
      %v923 = vunpack.c.l.b16 %v891
      %v924 = vunpack.c.h.b16 %v891
      %v925 = vpack.c.b16 %v919, %v917
      %v926 = vpack.c.b16 %v920, %v918
      %v927 = vpack.c.b16 %v923, %v921
      %v928 = vpack.c.b16 %v924, %v922
      %v934 = vsel %vm617, %v912, 0
      %936 = vmatprep.subr.bf16.mxu0 0
      %937 = vmatpush1.bf16.msra.mxu0 0
      %938 = vmatprep.subr.bf16.mxu0 0
      %939 = vmatpush1.bf16.msra.mxu0 0
      %940 = vmatprep.subr.bf16.mxu0 0
      %941 = vmatpush1.bf16.msra.mxu0 0
      %942 = vmatprep.subr.bf16.mxu0 0
      %943 = vmatpush1.bf16.msra.mxu0 0
      %944 = vmatprep.subr.bf16.mxu0 0
      %945 = vmatpush1.bf16.msra.mxu0 0
      %946 = vmatprep.subr.bf16.mxu0 0
      %947 = vmatpush1.bf16.msra.mxu0 0
      %948 = vmatprep.subr.bf16.mxu0 %v928
      %949 = vmatpush1.bf16.msra.mxu0 %v927
      %950 = vmatprep.subr.bf16.mxu0 %v926
      %951 = vmatpush1.bf16.msra.mxu0 %v925
      %952 = vmatprep.subr.bf16.mxu0 0
      %953 = vmatpush2.bf16.msra.mxu0 0
      %954 = vmatprep.subr.bf16.mxu0 0
      %955 = vmatpush2.bf16.msra.mxu0 0
      %956 = vmatprep.subr.bf16.mxu0 0
      %957 = vmatpush2.bf16.msra.mxu0 0
      %958 = vmatprep.subr.bf16.mxu0 0
      %959 = vmatpush2.bf16.msra.mxu0 0
      %960 = vmatprep.subr.bf16.mxu0 0
      %961 = vmatpush2.bf16.msra.mxu0 0
      %962 = vmatprep.subr.bf16.mxu0 0
      %963 = vmatpush2.bf16.msra.mxu0 0
      %964 = vmatprep.subr.bf16.mxu0 0
      %965 = vmatpush2.bf16.msra.mxu0 0
      %966 = vmatprep.subr.bf16.mxu0 0
      %967 = vmatpush2.bf16.msra.mxu0 0
      %968 = vmatprep.mubr.bf16.mxu0 0
      %969 = vmatmul.mubr.bf16.gmra.mxu0 %v934
      %v970 = vpop.f32.mrf.mxu0
      %v971 = vadd.f32 0.0, %v970
      %v972 = vpop.f32.mrf.mxu0
      %v973 = vadd.f32 0.0, %v972
      %v974 = vpop.f32.mrf.mxu0
      %v975 = vadd.f32 0.0, %v974
      %v976 = vpop.f32.mrf.mxu0
      %v977 = vadd.f32 0.0, %v976
      %978 = vdwg.mxu0
      %s979 = smul.u32 %s899, 8
      %s980 = scalar_lea.vmem [#allocation4], %s979
      %v981 = vld [vmem:[%s980] sm:$0xff]
      %s982 = smul.u32 %s908, 8
      %s983 = scalar_lea.vmem [#allocation4], %s982
      %v984 = vld [vmem:[%s983] sm:$0xff]
      %v985 = vadd.f32 %v981, %v973
      %v986 = vadd.f32 %v984, %v977
      %v987 = vadd.f32 %v662, %v985
      %v988 = vadd.f32 %v662, %v986
      %v989 = vadd.f32 %v665, %v985
      %v990 = vadd.f32 %v665, %v986
      %v991 = vadd.f32 %v670, %v985
      %v992 = vadd.f32 %v670, %v986
      %v993 = vadd.f32 %v673, %v985
      %v994 = vadd.f32 %v673, %v986
      %v995 = vadd.f32 %v678, %v985
      %v996 = vadd.f32 %v678, %v986
      %v997 = vadd.f32 %v681, %v985
      %v998 = vadd.f32 %v681, %v986
      %v999 = vtanh.pop %v987
      %v1000 = vtanh.pop %v988
      %v1001 = vtanh.pop %v989
      %v1002 = vtanh.pop %v990
      %v1003 = vtanh.pop %v991
      %v1004 = vtanh.pop %v992
      %v1005 = vtanh.pop %v993
      %v1006 = vtanh.pop %v994
      %v1007 = vtanh.pop %v995
      %v1008 = vtanh.pop %v996
      %v1009 = vtanh.pop %v997
      %v1010 = vtanh.pop %v998
      %v1012 = vlaneseq
      %v1013 = vshrl.u32 %v1012, 7
      %v1014 = vsub.s32 0, %v1013
      %v1015 = vrot.slane %v896, %v1014
      %v1017 = vmul.f32 %v999, %v1015
      %v1018 = vmul.f32 %v1000, %v1015
      %v1019 = vmul.f32 %v1001, %v1015
      %v1020 = vmul.f32 %v1002, %v1015
      %v1021 = vmul.f32 %v1003, %v1015
      %v1022 = vmul.f32 %v1004, %v1015
      %v1023 = vmul.f32 %v1005, %v1015
      %v1024 = vmul.f32 %v1006, %v1015
      %v1025 = vmul.f32 %v1007, %v1015
      %v1026 = vmul.f32 %v1008, %v1015
      %v1027 = vmul.f32 %v1009, %v1015
      %v1028 = vmul.f32 %v1010, %v1015
      %v1029 = vsel %vm617, %v1017, 0.0
      %1030 = vadd.xlane.f32.xlu0 %v1029
      %v1031 = vpop.xlane.xlu0 %1030
      %v1032 = vsel %vm617, %v1018, 0.0
      %1033 = vadd.xlane.f32.xlu0 %v1032
      %v1034 = vpop.xlane.xlu0 %1033
      %v1035 = vsel %vm617, %v1019, 0.0
      %1036 = vadd.xlane.f32.xlu0 %v1035
      %v1037 = vpop.xlane.xlu0 %1036
      %v1038 = vsel %vm617, %v1020, 0.0
      %1039 = vadd.xlane.f32.xlu0 %v1038
      %v1040 = vpop.xlane.xlu0 %1039
      %v1041 = vsel %vm617, %v1021, 0.0
      %1042 = vadd.xlane.f32.xlu0 %v1041
      %v1043 = vpop.xlane.xlu0 %1042
      %v1044 = vsel %vm617, %v1022, 0.0
      %1045 = vadd.xlane.f32.xlu0 %v1044
      %v1046 = vpop.xlane.xlu0 %1045
      %v1047 = vsel %vm617, %v1023, 0.0
      %1048 = vadd.xlane.f32.xlu0 %v1047
      %v1049 = vpop.xlane.xlu0 %1048
      %v1050 = vsel %vm617, %v1024, 0.0
      %1051 = vadd.xlane.f32.xlu0 %v1050
      %v1052 = vpop.xlane.xlu0 %1051
      %v1053 = vsel %vm617, %v1025, 0.0
      %1054 = vadd.xlane.f32.xlu0 %v1053
      %v1055 = vpop.xlane.xlu0 %1054
      %v1056 = vsel %vm617, %v1026, 0.0
      %1057 = vadd.xlane.f32.xlu0 %v1056
      %v1058 = vpop.xlane.xlu0 %1057
      %v1059 = vsel %vm617, %v1027, 0.0
      %1060 = vadd.xlane.f32.xlu0 %v1059
      %v1061 = vpop.xlane.xlu0 %1060
      %v1062 = vsel %vm617, %v1028, 0.0
      %1063 = vadd.xlane.f32.xlu0 %v1062
      %v1064 = vpop.xlane.xlu0 %1063
      %v1066 = vlaneseq
      %v1067 = vshrl.u32 %v1066, 7
      %v1068 = vsub.s32 0, %v1067
      %v1069 = vrot.slane %v897, %v1068
      %v1071 = vadd.f32 %v1031, %v1069
      %v1072 = vadd.f32 %v1034, %v1069
      %v1073 = vadd.f32 %v1037, %v1069
      %v1074 = vadd.f32 %v1040, %v1069
      %v1075 = vadd.f32 %v1043, %v1069
      %v1076 = vadd.f32 %v1046, %v1069
      %v1077 = vadd.f32 %v1049, %v1069
      %v1078 = vadd.f32 %v1052, %v1069
      %v1079 = vadd.f32 %v1055, %v1069
      %v1080 = vadd.f32 %v1058, %v1069
      %v1081 = vadd.f32 %v1061, %v1069
      %v1082 = vadd.f32 %v1064, %v1069
      %vm1083 = vcmask 7168
      %v1084 = vsel %vm1083, %v1071, -inf
      %v1085 = vsel %vm1083, %v1073, -inf
      %v1086 = vsel %vm1083, %v1075, -inf
      %v1087 = vmax.f32 %v1084, %v1086
      %v1088 = vsel %vm1083, %v1077, -inf
      %v1089 = vmax.f32 %v1085, %v1088
      %v1090 = vsel %vm1083, %v1079, -inf
      %v1091 = vmax.f32 %v1087, %v1090
      %v1092 = vsel %vm1083, %v1081, -inf
      %v1093 = vmax.f32 %v1089, %v1092
      %v1094 = vmax.f32 %v1091, %v1093
      %v1095 = vsel %vm1083, %v1072, -inf
      %v1096 = vsel %vm1083, %v1074, -inf
      %v1097 = vsel %vm1083, %v1076, -inf
      %v1098 = vmax.f32 %v1095, %v1097
      %v1099 = vsel %vm1083, %v1078, -inf
      %v1100 = vmax.f32 %v1096, %v1099
      %v1101 = vsel %vm1083, %v1080, -inf
      %v1102 = vmax.f32 %v1098, %v1101
      %v1103 = vsel %vm1083, %v1082, -inf
      %v1104 = vmax.f32 %v1100, %v1103
      %v1105 = vmax.f32 %v1102, %v1104
      %v1106 = vsub.f32 %v1071, %v1094
      %v1107 = vsub.f32 %v1072, %v1105
      %v1108 = vsub.f32 %v1073, %v1094
      %v1109 = vsub.f32 %v1074, %v1105
      %v1110 = vsub.f32 %v1075, %v1094
      %v1111 = vsub.f32 %v1076, %v1105
      %v1112 = vsub.f32 %v1077, %v1094
      %v1113 = vsub.f32 %v1078, %v1105
      %v1114 = vsub.f32 %v1079, %v1094
      %v1115 = vsub.f32 %v1080, %v1105
      %v1116 = vsub.f32 %v1081, %v1094
      %v1117 = vsub.f32 %v1082, %v1105
      %v1118 = vmul.f32 %v1106, 1.442695
      %v1119 = vpow.pop %v1118
      %v1120 = vmul.f32 %v1107, 1.442695
      %v1121 = vpow.pop %v1120
      %v1122 = vmul.f32 %v1108, 1.442695
      %v1123 = vpow.pop %v1122
      %v1124 = vmul.f32 %v1109, 1.442695
      %v1125 = vpow.pop %v1124
      %v1126 = vmul.f32 %v1110, 1.442695
      %v1127 = vpow.pop %v1126
      %v1128 = vmul.f32 %v1111, 1.442695
      %v1129 = vpow.pop %v1128
      %v1130 = vmul.f32 %v1112, 1.442695
      %v1131 = vpow.pop %v1130
      %v1132 = vmul.f32 %v1113, 1.442695
      %v1133 = vpow.pop %v1132
      %v1134 = vmul.f32 %v1114, 1.442695
      %v1135 = vpow.pop %v1134
      %v1136 = vmul.f32 %v1115, 1.442695
      %v1137 = vpow.pop %v1136
      %v1138 = vmul.f32 %v1116, 1.442695
      %v1139 = vpow.pop %v1138
      %v1140 = vmul.f32 %v1117, 1.442695
      %v1141 = vpow.pop %v1140
      %v1142 = vsel %vm1083, %v1119, 0.0
      %v1143 = vsel %vm1083, %v1123, 0.0
      %v1144 = vadd.f32 %v1142, %v1143
      %v1145 = vsel %vm1083, %v1127, 0.0
      %v1146 = vadd.f32 %v1144, %v1145
      %v1147 = vsel %vm1083, %v1131, 0.0
      %v1148 = vadd.f32 %v1146, %v1147
      %v1149 = vsel %vm1083, %v1135, 0.0
      %v1150 = vadd.f32 %v1148, %v1149
      %v1151 = vsel %vm1083, %v1139, 0.0
      %v1152 = vadd.f32 %v1150, %v1151
      %v1153 = vsel %vm1083, %v1121, 0.0
      %v1154 = vsel %vm1083, %v1125, 0.0
      %v1155 = vadd.f32 %v1153, %v1154
      %v1156 = vsel %vm1083, %v1129, 0.0
      %v1157 = vadd.f32 %v1155, %v1156
      %v1158 = vsel %vm1083, %v1133, 0.0
      %v1159 = vadd.f32 %v1157, %v1158
      %v1160 = vsel %vm1083, %v1137, 0.0
      %v1161 = vadd.f32 %v1159, %v1160
      %v1162 = vsel %vm1083, %v1141, 0.0
      %v1163 = vadd.f32 %v1161, %v1162
      %v1164 = vrcp.pop %v1152
      %v1165 = vrcp.pop %v1163
      %v1166 = vmul.f32 %v1119, %v1164
      %v1167 = vmul.f32 %v1121, %v1165
      %v1168 = vmul.f32 %v1123, %v1164
      %v1169 = vmul.f32 %v1125, %v1165
      %v1170 = vmul.f32 %v1127, %v1164
      %v1171 = vmul.f32 %v1129, %v1165
      %v1172 = vmul.f32 %v1131, %v1164
      %v1173 = vmul.f32 %v1133, %v1165
      %v1174 = vmul.f32 %v1135, %v1164
      %v1175 = vmul.f32 %v1137, %v1165
      %v1176 = vmul.f32 %v1139, %v1164
      %v1177 = vmul.f32 %v1141, %v1165
      %1179 = vset.pattern.permute.xlu0 0
      %1180 = vperm.xlu0 %1179, %v1166
      %v1181 = vpop.permute.xlu0 %1180
      %1184 = vset.pattern.permute.xlu0 0
      %1185 = vperm.xlu0 %1184, %v1167
      %v1186 = vpop.permute.xlu0 %1185
      %1189 = vset.pattern.permute.xlu0 0
      %1190 = vperm.xlu0 %1189, %v1168
      %v1191 = vpop.permute.xlu0 %1190
      %1194 = vset.pattern.permute.xlu0 0
      %1195 = vperm.xlu0 %1194, %v1169
      %v1196 = vpop.permute.xlu0 %1195
      %1199 = vset.pattern.permute.xlu0 0
      %1200 = vperm.xlu0 %1199, %v1170
      %v1201 = vpop.permute.xlu0 %1200
      %1204 = vset.pattern.permute.xlu0 0
      %1205 = vperm.xlu0 %1204, %v1171
      %v1206 = vpop.permute.xlu0 %1205
      %1209 = vset.pattern.permute.xlu0 0
      %1210 = vperm.xlu0 %1209, %v1172
      %v1211 = vpop.permute.xlu0 %1210
      %1214 = vset.pattern.permute.xlu0 0
      %1215 = vperm.xlu0 %1214, %v1173
      %v1216 = vpop.permute.xlu0 %1215
      %1219 = vset.pattern.permute.xlu0 0
      %1220 = vperm.xlu0 %1219, %v1174
      %v1221 = vpop.permute.xlu0 %1220
      %1224 = vset.pattern.permute.xlu0 0
      %1225 = vperm.xlu0 %1224, %v1175
      %v1226 = vpop.permute.xlu0 %1225
      %1229 = vset.pattern.permute.xlu0 0
      %1230 = vperm.xlu0 %1229, %v1176
      %v1231 = vpop.permute.xlu0 %1230
      %1234 = vset.pattern.permute.xlu0 0
      %1235 = vperm.xlu0 %1234, %v1177
      %v1236 = vpop.permute.xlu0 %1235
      %v1238 = vmul.f32 %v1181, %v580
      %v1239 = vmul.f32 %v1186, %v580
      %v1240 = vmul.f32 %v1191, %v581
      %v1241 = vmul.f32 %v1196, %v581
      %v1242 = vmul.f32 %v1201, %v582
      %v1243 = vmul.f32 %v1206, %v582
      %v1244 = vmul.f32 %v1211, %v583
      %v1245 = vmul.f32 %v1216, %v583
      %v1246 = vmul.f32 %v1221, %v584
      %v1247 = vmul.f32 %v1226, %v584
      %v1248 = vmul.f32 %v1231, %v585
      %v1249 = vmul.f32 %v1236, %v585
      %v1250 = vsel %vm617, %v1238, 0.0
      %v1251 = vsel %vm617, %v1240, 0.0
      %v1252 = vadd.f32 %v1250, %v1251
      %v1253 = vsel %vm617, %v1242, 0.0
      %v1254 = vadd.f32 %v1252, %v1253
      %v1255 = vsel %vm617, %v1244, 0.0
      %v1256 = vadd.f32 %v1254, %v1255
      %v1257 = vsel %vm617, %v1246, 0.0
      %v1258 = vadd.f32 %v1256, %v1257
      %v1259 = vsel %vm617, %v1248, 0.0
      %v1260 = vadd.f32 %v1258, %v1259
      %v1261 = vsel %vm617, %v1239, 0.0
      %v1262 = vsel %vm617, %v1241, 0.0
      %v1263 = vadd.f32 %v1261, %v1262
      %v1264 = vsel %vm617, %v1243, 0.0
      %v1265 = vadd.f32 %v1263, %v1264
      %v1266 = vsel %vm617, %v1245, 0.0
      %v1267 = vadd.f32 %v1265, %v1266
      %v1268 = vsel %vm617, %v1247, 0.0
      %v1269 = vadd.f32 %v1267, %v1268
      %v1270 = vsel %vm617, %v1249, 0.0
      %v1271 = vadd.f32 %v1269, %v1270
      %v1272 = vstv %s899
      %vm1273 = vcmp.gt.s32.totalorder %v127, %v1272
      %v1274 = vstv %s908
      %vm1275 = vcmp.gt.s32.totalorder %v127, %v1274
      %v1276 = vsel %vm1273, 1, 0
      %v1277 = vsel %vm1275, 1, 0
      %v1278 = vcvt.s32.f32 %v1276
      %v1279 = vcvt.s32.f32 %v1277
      %s1280 = scalar_lea.vmem [#allocation5], %s979
      %v1281 = vld [vmem:[%s1280] sm:$0xff]
      %s1282 = scalar_lea.vmem [#allocation5], %s982
      %v1283 = vld [vmem:[%s1282] sm:$0xff]
      %v1284 = vadd.f32 %v1281, %v971
      %v1285 = vadd.f32 %v1283, %v975
      %1287 = vset.pattern.permute.xlu0 0
      %1288 = vperm.xlu0 %1287, %v1278
      %v1289 = vpop.permute.xlu0 %1288
      %1292 = vset.pattern.permute.xlu0 0
      %1293 = vperm.xlu0 %1292, %v1279
      %v1294 = vpop.permute.xlu0 %1293
      %v1296 = vmul.f32 %v1260, %v1289
      %v1297 = vmul.f32 %v1271, %v1294
      %v1298 = vpack.c.bf16 %v1297, %v1296
      %v1303 = vunpack.c.l.b16 %v892
      %v1304 = vunpack.c.l.b16 %v893
      %v1305 = vunpack.c.l.b16 %v894
      %v1306 = vunpack.c.l.b16 %v895
      %v1307 = vpack.c.b16 %v1304, %v1303
      %v1308 = vpack.c.b16 %v1306, %v1305
      %v1312 = vsel %vm617, %v1298, 0
      %1314 = vmatprep.subr.bf16.mxu0 0
      %1315 = vmatpush1.bf16.msra.mxu0 0
      %1316 = vmatprep.subr.bf16.mxu0 0
      %1317 = vmatpush1.bf16.msra.mxu0 0
      %1318 = vmatprep.subr.bf16.mxu0 0
      %1319 = vmatpush1.bf16.msra.mxu0 0
      %1320 = vmatprep.subr.bf16.mxu0 0
      %1321 = vmatpush1.bf16.msra.mxu0 0
      %1322 = vmatprep.subr.bf16.mxu0 0
      %1323 = vmatpush1.bf16.msra.mxu0 0
      %1324 = vmatprep.subr.bf16.mxu0 0
      %1325 = vmatpush1.bf16.msra.mxu0 0
      %1326 = vmatprep.subr.bf16.mxu0 0
      %1327 = vmatpush1.bf16.msra.mxu0 %v1308
      %1328 = vmatprep.subr.bf16.mxu0 0
      %1329 = vmatpush1.bf16.msra.mxu0 %v1307
      %1330 = vmatprep.subr.bf16.mxu0 0
      %1331 = vmatpush2.bf16.msra.mxu0 0
      %1332 = vmatprep.subr.bf16.mxu0 0
      %1333 = vmatpush2.bf16.msra.mxu0 0
      %1334 = vmatprep.subr.bf16.mxu0 0
      %1335 = vmatpush2.bf16.msra.mxu0 0
      %1336 = vmatprep.subr.bf16.mxu0 0
      %1337 = vmatpush2.bf16.msra.mxu0 0
      %1338 = vmatprep.subr.bf16.mxu0 0
      %1339 = vmatpush2.bf16.msra.mxu0 0
      %1340 = vmatprep.subr.bf16.mxu0 0
      %1341 = vmatpush2.bf16.msra.mxu0 0
      %1342 = vmatprep.subr.bf16.mxu0 0
      %1343 = vmatpush2.bf16.msra.mxu0 0
      %1344 = vmatprep.subr.bf16.mxu0 0
      %1345 = vmatpush2.bf16.msra.mxu0 0
      %1346 = vmatprep.mubr.bf16.mxu0 0
      %1347 = vmatmul.mubr.bf16.gmra.mxu0 %v1312
      %v1348 = vpop.f32.mrf.mxu0
      %v1349 = vadd.f32 0.0, %v1348
      %v1350 = vpop.f32.mrf.mxu0
      %v1351 = vpop.f32.mrf.mxu0
      %v1352 = vadd.f32 0.0, %v1351
      %v1353 = vpop.f32.mrf.mxu0
      %1354 = vdwg.mxu0
      %v1355 = vadd.f32 %v1284, %v1349
      %v1356 = vadd.f32 %v1285, %v1352
      %v1357 = vxor.u32 %v1355, 2147483648
      %v1358 = vxor.u32 %v1356, 2147483648
      %v1359 = vmul.f32 %v1357, 1.442695
      %v1360 = vpow.pop %v1359
      %v1361 = vmul.f32 %v1358, 1.442695
      %v1362 = vpow.pop %v1361
      %v1363 = vadd.f32 %v1360, 1.0
      %v1364 = vadd.f32 %v1362, 1.0
      %v1365 = vrcp.pop %v1363
      %v1366 = vmul.f32 1.0, %v1365
      %v1367 = vrcp.pop %v1364
      %v1368 = vmul.f32 1.0, %v1367
      %v1369 = vtanh.pop %v1355
      %v1370 = vtanh.pop %v1356
      %v1371 = vmul.f32 %v1366, %v906
      %v1372 = vmul.f32 %v1368, %v907
      %1375 = vrot.lane.b32.xlu0 %v1369, 32
      %v1376 = vpop.permute.xlu0 %1375
      %1377 = vrot.lane.b32.xlu0 %v1370, 32
      %v1378 = vpop.permute.xlu0 %1377
      %v1381 = vmul.f32 %v1366, %v1376
      %v1382 = vmul.f32 %v1368, %v1378
      %1385 = vrot.lane.b32.xlu0 %v1381, 32
      %v1386 = vpop.permute.xlu0 %1385
      %1387 = vrot.lane.b32.xlu0 %v1382, 32
      %v1388 = vpop.permute.xlu0 %1387
      %v1391 = vadd.f32 %v1371, %v1386
      %v1392 = vadd.f32 %v1372, %v1388
      %v1393 = vmul.f32 %v1391, %v1289
      %v1394 = vmul.f32 %v1392, %v1294
      %v1395 = vtanh.pop %v1393
      %v1396 = vtanh.pop %v1394
      %1399 = vrot.lane.b32.xlu0 %v1395, 32
      %v1400 = vpop.permute.xlu0 %1399
      %1401 = vrot.lane.b32.xlu0 %v1396, 32
      %v1402 = vpop.permute.xlu0 %1401
      %v1405 = vmul.f32 %v1366, %v1400
      %v1406 = vmul.f32 %v1368, %v1402
      %v1407 = vmul.f32 %v1405, %v1289
      %v1408 = vmul.f32 %v1406, %v1294
      %1410 = vrot.lane.b32.xlu0 %v1407, 64
      %v1411 = vpop.permute.xlu0 %1410
      %s1413 = scalar_lea.vmem [#allocation6], %s979
      %1414 = vst.msk [vmem:[%s1413] sm:$0xff] %vm617, %v1411
      %1416 = vrot.lane.b32.xlu0 %v1408, 64
      %v1417 = vpop.permute.xlu0 %1416
      %s1419 = scalar_lea.vmem [#allocation7], %s982
      %1420 = vst.msk [vmem:[%s1419] sm:$0xff] %vm617, %v1417
    $region132: #{match_lstm_forward.1} parent=1 // loop_footer
      %s903 = sadd.s32 1, %s899
    $region133: #{match_lstm_forward.1} parent=1 // loop_footer_branch
      %898 = sbr.rel target = $region129
    $region134: #{match_lstm_forward.1} parent=1 // loop_exit
      _
    %v1421 = vld [vmem:[#allocation6] sm:$0xff]
    %v1422 = vld [vmem:[#allocation6 + $0x8] sm:$0xff]
    %v1423 = vld [vmem:[#allocation6 + $0x10] sm:$0xff]
    %v1424 = vld [vmem:[#allocation6 + $0x18] sm:$0xff]
    %v1425 = vld [vmem:[#allocation6 + $0x20] sm:$0xff]
    %v1426 = vld [vmem:[#allocation6 + $0x28] sm:$0xff]
    %v1427 = vld [vmem:[#allocation6 + $0x30] sm:$0xff]
    %v1428 = vld [vmem:[#allocation6 + $0x38] sm:$0xff]
    %v1429 = vld [vmem:[#allocation7] sm:$0xff]
    %v1430 = vld [vmem:[#allocation7 + $0x8] sm:$0xff]
    %v1431 = vld [vmem:[#allocation7 + $0x10] sm:$0xff]
    %v1432 = vld [vmem:[#allocation7 + $0x18] sm:$0xff]
    %v1433 = vld [vmem:[#allocation7 + $0x20] sm:$0xff]
    %v1434 = vld [vmem:[#allocation7 + $0x28] sm:$0xff]
    %v1435 = vld [vmem:[#allocation7 + $0x30] sm:$0xff]
    %v1436 = vld [vmem:[#allocation7 + $0x38] sm:$0xff]
    %v1437 = vpack.c.bf16 %v1422, %v1421
    %v1438 = vpack.c.bf16 %v1424, %v1423
    %v1439 = vpack.c.bf16 %v1426, %v1425
    %v1440 = vpack.c.bf16 %v1428, %v1427
    %v1441 = vld [vmem:[%s37] sm:$0xf]
    %v1442 = vld [vmem:[%s37 + $0x4] sm:$0xf]
    %v1443 = vld [vmem:[%s37 + $0x8] sm:$0xf]
    %v1444 = vld [vmem:[%s37 + $0xc] sm:$0xf]
    %v1445 = vpack.c.bf16 %v1430, %v1429
    %v1446 = vpack.c.bf16 %v1432, %v1431
    %v1447 = vpack.c.bf16 %v1434, %v1433
    %v1448 = vpack.c.bf16 %v1436, %v1435
    %v1449 = vld [vmem:[%s39] sm:$0xf]
    %v1450 = vld [vmem:[%s39 + $0x4] sm:$0xf]
    %v1451 = vld [vmem:[%s39 + $0x8] sm:$0xf]
    %v1452 = vld [vmem:[%s39 + $0xc] sm:$0xf]
    %v1457 = vunpack.c.l.b16 %v1449
    %v1458 = vunpack.c.l.b16 %v1450
    %v1459 = vunpack.c.l.b16 %v1451
    %v1460 = vunpack.c.l.b16 %v1452
    %v1461 = vpack.c.b16 %v1458, %v1457
    %v1462 = vpack.c.b16 %v1460, %v1459
    %v1466 = vsel %vm617, %v1445, 0
    %v1469 = vsel %vm617, %v1446, 0
    %v1472 = vsel %vm617, %v1447, 0
    %v1475 = vsel %vm617, %v1448, 0
    %1477 = vmatprep.subr.bf16.mxu0 0
    %1478 = vmatpush1.bf16.msra.mxu0 0
    %1479 = vmatprep.subr.bf16.mxu0 0
    %1480 = vmatpush1.bf16.msra.mxu0 0
    %1481 = vmatprep.subr.bf16.mxu0 0
    %1482 = vmatpush1.bf16.msra.mxu0 0
    %1483 = vmatprep.subr.bf16.mxu0 0
    %1484 = vmatpush1.bf16.msra.mxu0 0
    %1485 = vmatprep.subr.bf16.mxu0 0
    %1486 = vmatpush1.bf16.msra.mxu0 0
    %1487 = vmatprep.subr.bf16.mxu0 0
    %1488 = vmatpush1.bf16.msra.mxu0 0
    %1489 = vmatprep.subr.bf16.mxu0 0
    %1490 = vmatpush1.bf16.msra.mxu0 %v1462
    %1491 = vmatprep.subr.bf16.mxu0 0
    %1492 = vmatpush1.bf16.msra.mxu0 %v1461
    %1493 = vmatprep.subr.bf16.mxu0 0
    %1494 = vmatpush2.bf16.msra.mxu0 0
    %1495 = vmatprep.subr.bf16.mxu0 0
    %1496 = vmatpush2.bf16.msra.mxu0 0
    %1497 = vmatprep.subr.bf16.mxu0 0
    %1498 = vmatpush2.bf16.msra.mxu0 0
    %1499 = vmatprep.subr.bf16.mxu0 0
    %1500 = vmatpush2.bf16.msra.mxu0 0
    %1501 = vmatprep.subr.bf16.mxu0 0
    %1502 = vmatpush2.bf16.msra.mxu0 0
    %1503 = vmatprep.subr.bf16.mxu0 0
    %1504 = vmatpush2.bf16.msra.mxu0 0
    %1505 = vmatprep.subr.bf16.mxu0 0
    %1506 = vmatpush2.bf16.msra.mxu0 0
    %1507 = vmatprep.subr.bf16.mxu0 0
    %1508 = vmatpush2.bf16.msra.mxu0 0
    %1509 = vmatprep.mubr.bf16.mxu0 0
    %1510 = vmatmul.mubr.bf16.gmra.mxu0 %v1466
    %v1511 = vpop.f32.mrf.mxu0
    %v1512 = vadd.f32 0.0, %v1511
    %v1513 = vpop.f32.mrf.mxu0
    %v1514 = vpop.f32.mrf.mxu0
    %v1515 = vadd.f32 0.0, %v1514
    %v1516 = vpop.f32.mrf.mxu0
    %1517 = vmatprep.mubr.bf16.mxu0 0
    %1518 = vmatmul.mubr.bf16.gmra.mxu0 %v1469
    %v1519 = vpop.f32.mrf.mxu0
    %v1520 = vadd.f32 0.0, %v1519
    %v1521 = vpop.f32.mrf.mxu0
    %v1522 = vpop.f32.mrf.mxu0
    %v1523 = vadd.f32 0.0, %v1522
    %v1524 = vpop.f32.mrf.mxu0
    %1525 = vmatprep.mubr.bf16.mxu0 0
    %1526 = vmatmul.mubr.bf16.gmra.mxu0 %v1472
    %v1527 = vpop.f32.mrf.mxu0
    %v1528 = vadd.f32 0.0, %v1527
    %v1529 = vpop.f32.mrf.mxu0
    %v1530 = vpop.f32.mrf.mxu0
    %v1531 = vadd.f32 0.0, %v1530
    %v1532 = vpop.f32.mrf.mxu0
    %1533 = vmatprep.mubr.bf16.mxu0 0
    %1534 = vmatmul.mubr.bf16.gmra.mxu0 %v1475
    %v1535 = vpop.f32.mrf.mxu0
    %v1536 = vadd.f32 0.0, %v1535
    %v1537 = vpop.f32.mrf.mxu0
    %v1538 = vpop.f32.mrf.mxu0
    %v1539 = vadd.f32 0.0, %v1538
    %v1540 = vpop.f32.mrf.mxu0
    %1541 = vdwg.mxu0
    %v1546 = vunpack.c.l.b16 %v1441
    %v1547 = vunpack.c.l.b16 %v1442
    %v1548 = vunpack.c.l.b16 %v1443
    %v1549 = vunpack.c.l.b16 %v1444
    %v1550 = vpack.c.b16 %v1547, %v1546
    %v1551 = vpack.c.b16 %v1549, %v1548
    %v1555 = vsel %vm617, %v1437, 0
    %v1558 = vsel %vm617, %v1438, 0
    %v1561 = vsel %vm617, %v1439, 0
    %v1564 = vsel %vm617, %v1440, 0
    %1566 = vmatprep.subr.bf16.mxu0 0
    %1567 = vmatpush1.bf16.msra.mxu0 0
    %1568 = vmatprep.subr.bf16.mxu0 0
    %1569 = vmatpush1.bf16.msra.mxu0 0
    %1570 = vmatprep.subr.bf16.mxu0 0
    %1571 = vmatpush1.bf16.msra.mxu0 0
    %1572 = vmatprep.subr.bf16.mxu0 0
    %1573 = vmatpush1.bf16.msra.mxu0 0
    %1574 = vmatprep.subr.bf16.mxu0 0
    %1575 = vmatpush1.bf16.msra.mxu0 0
    %1576 = vmatprep.subr.bf16.mxu0 0
    %1577 = vmatpush1.bf16.msra.mxu0 0
    %1578 = vmatprep.subr.bf16.mxu0 0
    %1579 = vmatpush1.bf16.msra.mxu0 %v1551
    %1580 = vmatprep.subr.bf16.mxu0 0
    %1581 = vmatpush1.bf16.msra.mxu0 %v1550
    %1582 = vmatprep.subr.bf16.mxu0 0
    %1583 = vmatpush2.bf16.msra.mxu0 0
    %1584 = vmatprep.subr.bf16.mxu0 0
    %1585 = vmatpush2.bf16.msra.mxu0 0
    %1586 = vmatprep.subr.bf16.mxu0 0
    %1587 = vmatpush2.bf16.msra.mxu0 0
    %1588 = vmatprep.subr.bf16.mxu0 0
    %1589 = vmatpush2.bf16.msra.mxu0 0
    %1590 = vmatprep.subr.bf16.mxu0 0
    %1591 = vmatpush2.bf16.msra.mxu0 0
    %1592 = vmatprep.subr.bf16.mxu0 0
    %1593 = vmatpush2.bf16.msra.mxu0 0
    %1594 = vmatprep.subr.bf16.mxu0 0
    %1595 = vmatpush2.bf16.msra.mxu0 0
    %1596 = vmatprep.subr.bf16.mxu0 0
    %1597 = vmatpush2.bf16.msra.mxu0 0
    %1598 = vmatprep.mubr.bf16.mxu0 0
    %1599 = vmatmul.mubr.bf16.gmra.mxu0 %v1555
    %v1600 = vpop.f32.mrf.mxu0
    %v1601 = vadd.f32 %v1512, %v1600
    %v1602 = vpop.f32.mrf.mxu0
    %v1603 = vpop.f32.mrf.mxu0
    %v1604 = vadd.f32 %v1515, %v1603
    %v1605 = vpop.f32.mrf.mxu0
    %1606 = vmatprep.mubr.bf16.mxu0 0
    %1607 = vmatmul.mubr.bf16.gmra.mxu0 %v1558
    %v1608 = vpop.f32.mrf.mxu0
    %v1609 = vadd.f32 %v1520, %v1608
    %v1610 = vpop.f32.mrf.mxu0
    %v1611 = vpop.f32.mrf.mxu0
    %v1612 = vadd.f32 %v1523, %v1611
    %v1613 = vpop.f32.mrf.mxu0
    %1614 = vmatprep.mubr.bf16.mxu0 0
    %1615 = vmatmul.mubr.bf16.gmra.mxu0 %v1561
    %v1616 = vpop.f32.mrf.mxu0
    %v1617 = vadd.f32 %v1528, %v1616
    %v1618 = vpop.f32.mrf.mxu0
    %v1619 = vpop.f32.mrf.mxu0
    %v1620 = vadd.f32 %v1531, %v1619
    %v1621 = vpop.f32.mrf.mxu0
    %1622 = vmatprep.mubr.bf16.mxu0 0
    %1623 = vmatmul.mubr.bf16.gmra.mxu0 %v1564
    %v1624 = vpop.f32.mrf.mxu0
    %v1625 = vadd.f32 %v1536, %v1624
    %v1626 = vpop.f32.mrf.mxu0
    %v1627 = vpop.f32.mrf.mxu0
    %v1628 = vadd.f32 %v1539, %v1627
    %v1629 = vpop.f32.mrf.mxu0
    %1630 = vdwg.mxu0
    %v1631 = vld [vmem:[%s41] sm:$0xf]
    %v1632 = vld [vmem:[%s41 + $0x4] sm:$0xf]
    %v1633 = vld [vmem:[%s41 + $0x8] sm:$0xf]
    %v1634 = vld [vmem:[%s41 + $0xc] sm:$0xf]
    %v1635 = vld [vmem:[%s43] sm:$0x1]
    %v1636 = vld [vmem:[%s45] sm:$0x1]
    %v1637 = vld [vmem:[#allocation11] sm:$0x1]
    %v1638 = vld [vmem:[%s49] sm:$0xf]
    %v1639 = vld [vmem:[%s49 + $0x4] sm:$0xf]
    %v1640 = vld [vmem:[%s49 + $0x8] sm:$0xf]
    %v1641 = vld [vmem:[%s49 + $0xc] sm:$0xf]
    %v1642 = vld [vmem:[%s51] sm:$0xf]
    %v1643 = vld [vmem:[%s51 + $0x4] sm:$0xf]
    %v1644 = vld [vmem:[%s51 + $0x8] sm:$0xf]
    %v1645 = vld [vmem:[%s51 + $0xc] sm:$0xf]
    %v1646 = vld [vmem:[%s53] sm:$0xf]
    %v1647 = vld [vmem:[%s53 + $0x4] sm:$0xf]
    %v1648 = vld [vmem:[%s53 + $0x8] sm:$0xf]
    %v1649 = vld [vmem:[%s53 + $0xc] sm:$0xf]
    %v1650 = vld [vmem:[%s55] sm:$0x1]
    %v1651 = vld [vmem:[%s9] sm:$0xff]
    %v1652 = vld [vmem:[%s11] sm:$0xff]
    %v1653 = vld [vmem:[%s11 + $0x8] sm:$0xff]
    %vm1654 = vcmp.gt.s32.totalorder %v127, 0
    %vm1655 = vcmp.gt.s32.totalorder %v127, 1
    %vm1656 = vcmp.gt.s32.totalorder %v127, 2
    %vm1657 = vcmp.gt.s32.totalorder %v127, 3
    %vm1658 = vcmp.gt.s32.totalorder %v127, 4
    %vm1659 = vcmp.gt.s32.totalorder %v127, 5
    %vm1660 = vcmp.gt.s32.totalorder %v127, 6
    %vm1661 = vcmp.gt.s32.totalorder %v127, 7
    %v1662 = vsel %vm1654, 1, 0
    %v1663 = vsel %vm1655, 1, 0
    %v1664 = vsel %vm1656, 1, 0
    %v1665 = vsel %vm1657, 1, 0
    %v1666 = vsel %vm1658, 1, 0
    %v1667 = vsel %vm1659, 1, 0
    %v1668 = vsel %vm1660, 1, 0
    %v1669 = vsel %vm1661, 1, 0
    %v1670 = vcvt.s32.f32 %v1662
    %v1671 = vcvt.s32.f32 %v1663
    %v1672 = vcvt.s32.f32 %v1664
    %v1673 = vcvt.s32.f32 %v1665
    %v1674 = vcvt.s32.f32 %v1666
    %v1675 = vcvt.s32.f32 %v1667
    %v1676 = vcvt.s32.f32 %v1668
    %v1677 = vcvt.s32.f32 %v1669
    %v1679 = vlaneseq
    %v1680 = vshrl.u32 %v1679, 7
    %v1681 = vsub.s32 0, %v1680
    %v1682 = vrot.slane %v1635, %v1681
    %v1688 = vunpack.c.l.b16 %v1631
    %v1689 = vunpack.c.l.b16 %v1632
    %v1690 = vunpack.c.l.b16 %v1633
    %v1691 = vunpack.c.l.b16 %v1634
    %v1692 = vpack.c.b16 %v1689, %v1688
    %v1693 = vpack.c.b16 %v1691, %v1690
    %v1697 = vsel %vm617, 0, 0
    %1699 = vmatprep.subr.bf16.mxu0 0
    %1700 = vmatpush1.bf16.msra.mxu0 0
    %1701 = vmatprep.subr.bf16.mxu0 0
    %1702 = vmatpush1.bf16.msra.mxu0 0
    %1703 = vmatprep.subr.bf16.mxu0 0
    %1704 = vmatpush1.bf16.msra.mxu0 0
    %1705 = vmatprep.subr.bf16.mxu0 0
    %1706 = vmatpush1.bf16.msra.mxu0 0
    %1707 = vmatprep.subr.bf16.mxu0 0
    %1708 = vmatpush1.bf16.msra.mxu0 0
    %1709 = vmatprep.subr.bf16.mxu0 0
    %1710 = vmatpush1.bf16.msra.mxu0 0
    %1711 = vmatprep.subr.bf16.mxu0 0
    %1712 = vmatpush1.bf16.msra.mxu0 %v1693
    %1713 = vmatprep.subr.bf16.mxu0 0
    %1714 = vmatpush1.bf16.msra.mxu0 %v1692
    %1715 = vmatprep.subr.bf16.mxu0 0
    %1716 = vmatpush2.bf16.msra.mxu0 0
    %1717 = vmatprep.subr.bf16.mxu0 0
    %1718 = vmatpush2.bf16.msra.mxu0 0
    %1719 = vmatprep.subr.bf16.mxu0 0
    %1720 = vmatpush2.bf16.msra.mxu0 0
    %1721 = vmatprep.subr.bf16.mxu0 0
    %1722 = vmatpush2.bf16.msra.mxu0 0
    %1723 = vmatprep.subr.bf16.mxu0 0
    %1724 = vmatpush2.bf16.msra.mxu0 0
    %1725 = vmatprep.subr.bf16.mxu0 0
    %1726 = vmatpush2.bf16.msra.mxu0 0
    %1727 = vmatprep.subr.bf16.mxu0 0
    %1728 = vmatpush2.bf16.msra.mxu0 0
    %1729 = vmatprep.subr.bf16.mxu0 0
    %1730 = vmatpush2.bf16.msra.mxu0 0
    %1731 = vmatprep.mubr.bf16.mxu0 0
    %1732 = vmatmul.mubr.bf16.gmra.mxu0 %v1697
    %v1733 = vpop.f32.mrf.mxu0
    %v1734 = vadd.f32 %v1682, %v1733
    %v1735 = vpop.f32.mrf.mxu0
    %v1736 = vpop.f32.mrf.mxu0
    %v1737 = vpop.f32.mrf.mxu0
    %1738 = vdwg.mxu0
    %v1739 = vadd.f32 %v1601, %v1734
    %v1740 = vadd.f32 %v1604, %v1734
    %v1741 = vadd.f32 %v1609, %v1734
    %v1742 = vadd.f32 %v1612, %v1734
    %v1743 = vadd.f32 %v1617, %v1734
    %v1744 = vadd.f32 %v1620, %v1734
    %v1745 = vadd.f32 %v1625, %v1734
    %v1746 = vadd.f32 %v1628, %v1734
    %v1747 = vtanh.pop %v1739
    %v1748 = vtanh.pop %v1740
    %v1749 = vtanh.pop %v1741
    %v1750 = vtanh.pop %v1742
    %v1751 = vtanh.pop %v1743
    %v1752 = vtanh.pop %v1744
    %v1753 = vtanh.pop %v1745
    %v1754 = vtanh.pop %v1746
    %v1756 = vlaneseq
    %v1757 = vshrl.u32 %v1756, 7
    %v1758 = vsub.s32 0, %v1757
    %v1759 = vrot.slane %v1636, %v1758
    %v1761 = vmul.f32 %v1747, %v1759
    %v1762 = vmul.f32 %v1748, %v1759
    %v1763 = vmul.f32 %v1749, %v1759
    %v1764 = vmul.f32 %v1750, %v1759
    %v1765 = vmul.f32 %v1751, %v1759
    %v1766 = vmul.f32 %v1752, %v1759
    %v1767 = vmul.f32 %v1753, %v1759
    %v1768 = vmul.f32 %v1754, %v1759
    %v1769 = vsel %vm617, %v1761, 0.0
    %1770 = vadd.xlane.f32.xlu0 %v1769
    %v1771 = vpop.xlane.xlu0 %1770
    %v1772 = vsel %vm617, %v1762, 0.0
    %1773 = vadd.xlane.f32.xlu0 %v1772
    %v1774 = vpop.xlane.xlu0 %1773
    %v1775 = vsel %vm617, %v1763, 0.0
    %1776 = vadd.xlane.f32.xlu0 %v1775
    %v1777 = vpop.xlane.xlu0 %1776
    %v1778 = vsel %vm617, %v1764, 0.0
    %1779 = vadd.xlane.f32.xlu0 %v1778
    %v1780 = vpop.xlane.xlu0 %1779
    %v1781 = vsel %vm617, %v1765, 0.0
    %1782 = vadd.xlane.f32.xlu0 %v1781
    %v1783 = vpop.xlane.xlu0 %1782
    %v1784 = vsel %vm617, %v1766, 0.0
    %1785 = vadd.xlane.f32.xlu0 %v1784
    %v1786 = vpop.xlane.xlu0 %1785
    %v1787 = vsel %vm617, %v1767, 0.0
    %1788 = vadd.xlane.f32.xlu0 %v1787
    %v1789 = vpop.xlane.xlu0 %1788
    %v1790 = vsel %vm617, %v1768, 0.0
    %1791 = vadd.xlane.f32.xlu0 %v1790
    %v1792 = vpop.xlane.xlu0 %1791
    %v1794 = vlaneseq
    %v1795 = vshrl.u32 %v1794, 7
    %v1796 = vsub.s32 0, %v1795
    %v1797 = vrot.slane %v1637, %v1796
    %v1799 = vadd.f32 %v1771, %v1797
    %v1800 = vadd.f32 %v1774, %v1797
    %v1801 = vadd.f32 %v1777, %v1797
    %v1802 = vadd.f32 %v1780, %v1797
    %v1803 = vadd.f32 %v1783, %v1797
    %v1804 = vadd.f32 %v1786, %v1797
    %v1805 = vadd.f32 %v1789, %v1797
    %v1806 = vadd.f32 %v1792, %v1797
    %v1807 = vsel %vm1654, %v1799, -1e+30
    %v1808 = vsel %vm1655, %v1800, -1e+30
    %v1809 = vsel %vm1656, %v1801, -1e+30
    %v1810 = vsel %vm1657, %v1802, -1e+30
    %v1811 = vsel %vm1658, %v1803, -1e+30
    %v1812 = vsel %vm1659, %v1804, -1e+30
    %v1813 = vsel %vm1660, %v1805, -1e+30
    %v1814 = vsel %vm1661, %v1806, -1e+30
    %vm1815 = vcmask 7168
    %v1816 = vsel %vm1815, %v1807, -inf
    %v1817 = vsel %vm1815, %v1808, -inf
    %v1818 = vsel %vm1815, %v1809, -inf
    %v1819 = vsel %vm1815, %v1810, -inf
    %v1820 = vsel %vm1815, %v1811, -inf
    %v1821 = vmax.f32 %v1816, %v1820
    %v1822 = vsel %vm1815, %v1812, -inf
    %v1823 = vmax.f32 %v1817, %v1822
    %v1824 = vsel %vm1815, %v1813, -inf
    %v1825 = vmax.f32 %v1818, %v1824
    %v1826 = vsel %vm1815, %v1814, -inf
    %v1827 = vmax.f32 %v1819, %v1826
    %v1828 = vmax.f32 %v1821, %v1823
    %v1829 = vmax.f32 %v1825, %v1827
    %v1830 = vmax.f32 %v1828, %v1829
    %v1831 = vsub.f32 %v1807, %v1830
    %v1832 = vsub.f32 %v1808, %v1830
    %v1833 = vsub.f32 %v1809, %v1830
    %v1834 = vsub.f32 %v1810, %v1830
    %v1835 = vsub.f32 %v1811, %v1830
    %v1836 = vsub.f32 %v1812, %v1830
    %v1837 = vsub.f32 %v1813, %v1830
    %v1838 = vsub.f32 %v1814, %v1830
    %v1839 = vmul.f32 %v1831, 1.442695
    %v1840 = vpow.pop %v1839
    %v1841 = vmul.f32 %v1832, 1.442695
    %v1842 = vpow.pop %v1841
    %v1843 = vmul.f32 %v1833, 1.442695
    %v1844 = vpow.pop %v1843
    %v1845 = vmul.f32 %v1834, 1.442695
    %v1846 = vpow.pop %v1845
    %v1847 = vmul.f32 %v1835, 1.442695
    %v1848 = vpow.pop %v1847
    %v1849 = vmul.f32 %v1836, 1.442695
    %v1850 = vpow.pop %v1849
    %v1851 = vmul.f32 %v1837, 1.442695
    %v1852 = vpow.pop %v1851
    %v1853 = vmul.f32 %v1838, 1.442695
    %v1854 = vpow.pop %v1853
    %v1855 = vsel %vm1815, %v1840, 0.0
    %v1856 = vsel %vm1815, %v1842, 0.0
    %v1857 = vadd.f32 %v1855, %v1856
    %v1858 = vsel %vm1815, %v1844, 0.0
    %v1859 = vadd.f32 %v1857, %v1858
    %v1860 = vsel %vm1815, %v1846, 0.0
    %v1861 = vadd.f32 %v1859, %v1860
    %v1862 = vsel %vm1815, %v1848, 0.0
    %v1863 = vadd.f32 %v1861, %v1862
    %v1864 = vsel %vm1815, %v1850, 0.0
    %v1865 = vadd.f32 %v1863, %v1864
    %v1866 = vsel %vm1815, %v1852, 0.0
    %v1867 = vadd.f32 %v1865, %v1866
    %v1868 = vsel %vm1815, %v1854, 0.0
    %v1869 = vadd.f32 %v1867, %v1868
    %v1870 = vrcp.pop %v1869
    %v1871 = vmul.f32 %v1840, %v1870
    %v1872 = vmul.f32 %v1842, %v1870
    %v1873 = vmul.f32 %v1844, %v1870
    %v1874 = vmul.f32 %v1846, %v1870
    %v1875 = vmul.f32 %v1848, %v1870
    %v1876 = vmul.f32 %v1850, %v1870
    %v1877 = vmul.f32 %v1852, %v1870
    %v1878 = vmul.f32 %v1854, %v1870
    %v1879 = vmul.f32 %v1871, %v1670
    %v1880 = vmul.f32 %v1872, %v1671
    %v1881 = vmul.f32 %v1873, %v1672
    %v1882 = vmul.f32 %v1874, %v1673
    %v1883 = vmul.f32 %v1875, %v1674
    %v1884 = vmul.f32 %v1876, %v1675
    %v1885 = vmul.f32 %v1877, %v1676
    %v1886 = vmul.f32 %v1878, %v1677
    %1895 = vset.pattern.permute.xlu0 0
    %1896 = vperm.xlu0 %1895, %v1879
    %v1897 = vpop.permute.xlu0 %1896
    %1898 = vset.pattern.permute.xlu0 0
    %1899 = vperm.xlu0 %1898, %v1880
    %v1900 = vpop.permute.xlu0 %1899
    %1901 = vset.pattern.permute.xlu0 0
    %1902 = vperm.xlu0 %1901, %v1881
    %v1903 = vpop.permute.xlu0 %1902
    %1904 = vset.pattern.permute.xlu0 0
    %1905 = vperm.xlu0 %1904, %v1882
    %v1906 = vpop.permute.xlu0 %1905
    %1907 = vset.pattern.permute.xlu0 0
    %1908 = vperm.xlu0 %1907, %v1883
    %v1909 = vpop.permute.xlu0 %1908
    %1910 = vset.pattern.permute.xlu0 0
    %1911 = vperm.xlu0 %1910, %v1884
    %v1912 = vpop.permute.xlu0 %1911
    %1913 = vset.pattern.permute.xlu0 0
    %1914 = vperm.xlu0 %1913, %v1885
    %v1915 = vpop.permute.xlu0 %1914
    %1916 = vset.pattern.permute.xlu0 0
    %1917 = vperm.xlu0 %1916, %v1886
    %v1918 = vpop.permute.xlu0 %1917
    %v1919 = vlaneseq
    %v1920 = vand.u32 %v1919, 127
    %v1921 = vlaneseq
    %v1922 = vshrl.u32 %v1921, 7
    %v1923 = vsub.s32 %v1920, %v1922
    %v1924 = vrot.slane %v1897, %v1923
    %v1925 = vlaneseq
    %v1926 = vshrl.u32 %v1925, 7
    %v1927 = vsub.s32 %v1920, %v1926
    %v1928 = vrot.slane %v1900, %v1927
    %v1929 = vlaneseq
    %v1930 = vshrl.u32 %v1929, 7
    %v1931 = vsub.s32 %v1920, %v1930
    %v1932 = vrot.slane %v1903, %v1931
    %v1933 = vlaneseq
    %v1934 = vshrl.u32 %v1933, 7
    %v1935 = vsub.s32 %v1920, %v1934
    %v1936 = vrot.slane %v1906, %v1935
    %v1937 = vlaneseq
    %v1938 = vshrl.u32 %v1937, 7
    %v1939 = vsub.s32 %v1920, %v1938
    %v1940 = vrot.slane %v1909, %v1939
    %v1941 = vlaneseq
    %v1942 = vshrl.u32 %v1941, 7
    %v1943 = vsub.s32 %v1920, %v1942
    %v1944 = vrot.slane %v1912, %v1943
    %v1945 = vlaneseq
    %v1946 = vshrl.u32 %v1945, 7
    %v1947 = vsub.s32 %v1920, %v1946
    %v1948 = vrot.slane %v1915, %v1947
    %v1949 = vlaneseq
    %v1950 = vshrl.u32 %v1949, 7
    %v1951 = vsub.s32 %v1920, %v1950
    %v1952 = vrot.slane %v1918, %v1951
    %vm1953 = vcmask 1041409
    %v1954 = vsel %vm1953, %v1928, %v1924
    %vm1955 = vcmask 1042434
    %v1956 = vsel %vm1955, %v1932, %v1954
    %vm1957 = vcmask 1043459
    %v1958 = vsel %vm1957, %v1936, %v1956
    %vm1959 = vcmask 1044484
    %v1960 = vsel %vm1959, %v1940, %v1958
    %vm1961 = vcmask 1045509
    %v1962 = vsel %vm1961, %v1944, %v1960
    %vm1963 = vcmask 1046534
    %v1964 = vsel %vm1963, %v1948, %v1962
    %vm1965 = vcmask 1047559
    %v1966 = vsel %vm1965, %v1952, %v1964
    %1968 = vxpose.xlu0.b32.start [1/16] %v1966, 128
    %1969 = vxpose.xlu0.b32.cont [2/16] 0.0, 128
    %1970 = vxpose.xlu0.b32.cont [3/16] 0.0, 128
    %1971 = vxpose.xlu0.b32.cont [4/16] 0.0, 128
    %1972 = vxpose.xlu0.b32.cont [5/16] 0.0, 128
    %1973 = vxpose.xlu0.b32.cont [6/16] 0.0, 128
    %1974 = vxpose.xlu0.b32.cont [7/16] 0.0, 128
    %1975 = vxpose.xlu0.b32.cont [8/16] 0.0, 128
    %1976 = vxpose.xlu0.b32.cont [9/16] 0.0, 128
    %1977 = vxpose.xlu0.b32.cont [10/16] 0.0, 128
    %1978 = vxpose.xlu0.b32.cont [11/16] 0.0, 128
    %1979 = vxpose.xlu0.b32.cont [12/16] 0.0, 128
    %1980 = vxpose.xlu0.b32.cont [13/16] 0.0, 128
    %1981 = vxpose.xlu0.b32.cont [14/16] 0.0, 128
    %1982 = vxpose.xlu0.b32.cont [15/16] 0.0, 128
    %1983 = vxpose.xlu0.b32.end [16/16] 0.0, 128
    %v1984 = vpop.trf.xlu0
    %v1985 = vpop.trf.xlu0
    %v1986 = vpop.trf.xlu0
    %v1987 = vpop.trf.xlu0
    %v1988 = vpop.trf.xlu0
    %v1989 = vpop.trf.xlu0
    %v1990 = vpop.trf.xlu0
    %v1991 = vpop.trf.xlu0
    %v1992 = vpop.trf.xlu0
    %v1993 = vpop.trf.xlu0
    %v1994 = vpop.trf.xlu0
    %v1995 = vpop.trf.xlu0
    %v1996 = vpop.trf.xlu0
    %v1997 = vpop.trf.xlu0
    %v1998 = vpop.trf.xlu0
    %v1999 = vpop.trf.xlu0
    %vm2000 = vcmask 64512
    %2001 = vst.msk [vmem:[%s57] sm:$0xff] %vm2000, %v1984
    %v2002 = vmul.f32 %v1984, %v1652
    %v2003 = vsel %vm2000, %v2002, 0.0
    %2004 = vadd.xlane.f32.xlu0 %v2003
    %v2005 = vpop.xlane.xlu0 %2004
    %vm2006 = vcmp.gt.f32.partialorder %v1651, 0.0
    %v2007 = vsel %vm2006, %v2005, 1.0
    %v2008 = vmax.f32 %v2007, 1e-30
    %v2009 = vlog2.pop %v2008
    %v2010 = vmul.f32 %v2009, 0.6931472
    %v2011 = vsub.f32 0.0, %v2010
    %v2012 = vsel %vm1815, %v2011, 0.0
    %v2013 = vrot.slane %v2012, 4
    %v2014 = vadd.f32 %v2012, %v2013
    %v2015 = vrot.slane %v2014, 2
    %v2016 = vadd.f32 %v2014, %v2015
    %v2017 = vrot.slane %v2016, 1
    %v2018 = vadd.f32 %v2016, %v2017
    %v2019 = vadd.f32 %v2018, 0.0
    %v2028 = vmul.f32 %v1897, %v1421
    %v2029 = vmul.f32 %v1900, %v1422
    %v2030 = vmul.f32 %v1903, %v1423
    %v2031 = vmul.f32 %v1906, %v1424
    %v2032 = vmul.f32 %v1909, %v1425
    %v2033 = vmul.f32 %v1912, %v1426
    %v2034 = vmul.f32 %v1915, %v1427
    %v2035 = vmul.f32 %v1918, %v1428
    %v2036 = vsel %vm617, %v2028, 0.0
    %v2037 = vsel %vm617, %v2029, 0.0
    %v2038 = vadd.f32 %v2036, %v2037
    %v2039 = vsel %vm617, %v2030, 0.0
    %v2040 = vadd.f32 %v2038, %v2039
    %v2041 = vsel %vm617, %v2031, 0.0
    %v2042 = vadd.f32 %v2040, %v2041
    %v2043 = vsel %vm617, %v2032, 0.0
    %v2044 = vadd.f32 %v2042, %v2043
    %v2045 = vsel %vm617, %v2033, 0.0
    %v2046 = vadd.f32 %v2044, %v2045
    %v2047 = vsel %vm617, %v2034, 0.0
    %v2048 = vadd.f32 %v2046, %v2047
    %v2049 = vsel %vm617, %v2035, 0.0
    %v2050 = vadd.f32 %v2048, %v2049
    %v2051 = vmul.f32 %v1897, %v1429
    %v2052 = vmul.f32 %v1900, %v1430
    %v2053 = vmul.f32 %v1903, %v1431
    %v2054 = vmul.f32 %v1906, %v1432
    %v2055 = vmul.f32 %v1909, %v1433
    %v2056 = vmul.f32 %v1912, %v1434
    %v2057 = vmul.f32 %v1915, %v1435
    %v2058 = vmul.f32 %v1918, %v1436
    %v2059 = vsel %vm617, %v2051, 0.0
    %v2060 = vsel %vm617, %v2052, 0.0
    %v2061 = vadd.f32 %v2059, %v2060
    %v2062 = vsel %vm617, %v2053, 0.0
    %v2063 = vadd.f32 %v2061, %v2062
    %v2064 = vsel %vm617, %v2054, 0.0
    %v2065 = vadd.f32 %v2063, %v2064
    %v2066 = vsel %vm617, %v2055, 0.0
    %v2067 = vadd.f32 %v2065, %v2066
    %v2068 = vsel %vm617, %v2056, 0.0
    %v2069 = vadd.f32 %v2067, %v2068
    %v2070 = vsel %vm617, %v2057, 0.0
    %v2071 = vadd.f32 %v2069, %v2070
    %v2072 = vsel %vm617, %v2058, 0.0
    %v2073 = vadd.f32 %v2071, %v2072
    %v2074 = vpack.c.bf16 %v2050, %v2050
    %v2075 = vpack.c.bf16 %v2073, %v2073
    %v2080 = vunpack.c.l.b16 %v1642
    %v2081 = vunpack.c.l.b16 %v1643
    %v2082 = vunpack.c.l.b16 %v1644
    %v2083 = vunpack.c.l.b16 %v1645
    %v2084 = vpack.c.b16 %v2081, %v2080
    %v2085 = vpack.c.b16 %v2083, %v2082
    %v2089 = vsel %vm617, %v2075, 0
    %2091 = vmatprep.subr.bf16.mxu0 0
    %2092 = vmatpush1.bf16.msra.mxu0 0
    %2093 = vmatprep.subr.bf16.mxu0 0
    %2094 = vmatpush1.bf16.msra.mxu0 0
    %2095 = vmatprep.subr.bf16.mxu0 0
    %2096 = vmatpush1.bf16.msra.mxu0 0
    %2097 = vmatprep.subr.bf16.mxu0 0
    %2098 = vmatpush1.bf16.msra.mxu0 0
    %2099 = vmatprep.subr.bf16.mxu0 0
    %2100 = vmatpush1.bf16.msra.mxu0 0
    %2101 = vmatprep.subr.bf16.mxu0 0
    %2102 = vmatpush1.bf16.msra.mxu0 0
    %2103 = vmatprep.subr.bf16.mxu0 0
    %2104 = vmatpush1.bf16.msra.mxu0 %v2085
    %2105 = vmatprep.subr.bf16.mxu0 0
    %2106 = vmatpush1.bf16.msra.mxu0 %v2084
    %2107 = vmatprep.subr.bf16.mxu0 0
    %2108 = vmatpush2.bf16.msra.mxu0 0
    %2109 = vmatprep.subr.bf16.mxu0 0
    %2110 = vmatpush2.bf16.msra.mxu0 0
    %2111 = vmatprep.subr.bf16.mxu0 0
    %2112 = vmatpush2.bf16.msra.mxu0 0
    %2113 = vmatprep.subr.bf16.mxu0 0
    %2114 = vmatpush2.bf16.msra.mxu0 0
    %2115 = vmatprep.subr.bf16.mxu0 0
    %2116 = vmatpush2.bf16.msra.mxu0 0
    %2117 = vmatprep.subr.bf16.mxu0 0
    %2118 = vmatpush2.bf16.msra.mxu0 0
    %2119 = vmatprep.subr.bf16.mxu0 0
    %2120 = vmatpush2.bf16.msra.mxu0 0
    %2121 = vmatprep.subr.bf16.mxu0 0
    %2122 = vmatpush2.bf16.msra.mxu0 0
    %2123 = vmatprep.mubr.bf16.mxu0 0
    %2124 = vmatmul.mubr.bf16.gmra.mxu0 %v2089
    %v2125 = vpop.f32.mrf.mxu0
    %v2126 = vadd.f32 0.0, %v2125
    %v2127 = vpop.f32.mrf.mxu0
    %v2128 = vpop.f32.mrf.mxu0
    %v2129 = vpop.f32.mrf.mxu0
    %2130 = vdwg.mxu0
    %v2135 = vunpack.c.l.b16 %v1638
    %v2136 = vunpack.c.l.b16 %v1639
    %v2137 = vunpack.c.l.b16 %v1640
    %v2138 = vunpack.c.l.b16 %v1641
    %v2139 = vpack.c.b16 %v2136, %v2135
    %v2140 = vpack.c.b16 %v2138, %v2137
    %v2144 = vsel %vm617, %v2074, 0
    %2146 = vmatprep.subr.bf16.mxu0 0
    %2147 = vmatpush1.bf16.msra.mxu0 0
    %2148 = vmatprep.subr.bf16.mxu0 0
    %2149 = vmatpush1.bf16.msra.mxu0 0
    %2150 = vmatprep.subr.bf16.mxu0 0
    %2151 = vmatpush1.bf16.msra.mxu0 0
    %2152 = vmatprep.subr.bf16.mxu0 0
    %2153 = vmatpush1.bf16.msra.mxu0 0
    %2154 = vmatprep.subr.bf16.mxu0 0
    %2155 = vmatpush1.bf16.msra.mxu0 0
    %2156 = vmatprep.subr.bf16.mxu0 0
    %2157 = vmatpush1.bf16.msra.mxu0 0
    %2158 = vmatprep.subr.bf16.mxu0 0
    %2159 = vmatpush1.bf16.msra.mxu0 %v2140
    %2160 = vmatprep.subr.bf16.mxu0 0
    %2161 = vmatpush1.bf16.msra.mxu0 %v2139
    %2162 = vmatprep.subr.bf16.mxu0 0
    %2163 = vmatpush2.bf16.msra.mxu0 0
    %2164 = vmatprep.subr.bf16.mxu0 0
    %2165 = vmatpush2.bf16.msra.mxu0 0
    %2166 = vmatprep.subr.bf16.mxu0 0
    %2167 = vmatpush2.bf16.msra.mxu0 0
    %2168 = vmatprep.subr.bf16.mxu0 0
    %2169 = vmatpush2.bf16.msra.mxu0 0
    %2170 = vmatprep.subr.bf16.mxu0 0
    %2171 = vmatpush2.bf16.msra.mxu0 0
    %2172 = vmatprep.subr.bf16.mxu0 0
    %2173 = vmatpush2.bf16.msra.mxu0 0
    %2174 = vmatprep.subr.bf16.mxu0 0
    %2175 = vmatpush2.bf16.msra.mxu0 0
    %2176 = vmatprep.subr.bf16.mxu0 0
    %2177 = vmatpush2.bf16.msra.mxu0 0
    %2178 = vmatprep.mubr.bf16.mxu0 0
    %2179 = vmatmul.mubr.bf16.gmra.mxu0 %v2144
    %v2180 = vpop.f32.mrf.mxu0
    %v2181 = vadd.f32 %v2126, %v2180
    %v2182 = vpop.f32.mrf.mxu0
    %v2183 = vpop.f32.mrf.mxu0
    %v2184 = vpop.f32.mrf.mxu0
    %2185 = vdwg.mxu0
    %v2190 = vunpack.c.l.b16 %v1646
    %v2191 = vunpack.c.l.b16 %v1647
    %v2192 = vunpack.c.l.b16 %v1648
    %v2193 = vunpack.c.l.b16 %v1649
    %v2194 = vpack.c.b16 %v2191, %v2190
    %v2195 = vpack.c.b16 %v2193, %v2192
    %2198 = vmatprep.subr.bf16.mxu0 0
    %2199 = vmatpush1.bf16.msra.mxu0 0
    %2200 = vmatprep.subr.bf16.mxu0 0
    %2201 = vmatpush1.bf16.msra.mxu0 0
    %2202 = vmatprep.subr.bf16.mxu0 0
    %2203 = vmatpush1.bf16.msra.mxu0 0
    %2204 = vmatprep.subr.bf16.mxu0 0
    %2205 = vmatpush1.bf16.msra.mxu0 0
    %2206 = vmatprep.subr.bf16.mxu0 0
    %2207 = vmatpush1.bf16.msra.mxu0 0
    %2208 = vmatprep.subr.bf16.mxu0 0
    %2209 = vmatpush1.bf16.msra.mxu0 0
    %2210 = vmatprep.subr.bf16.mxu0 0
    %2211 = vmatpush1.bf16.msra.mxu0 %v2195
    %2212 = vmatprep.subr.bf16.mxu0 0
    %2213 = vmatpush1.bf16.msra.mxu0 %v2194
    %2214 = vmatprep.subr.bf16.mxu0 0
    %2215 = vmatpush2.bf16.msra.mxu0 0
    %2216 = vmatprep.subr.bf16.mxu0 0
    %2217 = vmatpush2.bf16.msra.mxu0 0
    %2218 = vmatprep.subr.bf16.mxu0 0
    %2219 = vmatpush2.bf16.msra.mxu0 0
    %2220 = vmatprep.subr.bf16.mxu0 0
    %2221 = vmatpush2.bf16.msra.mxu0 0
    %2222 = vmatprep.subr.bf16.mxu0 0
    %2223 = vmatpush2.bf16.msra.mxu0 0
    %2224 = vmatprep.subr.bf16.mxu0 0
    %2225 = vmatpush2.bf16.msra.mxu0 0
    %2226 = vmatprep.subr.bf16.mxu0 0
    %2227 = vmatpush2.bf16.msra.mxu0 0
    %2228 = vmatprep.subr.bf16.mxu0 0
    %2229 = vmatpush2.bf16.msra.mxu0 0
    %2230 = vmatprep.mubr.bf16.mxu0 0
    %2231 = vmatmul.mubr.bf16.gmra.mxu0 %v1697
    %v2232 = vpop.f32.mrf.mxu0
    %v2233 = vadd.f32 0.0, %v2232
    %v2234 = vpop.f32.mrf.mxu0
    %v2235 = vpop.f32.mrf.mxu0
    %v2236 = vpop.f32.mrf.mxu0
    %2237 = vdwg.mxu0
    %v2238 = vadd.f32 %v2181, %v2233
    %v2240 = vlaneseq
    %v2241 = vshrl.u32 %v2240, 7
    %v2242 = vsub.s32 0, %v2241
    %v2243 = vrot.slane %v1650, %v2242
    %v2245 = vadd.f32 %v2238, %v2243
    %v2246 = vxor.u32 %v2245, 2147483648
    %v2247 = vmul.f32 %v2246, 1.442695
    %v2248 = vpow.pop %v2247
    %v2249 = vadd.f32 %v2248, 1.0
    %v2250 = vrcp.pop %v2249
    %v2251 = vmul.f32 1.0, %v2250
    %v2252 = vtanh.pop %v2245
    %v2253 = vmul.f32 %v2251, 0.0
    %2255 = vrot.lane.b32.xlu0 %v2252, 32
    %v2256 = vpop.permute.xlu0 %2255
    %v2258 = vmul.f32 %v2251, %v2256
    %2260 = vrot.lane.b32.xlu0 %v2258, 32
    %v2261 = vpop.permute.xlu0 %2260
    %v2263 = vadd.f32 %v2253, %v2261
    %v2264 = vtanh.pop %v2263
    %2266 = vrot.lane.b32.xlu0 %v2264, 32
    %v2267 = vpop.permute.xlu0 %2266
    %v2269 = vmul.f32 %v2251, %v2267
    %v2270 = vpack.c.bf16 %v2269, %v2269
    %2272 = vrot.lane.b32.xlu0 %v2270, 64
    %v2273 = vpop.permute.xlu0 %2272
    %v2275 = vsel %vm617, %v2273, 0
    %2277 = vmatprep.subr.bf16.mxu0 0
    %2278 = vmatpush1.bf16.msra.mxu0 0
    %2279 = vmatprep.subr.bf16.mxu0 0
    %2280 = vmatpush1.bf16.msra.mxu0 0
    %2281 = vmatprep.subr.bf16.mxu0 0
    %2282 = vmatpush1.bf16.msra.mxu0 0
    %2283 = vmatprep.subr.bf16.mxu0 0
    %2284 = vmatpush1.bf16.msra.mxu0 0
    %2285 = vmatprep.subr.bf16.mxu0 0
    %2286 = vmatpush1.bf16.msra.mxu0 0
    %2287 = vmatprep.subr.bf16.mxu0 0
    %2288 = vmatpush1.bf16.msra.mxu0 0
    %2289 = vmatprep.subr.bf16.mxu0 0
    %2290 = vmatpush1.bf16.msra.mxu0 %v1693
    %2291 = vmatprep.subr.bf16.mxu0 0
    %2292 = vmatpush1.bf16.msra.mxu0 %v1692
    %2293 = vmatprep.subr.bf16.mxu0 0
    %2294 = vmatpush2.bf16.msra.mxu0 0
    %2295 = vmatprep.subr.bf16.mxu0 0
    %2296 = vmatpush2.bf16.msra.mxu0 0
    %2297 = vmatprep.subr.bf16.mxu0 0
    %2298 = vmatpush2.bf16.msra.mxu0 0
    %2299 = vmatprep.subr.bf16.mxu0 0
    %2300 = vmatpush2.bf16.msra.mxu0 0
    %2301 = vmatprep.subr.bf16.mxu0 0
    %2302 = vmatpush2.bf16.msra.mxu0 0
    %2303 = vmatprep.subr.bf16.mxu0 0
    %2304 = vmatpush2.bf16.msra.mxu0 0
    %2305 = vmatprep.subr.bf16.mxu0 0
    %2306 = vmatpush2.bf16.msra.mxu0 0
    %2307 = vmatprep.subr.bf16.mxu0 0
    %2308 = vmatpush2.bf16.msra.mxu0 0
    %2309 = vmatprep.mubr.bf16.mxu0 0
    %2310 = vmatmul.mubr.bf16.gmra.mxu0 %v2275
    %v2311 = vpop.f32.mrf.mxu0
    %v2312 = vadd.f32 %v1682, %v2311
    %v2313 = vpop.f32.mrf.mxu0
    %v2314 = vpop.f32.mrf.mxu0
    %v2315 = vpop.f32.mrf.mxu0
    %2316 = vdwg.mxu0
    %v2317 = vadd.f32 %v1601, %v2312
    %v2318 = vadd.f32 %v1604, %v2312
    %v2319 = vadd.f32 %v1609, %v2312
    %v2320 = vadd.f32 %v1612, %v2312
    %v2321 = vadd.f32 %v1617, %v2312
    %v2322 = vadd.f32 %v1620, %v2312
    %v2323 = vadd.f32 %v1625, %v2312
    %v2324 = vadd.f32 %v1628, %v2312
    %v2325 = vtanh.pop %v2317
    %v2326 = vtanh.pop %v2318
    %v2327 = vtanh.pop %v2319
    %v2328 = vtanh.pop %v2320
    %v2329 = vtanh.pop %v2321
    %v2330 = vtanh.pop %v2322
    %v2331 = vtanh.pop %v2323
    %v2332 = vtanh.pop %v2324
    %v2333 = vmul.f32 %v2325, %v1759
    %v2334 = vmul.f32 %v2326, %v1759
    %v2335 = vmul.f32 %v2327, %v1759
    %v2336 = vmul.f32 %v2328, %v1759
    %v2337 = vmul.f32 %v2329, %v1759
    %v2338 = vmul.f32 %v2330, %v1759
    %v2339 = vmul.f32 %v2331, %v1759
    %v2340 = vmul.f32 %v2332, %v1759
    %v2341 = vsel %vm617, %v2333, 0.0
    %2342 = vadd.xlane.f32.xlu0 %v2341
    %v2343 = vpop.xlane.xlu0 %2342
    %v2344 = vsel %vm617, %v2334, 0.0
    %2345 = vadd.xlane.f32.xlu0 %v2344
    %v2346 = vpop.xlane.xlu0 %2345
    %v2347 = vsel %vm617, %v2335, 0.0
    %2348 = vadd.xlane.f32.xlu0 %v2347
    %v2349 = vpop.xlane.xlu0 %2348
    %v2350 = vsel %vm617, %v2336, 0.0
    %2351 = vadd.xlane.f32.xlu0 %v2350
    %v2352 = vpop.xlane.xlu0 %2351
    %v2353 = vsel %vm617, %v2337, 0.0
    %2354 = vadd.xlane.f32.xlu0 %v2353
    %v2355 = vpop.xlane.xlu0 %2354
    %v2356 = vsel %vm617, %v2338, 0.0
    %2357 = vadd.xlane.f32.xlu0 %v2356
    %v2358 = vpop.xlane.xlu0 %2357
    %v2359 = vsel %vm617, %v2339, 0.0
    %2360 = vadd.xlane.f32.xlu0 %v2359
    %v2361 = vpop.xlane.xlu0 %2360
    %v2362 = vsel %vm617, %v2340, 0.0
    %2363 = vadd.xlane.f32.xlu0 %v2362
    %v2364 = vpop.xlane.xlu0 %2363
    %v2365 = vadd.f32 %v2343, %v1797
    %v2366 = vadd.f32 %v2346, %v1797
    %v2367 = vadd.f32 %v2349, %v1797
    %v2368 = vadd.f32 %v2352, %v1797
    %v2369 = vadd.f32 %v2355, %v1797
    %v2370 = vadd.f32 %v2358, %v1797
    %v2371 = vadd.f32 %v2361, %v1797
    %v2372 = vadd.f32 %v2364, %v1797
    %v2373 = vsel %vm1654, %v2365, -1e+30
    %v2374 = vsel %vm1655, %v2366, -1e+30
    %v2375 = vsel %vm1656, %v2367, -1e+30
    %v2376 = vsel %vm1657, %v2368, -1e+30
    %v2377 = vsel %vm1658, %v2369, -1e+30
    %v2378 = vsel %vm1659, %v2370, -1e+30
    %v2379 = vsel %vm1660, %v2371, -1e+30
    %v2380 = vsel %vm1661, %v2372, -1e+30
    %v2381 = vsel %vm1815, %v2373, -inf
    %v2382 = vsel %vm1815, %v2374, -inf
    %v2383 = vsel %vm1815, %v2375, -inf
    %v2384 = vsel %vm1815, %v2376, -inf
    %v2385 = vsel %vm1815, %v2377, -inf
    %v2386 = vmax.f32 %v2381, %v2385
    %v2387 = vsel %vm1815, %v2378, -inf
    %v2388 = vmax.f32 %v2382, %v2387
    %v2389 = vsel %vm1815, %v2379, -inf
    %v2390 = vmax.f32 %v2383, %v2389
    %v2391 = vsel %vm1815, %v2380, -inf
    %v2392 = vmax.f32 %v2384, %v2391
    %v2393 = vmax.f32 %v2386, %v2388
    %v2394 = vmax.f32 %v2390, %v2392
    %v2395 = vmax.f32 %v2393, %v2394
    %v2396 = vsub.f32 %v2373, %v2395
    %v2397 = vsub.f32 %v2374, %v2395
    %v2398 = vsub.f32 %v2375, %v2395
    %v2399 = vsub.f32 %v2376, %v2395
    %v2400 = vsub.f32 %v2377, %v2395
    %v2401 = vsub.f32 %v2378, %v2395
    %v2402 = vsub.f32 %v2379, %v2395
    %v2403 = vsub.f32 %v2380, %v2395
    %v2404 = vmul.f32 %v2396, 1.442695
    %v2405 = vpow.pop %v2404
    %v2406 = vmul.f32 %v2397, 1.442695
    %v2407 = vpow.pop %v2406
    %v2408 = vmul.f32 %v2398, 1.442695
    %v2409 = vpow.pop %v2408
    %v2410 = vmul.f32 %v2399, 1.442695
    %v2411 = vpow.pop %v2410
    %v2412 = vmul.f32 %v2400, 1.442695
    %v2413 = vpow.pop %v2412
    %v2414 = vmul.f32 %v2401, 1.442695
    %v2415 = vpow.pop %v2414
    %v2416 = vmul.f32 %v2402, 1.442695
    %v2417 = vpow.pop %v2416
    %v2418 = vmul.f32 %v2403, 1.442695
    %v2419 = vpow.pop %v2418
    %v2420 = vsel %vm1815, %v2405, 0.0
    %v2421 = vsel %vm1815, %v2407, 0.0
    %v2422 = vadd.f32 %v2420, %v2421
    %v2423 = vsel %vm1815, %v2409, 0.0
    %v2424 = vadd.f32 %v2422, %v2423
    %v2425 = vsel %vm1815, %v2411, 0.0
    %v2426 = vadd.f32 %v2424, %v2425
    %v2427 = vsel %vm1815, %v2413, 0.0
    %v2428 = vadd.f32 %v2426, %v2427
    %v2429 = vsel %vm1815, %v2415, 0.0
    %v2430 = vadd.f32 %v2428, %v2429
    %v2431 = vsel %vm1815, %v2417, 0.0
    %v2432 = vadd.f32 %v2430, %v2431
    %v2433 = vsel %vm1815, %v2419, 0.0
    %v2434 = vadd.f32 %v2432, %v2433
    %v2435 = vrcp.pop %v2434
    %v2436 = vmul.f32 %v2405, %v2435
    %v2437 = vmul.f32 %v2407, %v2435
    %v2438 = vmul.f32 %v2409, %v2435
    %v2439 = vmul.f32 %v2411, %v2435
    %v2440 = vmul.f32 %v2413, %v2435
    %v2441 = vmul.f32 %v2415, %v2435
    %v2442 = vmul.f32 %v2417, %v2435
    %v2443 = vmul.f32 %v2419, %v2435
    %v2444 = vmul.f32 %v2436, %v1670
    %v2445 = vmul.f32 %v2437, %v1671
    %v2446 = vmul.f32 %v2438, %v1672
    %v2447 = vmul.f32 %v2439, %v1673
    %v2448 = vmul.f32 %v2440, %v1674
    %v2449 = vmul.f32 %v2441, %v1675
    %v2450 = vmul.f32 %v2442, %v1676
    %v2451 = vmul.f32 %v2443, %v1677
    %2460 = vset.pattern.permute.xlu0 0
    %2461 = vperm.xlu0 %2460, %v2444
    %v2462 = vpop.permute.xlu0 %2461
    %2463 = vset.pattern.permute.xlu0 0
    %2464 = vperm.xlu0 %2463, %v2445
    %v2465 = vpop.permute.xlu0 %2464
    %2466 = vset.pattern.permute.xlu0 0
    %2467 = vperm.xlu0 %2466, %v2446
    %v2468 = vpop.permute.xlu0 %2467
    %2469 = vset.pattern.permute.xlu0 0
    %2470 = vperm.xlu0 %2469, %v2447
    %v2471 = vpop.permute.xlu0 %2470
    %2472 = vset.pattern.permute.xlu0 0
    %2473 = vperm.xlu0 %2472, %v2448
    %v2474 = vpop.permute.xlu0 %2473
    %2475 = vset.pattern.permute.xlu0 0
    %2476 = vperm.xlu0 %2475, %v2449
    %v2477 = vpop.permute.xlu0 %2476
    %2478 = vset.pattern.permute.xlu0 0
    %2479 = vperm.xlu0 %2478, %v2450
    %v2480 = vpop.permute.xlu0 %2479
    %2481 = vset.pattern.permute.xlu0 0
    %2482 = vperm.xlu0 %2481, %v2451
    %v2483 = vpop.permute.xlu0 %2482
    %v2484 = vlaneseq
    %v2485 = vshrl.u32 %v2484, 7
    %v2486 = vsub.s32 %v1920, %v2485
    %v2487 = vrot.slane %v2462, %v2486
    %v2488 = vlaneseq
    %v2489 = vshrl.u32 %v2488, 7
    %v2490 = vsub.s32 %v1920, %v2489
    %v2491 = vrot.slane %v2465, %v2490
    %v2492 = vlaneseq
    %v2493 = vshrl.u32 %v2492, 7
    %v2494 = vsub.s32 %v1920, %v2493
    %v2495 = vrot.slane %v2468, %v2494
    %v2496 = vlaneseq
    %v2497 = vshrl.u32 %v2496, 7
    %v2498 = vsub.s32 %v1920, %v2497
    %v2499 = vrot.slane %v2471, %v2498
    %v2500 = vlaneseq
    %v2501 = vshrl.u32 %v2500, 7
    %v2502 = vsub.s32 %v1920, %v2501
    %v2503 = vrot.slane %v2474, %v2502
    %v2504 = vlaneseq
    %v2505 = vshrl.u32 %v2504, 7
    %v2506 = vsub.s32 %v1920, %v2505
    %v2507 = vrot.slane %v2477, %v2506
    %v2508 = vlaneseq
    %v2509 = vshrl.u32 %v2508, 7
    %v2510 = vsub.s32 %v1920, %v2509
    %v2511 = vrot.slane %v2480, %v2510
    %v2512 = vlaneseq
    %v2513 = vshrl.u32 %v2512, 7
    %v2514 = vsub.s32 %v1920, %v2513
    %v2515 = vrot.slane %v2483, %v2514
    %v2516 = vsel %vm1953, %v2491, %v2487
    %v2517 = vsel %vm1955, %v2495, %v2516
    %v2518 = vsel %vm1957, %v2499, %v2517
    %v2519 = vsel %vm1959, %v2503, %v2518
    %v2520 = vsel %vm1961, %v2507, %v2519
    %v2521 = vsel %vm1963, %v2511, %v2520
    %v2522 = vsel %vm1965, %v2515, %v2521
    %2524 = vxpose.xlu0.b32.start [1/16] %v2522, 128
    %2525 = vxpose.xlu0.b32.cont [2/16] 0.0, 128
    %2526 = vxpose.xlu0.b32.cont [3/16] 0.0, 128
    %2527 = vxpose.xlu0.b32.cont [4/16] 0.0, 128
    %2528 = vxpose.xlu0.b32.cont [5/16] 0.0, 128
    %2529 = vxpose.xlu0.b32.cont [6/16] 0.0, 128
    %2530 = vxpose.xlu0.b32.cont [7/16] 0.0, 128
    %2531 = vxpose.xlu0.b32.cont [8/16] 0.0, 128
    %2532 = vxpose.xlu0.b32.cont [9/16] 0.0, 128
    %2533 = vxpose.xlu0.b32.cont [10/16] 0.0, 128
    %2534 = vxpose.xlu0.b32.cont [11/16] 0.0, 128
    %2535 = vxpose.xlu0.b32.cont [12/16] 0.0, 128
    %2536 = vxpose.xlu0.b32.cont [13/16] 0.0, 128
    %2537 = vxpose.xlu0.b32.cont [14/16] 0.0, 128
    %2538 = vxpose.xlu0.b32.cont [15/16] 0.0, 128
    %2539 = vxpose.xlu0.b32.end [16/16] 0.0, 128
    %v2540 = vpop.trf.xlu0
    %v2541 = vpop.trf.xlu0
    %v2542 = vpop.trf.xlu0
    %v2543 = vpop.trf.xlu0
    %v2544 = vpop.trf.xlu0
    %v2545 = vpop.trf.xlu0
    %v2546 = vpop.trf.xlu0
    %v2547 = vpop.trf.xlu0
    %v2548 = vpop.trf.xlu0
    %v2549 = vpop.trf.xlu0
    %v2550 = vpop.trf.xlu0
    %v2551 = vpop.trf.xlu0
    %v2552 = vpop.trf.xlu0
    %v2553 = vpop.trf.xlu0
    %v2554 = vpop.trf.xlu0
    %v2555 = vpop.trf.xlu0
    %s2556 = scalar_lea.vmem %s57, 8
    %2557 = vst.msk [vmem:[%s2556] sm:$0xff] %vm2000, %v2540
    %v2558 = vmul.f32 %v2540, %v1653
    %v2559 = vsel %vm2000, %v2558, 0.0
    %2560 = vadd.xlane.f32.xlu0 %v2559
    %v2561 = vpop.xlane.xlu0 %2560
    %v2562 = vsel %vm2006, %v2561, 1.0
    %v2563 = vmax.f32 %v2562, 1e-30
    %v2564 = vlog2.pop %v2563
    %v2565 = vmul.f32 %v2564, 0.6931472
    %v2566 = vsub.f32 0.0, %v2565
    %v2567 = vsel %vm1815, %v2566, 0.0
    %v2568 = vrot.slane %v2567, 4
    %v2569 = vadd.f32 %v2567, %v2568
    %v2570 = vrot.slane %v2569, 2
    %v2571 = vadd.f32 %v2569, %v2570
    %v2572 = vrot.slane %v2571, 1
    %v2573 = vadd.f32 %v2571, %v2572
    %v2574 = vadd.f32 %v2019, %v2573
    %v2575 = vmul.f32 %v2574, 0.5
    %vm2576 = vcmask 0
    %2577 = vst.msk [vmem:[#allocation12] sm:$0x1] %vm2576, %v2575
    // Predicated region
    $region135: #{match_lstm_forward.1} parent=1 // pred_check
      _
    $region136: #{match_lstm_forward.1} parent=1 // pred_check_branch
      %2579 = sbr.rel (0) target = $region138
    $region137: #{match_lstm_forward.1} parent=1 // pred_region
      _
    $region138: #{match_lstm_forward.1} parent=1 // pred_fallthru
      _
    // Predicated region
    $region139: #{match_lstm_forward.1} parent=1 // pred_check
      _
    $region140: #{match_lstm_forward.1} parent=1 // pred_check_branch
      %2581 = sbr.rel (0) target = $region142
    $region141: #{match_lstm_forward.1} parent=1 // pred_region
      %s2583 = ssub.s32 16, 16
      %2584 = vsyncadd [#allocation13], %s2583
      %s2586 = sshll.u32 [#allocation12], 4
      %s2587 = int_to_ptr.vmem [resolvable:$true] %s2586
      %2589 = dma.vmem_to_hbm [thread:$0]  %s2587, 16, %s59, [#allocation13]
    $region142: #{match_lstm_forward.1} parent=1 // pred_fallthru
      _
    // Predicated region
    $region143: #{match_lstm_forward.1} parent=1 // pred_check
      _
    $region144: #{match_lstm_forward.1} parent=1 // pred_check_branch
      %2591 = sbr.rel (0) target = $region146
    $region145: #{match_lstm_forward.1} parent=1 // pred_region
      _
    $region146: #{match_lstm_forward.1} parent=1 // pred_fallthru
      _
    // Predicated region
    $region147: #{match_lstm_forward.1} parent=1 // pred_check
      _
    $region148: #{match_lstm_forward.1} parent=1 // pred_check_branch
      %2593 = sbr.rel (0) target = $region150
    $region149: #{match_lstm_forward.1} parent=1 // pred_region
      %2594 = dma.done [#allocation13], 16
    $region150: #{match_lstm_forward.1} parent=1 // pred_fallthru
      _
    %2595 = vsyncpa [#allocation13], 1

</llo_original>
